<compile_context>
chip_gen: v7x
topology: tpu7x:2x2x1
jax: 0.10.0
libtpu: 0.0.40
codegen_flags: <defaults>
</compile_context>

<pallas_src>
import jax
import jax.numpy as jnp
import numpy as np
from jax.experimental import pallas as pl
from jax.experimental.pallas import tpu as pltpu


def self_attention_kernel(scal_ref, x_ref, out_ref):
    # scalars from SMEM (scalar loads, broadcast on the scalar path)
    A     = scal_ref[0]
    B2    = scal_ref[1]
    wv    = scal_ref[2]
    bv    = scal_ref[3]
    gamma = scal_ref[4]

    x = x_ref[...]                                    # (TB, F), f32, F on lanes

    # energy[b,i,j] = (A*x[b,i] + B2) * x[b,j]
    # (equals the reference softmax input up to a per-row constant shift,
    #  which softmax over j ignores -> identical attention)
    s = A * x + B2                                    # (TB, F) per-(b,i) scale
    keys = x[:, None, :]                              # (TB, 1, F)
    energy = s[:, :, None] * keys                     # (TB, F, F)

    # numerically-stable softmax over j, fused with the value weighted sum
    m = jnp.max(energy, axis=-1, keepdims=True)       # (TB, F, 1)
    e = jnp.exp(energy - m)                           # (TB, F, F)
    denom = jnp.sum(e, axis=-1)                       # (TB, F)
    num = jnp.sum(e * keys, axis=-1)                  # (TB, F)  = sum_j e * x_j
    out_att = num / denom                             # = sum_j attn[b,i,j]*x[b,j]

    # out = gamma * (wv*out_att + bv) + x   (residual)
    out_ref[...] = (gamma * wv) * out_att + (gamma * bv) + x


def self_attention_forward(x, scalars, *, tb=8):
    B, F = x.shape
    assert B % tb == 0, "batch must be divisible by the batch tile"
    return pl.pallas_call(
        self_attention_kernel,
        out_shape=jax.ShapeDtypeStruct((B, F), jnp.float32),
        grid=(B // tb,),
        in_specs=[
            pl.BlockSpec(memory_space=pltpu.MemorySpace.SMEM),   # (5,) scalars
            pl.BlockSpec((tb, F), lambda i: (i, 0)),             # x batch tile
        ],
        out_specs=pl.BlockSpec((tb, F), lambda i: (i, 0)),
        compiler_params=pltpu.CompilerParams(
            dimension_semantics=("parallel",),
        ),
    )(scalars, x)


def prepare_scalars(wq, bq, wk, bk, wv, bv, gamma):
    """Parameter-only prep (runs once, outside the kernel hot path).

    energy[b,i,j] = sum_c (wq_c x_i + bq_c)(wk_c x_j + bk_c)
                  = A x_i x_j + B1 x_i + B2 x_j + C
    B1 and C are constant along j and cancel under softmax, so only A and B2
    (plus the value-conv scalars and gamma) reach the kernel.
    """
    wq_v = wq.reshape(-1)
    wk_v = wk.reshape(-1)
    A = jnp.sum(wq_v * wk_v)
    B2 = jnp.sum(bq * wk_v)
    return jnp.stack(
        [A, B2, wv.reshape(()), bv.reshape(()), gamma.reshape(())]
    ).astype(jnp.float32)


def spectral_normalize(w, key, n_iter=1, eps=1e-12):
    """Weight rescale mimicking torch.nn.utils.spectral_norm (one power iter)."""
    # TODO(synk): torch keeps a persistent `u` buffer across forwards; here a
    # fresh deterministic u is drawn once at parameter-prep time.
    w_mat = w.reshape(w.shape[0], -1)
    u = jax.random.normal(key, (w_mat.shape[0],), dtype=w_mat.dtype)
    u = u / (jnp.linalg.norm(u) + eps)
    v = None
    for _ in range(n_iter):
        v = w_mat.T @ u
        v = v / (jnp.linalg.norm(v) + eps)
        u = w_mat @ v
        u = u / (jnp.linalg.norm(u) + eps)
    sigma = u @ (w_mat @ v)
    return w / sigma


if __name__ == "__main__":
    in_dim = 128                 # feature dim (lane-dense: multiple of 128)
    C8 = in_dim // 8             # query/key conv output channels
    B = 16                       # batch
    TB = 8                       # batch tile per grid step (multiple of 8)

    key = jax.random.PRNGKey(0)
    keys = jax.random.split(key, 10)

    def uni(k, shape, fan_in):
        bound = 1.0 / float(np.sqrt(fan_in))
        return jax.random.uniform(k, shape, jnp.float32, -bound, bound)

    # Conv1d(1 -> C, kernel_size=1) parameters (fan_in = 1), spectral-normalized.
    wq = spectral_normalize(uni(keys[0], (C8, 1, 1), 1), keys[1])
    bq = uni(keys[2], (C8,), 1)
    wk = spectral_normalize(uni(keys[3], (C8, 1, 1), 1), keys[4])
    bk = uni(keys[5], (C8,), 1)
    wv = spectral_normalize(uni(keys[6], (1, 1, 1), 1), keys[7])
    bv = uni(keys[8], (1,), 1)
    # gamma is nn.Parameter(torch.zeros(1)) in the module; use a nonzero value
    # here so the attention path is actually exercised by the check.
    gamma = jnp.asarray([0.5], jnp.float32)

    x = jax.random.normal(keys[9], (B, in_dim), jnp.float32)

    scalars = prepare_scalars(wq, bq, wk, bk, wv, bv, gamma)
    out = jax.block_until_ready(self_attention_forward(x, scalars, tb=TB))

    # ---- pure-JAX reference mirroring the PyTorch forward op-by-op ----
    def ref_forward(x):
        wq_v = wq.reshape(C8)
        wk_v = wk.reshape(C8)
        pq = x[:, :, None] * wq_v[None, None, :] + bq[None, None, :]   # (B,F,C8)
        pk = wk_v[None, :, None] * x[:, None, :] + bk[None, :, None]   # (B,C8,F)
        energy = jnp.einsum("bic,bcj->bij", pq, pk)                    # (B,F,F)
        attn = jax.nn.softmax(energy, axis=-1)
        pv = wv.reshape(()) * x + bv[0]                                # (B,F)
        out_att = jnp.einsum("bj,bij->bi", pv, attn)
        return gamma[0] * out_att + x

    ref = ref_forward(x)
    np.testing.assert_allclose(np.asarray(out), np.asarray(ref),
                               rtol=1e-5, atol=1e-5)

    print("KERNEL_OK")
</pallas_src>

<mosaic_0001>
module attributes {stable_mosaic.version = 11 : i64} {
  func.func @self_attention_kernel(%arg0: i32, %arg1: memref<5xf32, #tpu.memory_space<smem>>, %arg2: memref<8x128xf32, #tpu.memory_space<vmem>>, %arg3: memref<8x128xf32, #tpu.memory_space<vmem>>) attributes {dimension_semantics = [#tpu.dimension_semantics<parallel>], iteration_bounds = array<i64: 2>, scalar_prefetch = 0 : i64, scratch_operands = 0 : i64, tpu.core_type = #tpu.core_type<tc>, window_params = [{transform_indices = @transform_0, window_bounds = array<i64: 5>}, {transform_indices = @transform_1, window_bounds = array<i64: 8, 128>}, {transform_indices = @transform_2, window_bounds = array<i64: 8, 128>}]} {
    %c0 = arith.constant 0 : index
    %0 = memref.load %arg1[%c0] : memref<5xf32, #tpu.memory_space<smem>>
    %c1 = arith.constant 1 : index
    %1 = memref.load %arg1[%c1] : memref<5xf32, #tpu.memory_space<smem>>
    %c2 = arith.constant 2 : index
    %2 = memref.load %arg1[%c2] : memref<5xf32, #tpu.memory_space<smem>>
    %c3 = arith.constant 3 : index
    %3 = memref.load %arg1[%c3] : memref<5xf32, #tpu.memory_space<smem>>
    %c4 = arith.constant 4 : index
    %4 = memref.load %arg1[%c4] : memref<5xf32, #tpu.memory_space<smem>>
    %c0_0 = arith.constant 0 : index
    %c0_1 = arith.constant 0 : index
    %5 = vector.load %arg2[%c0_0, %c0_1] : memref<8x128xf32, #tpu.memory_space<vmem>>, vector<8x128xf32>
    %6 = vector.broadcast %0 : f32 to vector<8x128xf32>
    %7 = arith.mulf %6, %5 : vector<8x128xf32>
    %8 = vector.broadcast %1 : f32 to vector<8x128xf32>
    %9 = arith.addf %7, %8 : vector<8x128xf32>
    %10 = vector.shape_cast %5 : vector<8x128xf32> to vector<8x1x128xf32>
    %11 = vector.shape_cast %9 : vector<8x128xf32> to vector<8x128x1xf32>
    %12 = vector.broadcast %11 : vector<8x128x1xf32> to vector<8x128x128xf32>
    %13 = vector.broadcast %10 : vector<8x1x128xf32> to vector<8x128x128xf32>
    %14 = arith.mulf %12, %13 : vector<8x128x128xf32>
    %cst = arith.constant dense<0xFF800000> : vector<8x128xf32>
    %15 = vector.multi_reduction <maximumf>, %14, %cst [2] : vector<8x128x128xf32> to vector<8x128xf32>
    %16 = vector.shape_cast %15 : vector<8x128xf32> to vector<8x128x1xf32>
    %17 = vector.broadcast %16 : vector<8x128x1xf32> to vector<8x128x128xf32>
    %18 = arith.subf %14, %17 : vector<8x128x128xf32>
    %19 = math.exp %18 : vector<8x128x128xf32>
    %cst_2 = arith.constant dense<0.000000e+00> : vector<8x128xf32>
    %20 = vector.multi_reduction <add>, %19, %cst_2 [2] : vector<8x128x128xf32> to vector<8x128xf32>
    %21 = vector.broadcast %10 : vector<8x1x128xf32> to vector<8x128x128xf32>
    %22 = arith.mulf %19, %21 : vector<8x128x128xf32>
    %cst_3 = arith.constant dense<0.000000e+00> : vector<8x128xf32>
    %23 = vector.multi_reduction <add>, %22, %cst_3 [2] : vector<8x128x128xf32> to vector<8x128xf32>
    %24 = arith.divf %23, %20 : vector<8x128xf32>
    %25 = arith.mulf %4, %2 : f32
    %26 = vector.broadcast %25 : f32 to vector<8x128xf32>
    %27 = arith.mulf %26, %24 : vector<8x128xf32>
    %28 = arith.mulf %4, %3 : f32
    %29 = vector.broadcast %28 : f32 to vector<8x128xf32>
    %30 = arith.addf %27, %29 : vector<8x128xf32>
    %31 = arith.addf %30, %5 : vector<8x128xf32>
    %c0_4 = arith.constant 0 : index
    %c0_5 = arith.constant 0 : index
    %32 = vector.load %arg3[%c0_4, %c0_5] : memref<8x128xf32, #tpu.memory_space<vmem>>, vector<8x128xf32>
    tpu.vector_store %arg3[%c0_4, %c0_5], %31 {strides = array<i32>} : memref<8x128xf32, #tpu.memory_space<vmem>>, vector<8x128xf32>,
    return
  }
  func.func @transform_0(%arg0: i32) -> i32 {
    %c0_i32 = arith.constant 0 : i32
    %c0_i32_0 = arith.constant 0 : i32
    return %c0_i32 : i32
  }
  func.func @transform_1(%arg0: i32) -> (i32, i32) {
    %c0_i32 = arith.constant 0 : i32
    %c0_i32_0 = arith.constant 0 : i32
    return %arg0, %c0_i32 : i32, i32
  }
  func.func @transform_2(%arg0: i32) -> (i32, i32) {
    %c0_i32 = arith.constant 0 : i32
    %c0_i32_0 = arith.constant 0 : i32
    return %arg0, %c0_i32 : i32, i32
  }
}

</mosaic_0001>

<llo_original>
// kernel: tpu_custom_call.1
$region0: #{tpu_custom_call.1}
  #allocation0 [shape = 'u32[]', space=smem, size = 0x4, offset = 0x4, fixed_abs, tag = 'smem constant byte address 0x4 - core index']
  #allocation1 [shape = 'u32[144,128]{1,0:T(1,128)}', space=vmem, size = 0x12000, scoped, tag = 'internal scratch']
  %s0 = inlined_call_operand.hbm [shape: f32[5], index: 0, kind: input, shape index: {}]
  %s1 = inlined_call_operand.hbm [shape: f32[16,128], index: 1, kind: input, shape index: {}]
  %s2 = inlined_call_operand.hbm [shape: f32[16,128], index: 2, kind: output, shape index: {}]
  %s3 = sld [smem:[#allocation0]]
  $region49: #{tpu_custom_call.1} parent=0
    _
  %s5 = ssub.s32 1, %s3
  %s6 = scalar_select 0, %s5, %s3
  $region1: #{tpu_custom_call.1} parent=0
    #allocation2 [shape = 'u8[512]{0}', space=smem, size = 0x200, scoped, tag = 'input window, operand 0, single buffered']
    #allocation3 [shape = 's32[2]{0}', space=sflag, size = 0x8, scoped, tag = 'scoped memory for tpu_custom_call.1']
    #allocation4 [shape = 's32[2]{0}', space=sflag, size = 0x8, scoped, tag = 'scoped memory for tpu_custom_call.1']
    #allocation5 [shape = 's32[2]{0}', space=sflag, size = 0x8, scoped, tag = 'scoped memory for tpu_custom_call.1']
    #allocation6 [shape = 'u8[8192]{0}', space=vmem, size = 0x2000, scoped, tag = 'input window, operand 1']
    #allocation7 [shape = 'u8[8192]{0}', space=vmem, size = 0x2000, scoped, tag = 'output window, operand 0']
    %7 = vsyncpa [#allocation5], 0
    %8 = vsyncpa [#allocation3], 0
    %s9 = scalar_lea.sflag [#allocation3], 1
    %10 = vsyncpa %s9, 0
    %11 = vsyncpa [#allocation4], 0
    %s12 = scalar_lea.sflag [#allocation4], 1
    %13 = vsyncpa %s12, 0
    loop: start=0, step=1, limit=4
    $region2: #{tpu_custom_call.1} parent=1 // loop_pre_header
      _
    $region3: #{tpu_custom_call.1} parent=1 // loop_header
      %s15 = sphi 0, %s19
      %p16 = scmp.ge.s32.totalorder %s15, 4
      %s23 = sphi 0, %s23
      %s25 = sphi 0, %s23
      %s26 = sphi 0, %s25
      %s40 = sphi 0, %s26
      %s46 = sphi 0, %s48
      %s49 = sphi 0, %s46
      %s50 = sphi 0, %s49
      %s66 = sphi 0, %s50
      %s72 = sphi 0, %s74
      %s75 = sphi 0, %s72
      %s76 = sphi 0, %s75
      %s92 = sphi 0, %s76
    $region4: #{tpu_custom_call.1} parent=1 // loop_header_branch
      %18 = sbr.rel (%p16) target = $region8
    $region5: #{tpu_custom_call.1} parent=1 // loop_body
      %s20 = ssub.s32 %s15, 1
      %s21 = ssub.s32 %s15, 2
      %s22 = sadd.s32 %s15, 1
      %s24 = sadd.s32 %s23, 1
      %p27 = scmp.eq.s32.totalorder %s15, 1
      %p28 = scmp.ne.s32.totalorder %s23, %s25
      %p29 = scmp.eq.s32.totalorder %s15, 0
      %p30 = por %p28, %p29
      %p31 = scmp.ne.s32.totalorder %s23, %s25
      %p32 = scmp.eq.s32.totalorder %s20, 1
      %p33 = por %p31, %p32
      %p34 = scmp.ne.s32.totalorder %s25, %s26
      %p35 = scmp.eq.s32.totalorder %s20, 0
      %p36 = por %p34, %p35
      %p37 = scmp.ne.s32.totalorder %s25, %s26
      %p38 = scmp.eq.s32.totalorder %s21, 1
      %p39 = por %p37, %p38
      %p41 = scmp.ne.s32.totalorder %s26, %s40
      %p42 = scmp.eq.s32.totalorder %s21, 0
      %p43 = por %p41, %p42
      %s44 = ssub.s32 %s15, %s22
      %p45 = scmp.eq.s32.totalorder %s44, 0
      %s47 = sadd.s32 %s46, 1
      %s48 = scalar_select %p45, %s46, %s47
      %p51 = pneg %p45
      %p52 = scmp.eq.s32.totalorder %s15, 1
      %p53 = por %p51, %p52
      %p54 = scmp.ne.s32.totalorder %s46, %s49
      %p55 = scmp.eq.s32.totalorder %s15, 0
      %p56 = por %p54, %p55
      %p57 = scmp.ne.s32.totalorder %s46, %s49
      %p58 = scmp.eq.s32.totalorder %s20, 1
      %p59 = por %p57, %p58
      %p60 = scmp.ne.s32.totalorder %s49, %s50
      %p61 = scmp.eq.s32.totalorder %s20, 0
      %p62 = por %p60, %p61
      %p63 = scmp.ne.s32.totalorder %s49, %s50
      %p64 = scmp.eq.s32.totalorder %s21, 1
      %p65 = por %p63, %p64
      %p67 = scmp.ne.s32.totalorder %s50, %s66
      %p68 = scmp.eq.s32.totalorder %s21, 0
      %p69 = por %p67, %p68
      %s70 = ssub.s32 %s15, %s22
      %p71 = scmp.eq.s32.totalorder %s70, 0
      %s73 = sadd.s32 %s72, 1
      %s74 = scalar_select %p71, %s72, %s73
      %p77 = pneg %p71
      %p78 = scmp.eq.s32.totalorder %s15, 1
      %p79 = por %p77, %p78
      %p80 = scmp.ne.s32.totalorder %s72, %s75
      %p81 = scmp.eq.s32.totalorder %s15, 0
      %p82 = por %p80, %p81
      %p83 = scmp.ne.s32.totalorder %s72, %s75
      %p84 = scmp.eq.s32.totalorder %s20, 1
      %p85 = por %p83, %p84
      %p86 = scmp.ne.s32.totalorder %s75, %s76
      %p87 = scmp.eq.s32.totalorder %s20, 0
      %p88 = por %p86, %p87
      %p89 = scmp.ne.s32.totalorder %s75, %s76
      %p90 = scmp.eq.s32.totalorder %s21, 1
      %p91 = por %p89, %p90
      %p93 = scmp.ne.s32.totalorder %s76, %s92
      %p94 = scmp.eq.s32.totalorder %s21, 0
      %p95 = por %p93, %p94
      %p96 = scmp.le.s32.totalorder 1, %s15
      %p97 = scmp.lt.s32.totalorder %s15, 3
      %p98 = pnand %p96, %p97
      %p99 = pneg %p98
      // Predicated region
      $region9: #{tpu_custom_call.1} parent=5 // pred_check
        _
      $region10: #{tpu_custom_call.1} parent=5 // pred_check_branch
        %101 = sbr.rel (%p98) target = $region12
      $region11: #{tpu_custom_call.1} parent=5 // pred_region
        %s102 = ssub.s32 %s15, 1
        // Predicated region
        $region13: #{tpu_custom_call.1} parent=11 // pred_check
          %p103 = pneg %p36
        $region14: #{tpu_custom_call.1} parent=11 // pred_check_branch
          %105 = sbr.rel (%p103) target = $region16
        $region15: #{tpu_custom_call.1} parent=11 // pred_region
          %s107 = ssub.s32 16, 16
          %108 = vsyncadd [#allocation5], %s107
          %111 = dma.hbm_to_smem %s0, 16, [#allocation2], [#allocation5]
        $region16: #{tpu_custom_call.1} parent=11 // pred_fallthru
          _
      $region12: #{tpu_custom_call.1} parent=5 // pred_fallthru
        _
      %p112 = scmp.lt.s32.totalorder %s15, 2
      // Predicated region
      $region17: #{tpu_custom_call.1} parent=5 // pred_check
        %p113 = pneg %p112
      $region18: #{tpu_custom_call.1} parent=5 // pred_check_branch
        %115 = sbr.rel (%p113) target = $region20
      $region19: #{tpu_custom_call.1} parent=5 // pred_region
        // Predicated region
        $region21: #{tpu_custom_call.1} parent=19 // pred_check
          %p116 = pneg %p56
        $region22: #{tpu_custom_call.1} parent=19 // pred_check_branch
          %118 = sbr.rel (%p116) target = $region24
        $region23: #{tpu_custom_call.1} parent=19 // pred_region
          %s119 = sand.u32 %s46, 1
          %s120 = scalar_lea.sflag [#allocation3], %s119
          %s121 = sand.u32 %s46, 1
          %s122 = smul.addr %s121, 8
          %s123 = scalar_lea.vmem [#allocation6], %s122
          %s125 = ssub.s32 128, 128
          %126 = vsyncadd %s120, %s125
          %s127 = smul.addr %s15, 128
          %s128 = scalar_lea.hbm %s1, %s127
          %s130 = sshll.u32 %s123, 4
          %s131 = int_to_ptr.vmem [resolvable:$true] %s130
          %133 = dma.hbm_to_vmem [thread:$0]  %s128, 128, %s131, %s120
        $region24: #{tpu_custom_call.1} parent=19 // pred_fallthru
          _
      $region20: #{tpu_custom_call.1} parent=5 // pred_fallthru
        _
      %p134 = scmp.le.s32.totalorder 1, %s15
      %p135 = scmp.lt.s32.totalorder %s15, 3
      %p136 = pnand %p134, %p135
      %p137 = pneg %p136
      // Predicated region
      $region25: #{tpu_custom_call.1} parent=5 // pred_check
        _
      $region26: #{tpu_custom_call.1} parent=5 // pred_check_branch
        %139 = sbr.rel (%p136) target = $region28
      $region27: #{tpu_custom_call.1} parent=5 // pred_region
        %s140 = ssub.s32 %s15, 1
        // Predicated region
        $region29: #{tpu_custom_call.1} parent=27 // pred_check
          %p141 = pneg %p36
        $region30: #{tpu_custom_call.1} parent=27 // pred_check_branch
          %143 = sbr.rel (%p141) target = $region32
        $region31: #{tpu_custom_call.1} parent=27 // pred_region
          %144 = dma.done [#allocation5], 16
        $region32: #{tpu_custom_call.1} parent=27 // pred_fallthru
          _
        %s145 = sand.u32 %s49, 1
        %s146 = scalar_lea.sflag [#allocation3], %s145
        %s147 = sand.u32 %s49, 1
        %s148 = smul.addr %s147, 8
        %s149 = scalar_lea.vmem [#allocation6], %s148
        // Predicated region
        $region33: #{tpu_custom_call.1} parent=27 // pred_check
          %p150 = pneg %p62
        $region34: #{tpu_custom_call.1} parent=27 // pred_check_branch
          %152 = sbr.rel (%p150) target = $region36
        $region35: #{tpu_custom_call.1} parent=27 // pred_region
          %153 = dma.done %s146, 128
        $region36: #{tpu_custom_call.1} parent=27 // pred_fallthru
          _
        %154 = sfence
        %p155 = pneg %p36
        %p156 = pneg %p33
        %s157 = sand.u32 %s49, 1
        %s158 = scalar_lea.sflag [#allocation3], %s157
        %s159 = sand.u32 %s49, 1
        %s160 = smul.addr %s159, 8
        %s161 = scalar_lea.vmem [#allocation6], %s160
        %p162 = pneg %p62
        %p163 = pneg %p59
        %p164 = pneg %p88
        %p165 = pneg %p85
        %s166 = sand.u32 %s75, 1
        %s167 = scalar_lea.sflag [#allocation4], %s166
        %s168 = sand.u32 %s75, 1
        %s169 = smul.addr %s168, 8
        %s170 = scalar_lea.vmem [#allocation7], %s169
        %s171 = sld [smem:[#allocation2]]
        %s172 = sld [smem:[#allocation2 + $0x1]]
        %s173 = sld [smem:[#allocation2 + $0x2]]
        %s174 = sld [smem:[#allocation2 + $0x3]]
        %s175 = sld [smem:[#allocation2 + $0x4]]
        %v176 = vld [vmem:[%s149] sm:$0xff]
        %v177 = vstv %s171
        %v178 = vmul.f32 %v177, %v176
        %v179 = vstv %s172
        %v180 = vadd.f32 %v178, %v179
        %v182 = vcombine.high %v176, %v176
        %v184 = vunpack.c.l.s4 1966171168
        %v185 = vunpack.c.0.s8 %v184
        %v186 = vlaneseq
        %v187 = vshrl.u32 %v186, 7
        %v188 = vsub.s32 %v185, %v187
        %v189 = vrot.slane %v176, %v188
        %v191 = vunpack.c.l.s4 1966171168
        %v192 = vunpack.c.0.s8 %v191
        %v193 = vlaneseq
        %v194 = vshrl.u32 %v193, 7
        %v195 = vsub.s32 %v192, %v194
        %v196 = vrot.slane %v182, %v195
        %v197 = vcombine.high %v189, %v189
        %v198 = vcombine.high %v196, %v196
        %v200 = vunpack.c.l.s4 1966171168
        %v201 = vunpack.c.0.s8 %v200
        %v202 = vlaneseq
        %v203 = vshrl.u32 %v202, 7
        %v204 = vsub.s32 %v201, %v203
        %v205 = vrot.slane %v189, %v204
        %v207 = vunpack.c.l.s4 1966171168
        %v208 = vunpack.c.0.s8 %v207
        %v209 = vlaneseq
        %v210 = vshrl.u32 %v209, 7
        %v211 = vsub.s32 %v208, %v210
        %v212 = vrot.slane %v196, %v211
        %v214 = vunpack.c.l.s4 1966171168
        %v215 = vunpack.c.0.s8 %v214
        %v216 = vlaneseq
        %v217 = vshrl.u32 %v216, 7
        %v218 = vsub.s32 %v215, %v217
        %v219 = vrot.slane %v197, %v218
        %v221 = vunpack.c.l.s4 1966171168
        %v222 = vunpack.c.0.s8 %v221
        %v223 = vlaneseq
        %v224 = vshrl.u32 %v223, 7
        %v225 = vsub.s32 %v222, %v224
        %v226 = vrot.slane %v198, %v225
        %v227 = vcombine.high %v205, %v205
        %v228 = vcombine.high %v212, %v212
        %v229 = vcombine.high %v219, %v219
        %v230 = vcombine.high %v226, %v226
        %v231 = vlaneseq
        %v232 = vshrl.u32 %v231, 7
        %v233 = vsub.s32 0, %v232
        %v234 = vrot.slane %v180, %v233
        %236 = vbcast.lane.b32.xlu0 %v234, 256
        %v237 = vpop.permute.xlu0 %236
        %s239 = sor.u32 256, 8
        %240 = vbcast.lane.b32.xlu0 %v234, %s239
        %v241 = vpop.permute.xlu0 %240
        %s243 = sor.u32 256, 16
        %244 = vbcast.lane.b32.xlu0 %v234, %s243
        %v245 = vpop.permute.xlu0 %244
        %s247 = sor.u32 256, 24
        %248 = vbcast.lane.b32.xlu0 %v234, %s247
        %v249 = vpop.permute.xlu0 %248
        %s251 = sor.u32 256, 32
        %252 = vbcast.lane.b32.xlu0 %v234, %s251
        %v253 = vpop.permute.xlu0 %252
        %s255 = sor.u32 256, 40
        %256 = vbcast.lane.b32.xlu0 %v234, %s255
        %v257 = vpop.permute.xlu0 %256
        %s259 = sor.u32 256, 48
        %260 = vbcast.lane.b32.xlu0 %v234, %s259
        %v261 = vpop.permute.xlu0 %260
        %s263 = sor.u32 256, 56
        %264 = vbcast.lane.b32.xlu0 %v234, %s263
        %v265 = vpop.permute.xlu0 %264
        %s267 = sor.u32 256, 64
        %268 = vbcast.lane.b32.xlu0 %v234, %s267
        %v269 = vpop.permute.xlu0 %268
        %s271 = sor.u32 256, 72
        %272 = vbcast.lane.b32.xlu0 %v234, %s271
        %v273 = vpop.permute.xlu0 %272
        %s275 = sor.u32 256, 80
        %276 = vbcast.lane.b32.xlu0 %v234, %s275
        %v277 = vpop.permute.xlu0 %276
        %s279 = sor.u32 256, 88
        %280 = vbcast.lane.b32.xlu0 %v234, %s279
        %v281 = vpop.permute.xlu0 %280
        %s283 = sor.u32 256, 96
        %284 = vbcast.lane.b32.xlu0 %v234, %s283
        %v285 = vpop.permute.xlu0 %284
        %s287 = sor.u32 256, 104
        %288 = vbcast.lane.b32.xlu0 %v234, %s287
        %v289 = vpop.permute.xlu0 %288
        %s291 = sor.u32 256, 112
        %292 = vbcast.lane.b32.xlu0 %v234, %s291
        %v293 = vpop.permute.xlu0 %292
        %s295 = sor.u32 256, 120
        %296 = vbcast.lane.b32.xlu0 %v234, %s295
        %v297 = vpop.permute.xlu0 %296
        %v298 = vlaneseq
        %v299 = vshrl.u32 %v298, 7
        %v300 = vsub.s32 1, %v299
        %v301 = vrot.slane %v180, %v300
        %303 = vbcast.lane.b32.xlu0 %v301, 256
        %v304 = vpop.permute.xlu0 %303
        %s306 = sor.u32 256, 8
        %307 = vbcast.lane.b32.xlu0 %v301, %s306
        %v308 = vpop.permute.xlu0 %307
        %s310 = sor.u32 256, 16
        %311 = vbcast.lane.b32.xlu0 %v301, %s310
        %v312 = vpop.permute.xlu0 %311
        %s314 = sor.u32 256, 24
        %315 = vbcast.lane.b32.xlu0 %v301, %s314
        %v316 = vpop.permute.xlu0 %315
        %s318 = sor.u32 256, 32
        %319 = vbcast.lane.b32.xlu0 %v301, %s318
        %v320 = vpop.permute.xlu0 %319
        %s322 = sor.u32 256, 40
        %323 = vbcast.lane.b32.xlu0 %v301, %s322
        %v324 = vpop.permute.xlu0 %323
        %s326 = sor.u32 256, 48
        %327 = vbcast.lane.b32.xlu0 %v301, %s326
        %v328 = vpop.permute.xlu0 %327
        %s330 = sor.u32 256, 56
        %331 = vbcast.lane.b32.xlu0 %v301, %s330
        %v332 = vpop.permute.xlu0 %331
        %s334 = sor.u32 256, 64
        %335 = vbcast.lane.b32.xlu0 %v301, %s334
        %v336 = vpop.permute.xlu0 %335
        %s338 = sor.u32 256, 72
        %339 = vbcast.lane.b32.xlu0 %v301, %s338
        %v340 = vpop.permute.xlu0 %339
        %s342 = sor.u32 256, 80
        %343 = vbcast.lane.b32.xlu0 %v301, %s342
        %v344 = vpop.permute.xlu0 %343
        %s346 = sor.u32 256, 88
        %347 = vbcast.lane.b32.xlu0 %v301, %s346
        %v348 = vpop.permute.xlu0 %347
        %s350 = sor.u32 256, 96
        %351 = vbcast.lane.b32.xlu0 %v301, %s350
        %v352 = vpop.permute.xlu0 %351
        %s354 = sor.u32 256, 104
        %355 = vbcast.lane.b32.xlu0 %v301, %s354
        %v356 = vpop.permute.xlu0 %355
        %s358 = sor.u32 256, 112
        %359 = vbcast.lane.b32.xlu0 %v301, %s358
        %v360 = vpop.permute.xlu0 %359
        %s362 = sor.u32 256, 120
        %363 = vbcast.lane.b32.xlu0 %v301, %s362
        %v364 = vpop.permute.xlu0 %363
        %v365 = vlaneseq
        %v366 = vshrl.u32 %v365, 7
        %v367 = vsub.s32 2, %v366
        %v368 = vrot.slane %v180, %v367
        %370 = vbcast.lane.b32.xlu0 %v368, 256
        %v371 = vpop.permute.xlu0 %370
        %s373 = sor.u32 256, 8
        %374 = vbcast.lane.b32.xlu0 %v368, %s373
        %v375 = vpop.permute.xlu0 %374
        %s377 = sor.u32 256, 16
        %378 = vbcast.lane.b32.xlu0 %v368, %s377
        %v379 = vpop.permute.xlu0 %378
        %s381 = sor.u32 256, 24
        %382 = vbcast.lane.b32.xlu0 %v368, %s381
        %v383 = vpop.permute.xlu0 %382
        %s385 = sor.u32 256, 32
        %386 = vbcast.lane.b32.xlu0 %v368, %s385
        %v387 = vpop.permute.xlu0 %386
        %s389 = sor.u32 256, 40
        %390 = vbcast.lane.b32.xlu0 %v368, %s389
        %v391 = vpop.permute.xlu0 %390
        %s393 = sor.u32 256, 48
        %394 = vbcast.lane.b32.xlu0 %v368, %s393
        %v395 = vpop.permute.xlu0 %394
        %s397 = sor.u32 256, 56
        %398 = vbcast.lane.b32.xlu0 %v368, %s397
        %v399 = vpop.permute.xlu0 %398
        %s401 = sor.u32 256, 64
        %402 = vbcast.lane.b32.xlu0 %v368, %s401
        %v403 = vpop.permute.xlu0 %402
        %s405 = sor.u32 256, 72
        %406 = vbcast.lane.b32.xlu0 %v368, %s405
        %v407 = vpop.permute.xlu0 %406
        %s409 = sor.u32 256, 80
        %410 = vbcast.lane.b32.xlu0 %v368, %s409
        %v411 = vpop.permute.xlu0 %410
        %s413 = sor.u32 256, 88
        %414 = vbcast.lane.b32.xlu0 %v368, %s413
        %v415 = vpop.permute.xlu0 %414
        %s417 = sor.u32 256, 96
        %418 = vbcast.lane.b32.xlu0 %v368, %s417
        %v419 = vpop.permute.xlu0 %418
        %s421 = sor.u32 256, 104
        %422 = vbcast.lane.b32.xlu0 %v368, %s421
        %v423 = vpop.permute.xlu0 %422
        %s425 = sor.u32 256, 112
        %426 = vbcast.lane.b32.xlu0 %v368, %s425
        %v427 = vpop.permute.xlu0 %426
        %s429 = sor.u32 256, 120
        %430 = vbcast.lane.b32.xlu0 %v368, %s429
        %v431 = vpop.permute.xlu0 %430
        %v432 = vlaneseq
        %v433 = vshrl.u32 %v432, 7
        %v434 = vsub.s32 3, %v433
        %v435 = vrot.slane %v180, %v434
        %437 = vbcast.lane.b32.xlu0 %v435, 256
        %v438 = vpop.permute.xlu0 %437
        %s440 = sor.u32 256, 8
        %441 = vbcast.lane.b32.xlu0 %v435, %s440
        %v442 = vpop.permute.xlu0 %441
        %s444 = sor.u32 256, 16
        %445 = vbcast.lane.b32.xlu0 %v435, %s444
        %v446 = vpop.permute.xlu0 %445
        %s448 = sor.u32 256, 24
        %449 = vbcast.lane.b32.xlu0 %v435, %s448
        %v450 = vpop.permute.xlu0 %449
        %s452 = sor.u32 256, 32
        %453 = vbcast.lane.b32.xlu0 %v435, %s452
        %v454 = vpop.permute.xlu0 %453
        %s456 = sor.u32 256, 40
        %457 = vbcast.lane.b32.xlu0 %v435, %s456
        %v458 = vpop.permute.xlu0 %457
        %s460 = sor.u32 256, 48
        %461 = vbcast.lane.b32.xlu0 %v435, %s460
        %v462 = vpop.permute.xlu0 %461
        %s464 = sor.u32 256, 56
        %465 = vbcast.lane.b32.xlu0 %v435, %s464
        %v466 = vpop.permute.xlu0 %465
        %s468 = sor.u32 256, 64
        %469 = vbcast.lane.b32.xlu0 %v435, %s468
        %v470 = vpop.permute.xlu0 %469
        %s472 = sor.u32 256, 72
        %473 = vbcast.lane.b32.xlu0 %v435, %s472
        %v474 = vpop.permute.xlu0 %473
        %s476 = sor.u32 256, 80
        %477 = vbcast.lane.b32.xlu0 %v435, %s476
        %v478 = vpop.permute.xlu0 %477
        %s480 = sor.u32 256, 88
        %481 = vbcast.lane.b32.xlu0 %v435, %s480
        %v482 = vpop.permute.xlu0 %481
        %s484 = sor.u32 256, 96
        %485 = vbcast.lane.b32.xlu0 %v435, %s484
        %v486 = vpop.permute.xlu0 %485
        %s488 = sor.u32 256, 104
        %489 = vbcast.lane.b32.xlu0 %v435, %s488
        %v490 = vpop.permute.xlu0 %489
        %s492 = sor.u32 256, 112
        %493 = vbcast.lane.b32.xlu0 %v435, %s492
        %v494 = vpop.permute.xlu0 %493
        %s496 = sor.u32 256, 120
        %497 = vbcast.lane.b32.xlu0 %v435, %s496
        %v498 = vpop.permute.xlu0 %497
        %v499 = vlaneseq
        %v500 = vshrl.u32 %v499, 7
        %v501 = vsub.s32 4, %v500
        %v502 = vrot.slane %v180, %v501
        %504 = vbcast.lane.b32.xlu0 %v502, 256
        %v505 = vpop.permute.xlu0 %504
        %s507 = sor.u32 256, 8
        %508 = vbcast.lane.b32.xlu0 %v502, %s507
        %v509 = vpop.permute.xlu0 %508
        %s511 = sor.u32 256, 16
        %512 = vbcast.lane.b32.xlu0 %v502, %s511
        %v513 = vpop.permute.xlu0 %512
        %s515 = sor.u32 256, 24
        %516 = vbcast.lane.b32.xlu0 %v502, %s515
        %v517 = vpop.permute.xlu0 %516
        %s519 = sor.u32 256, 32
        %520 = vbcast.lane.b32.xlu0 %v502, %s519
        %v521 = vpop.permute.xlu0 %520
        %s523 = sor.u32 256, 40
        %524 = vbcast.lane.b32.xlu0 %v502, %s523
        %v525 = vpop.permute.xlu0 %524
        %s527 = sor.u32 256, 48
        %528 = vbcast.lane.b32.xlu0 %v502, %s527
        %v529 = vpop.permute.xlu0 %528
        %s531 = sor.u32 256, 56
        %532 = vbcast.lane.b32.xlu0 %v502, %s531
        %v533 = vpop.permute.xlu0 %532
        %s535 = sor.u32 256, 64
        %536 = vbcast.lane.b32.xlu0 %v502, %s535
        %v537 = vpop.permute.xlu0 %536
        %s539 = sor.u32 256, 72
        %540 = vbcast.lane.b32.xlu0 %v502, %s539
        %v541 = vpop.permute.xlu0 %540
        %s543 = sor.u32 256, 80
        %544 = vbcast.lane.b32.xlu0 %v502, %s543
        %v545 = vpop.permute.xlu0 %544
        %s547 = sor.u32 256, 88
        %548 = vbcast.lane.b32.xlu0 %v502, %s547
        %v549 = vpop.permute.xlu0 %548
        %s551 = sor.u32 256, 96
        %552 = vbcast.lane.b32.xlu0 %v502, %s551
        %v553 = vpop.permute.xlu0 %552
        %s555 = sor.u32 256, 104
        %556 = vbcast.lane.b32.xlu0 %v502, %s555
        %v557 = vpop.permute.xlu0 %556
        %s559 = sor.u32 256, 112
        %560 = vbcast.lane.b32.xlu0 %v502, %s559
        %v561 = vpop.permute.xlu0 %560
        %s563 = sor.u32 256, 120
        %564 = vbcast.lane.b32.xlu0 %v502, %s563
        %v565 = vpop.permute.xlu0 %564
        %v566 = vlaneseq
        %v567 = vshrl.u32 %v566, 7
        %v568 = vsub.s32 5, %v567
        %v569 = vrot.slane %v180, %v568
        %571 = vbcast.lane.b32.xlu0 %v569, 256
        %v572 = vpop.permute.xlu0 %571
        %s574 = sor.u32 256, 8
        %575 = vbcast.lane.b32.xlu0 %v569, %s574
        %v576 = vpop.permute.xlu0 %575
        %s578 = sor.u32 256, 16
        %579 = vbcast.lane.b32.xlu0 %v569, %s578
        %v580 = vpop.permute.xlu0 %579
        %s582 = sor.u32 256, 24
        %583 = vbcast.lane.b32.xlu0 %v569, %s582
        %v584 = vpop.permute.xlu0 %583
        %s586 = sor.u32 256, 32
        %587 = vbcast.lane.b32.xlu0 %v569, %s586
        %v588 = vpop.permute.xlu0 %587
        %s590 = sor.u32 256, 40
        %591 = vbcast.lane.b32.xlu0 %v569, %s590
        %v592 = vpop.permute.xlu0 %591
        %s594 = sor.u32 256, 48
        %595 = vbcast.lane.b32.xlu0 %v569, %s594
        %v596 = vpop.permute.xlu0 %595
        %s598 = sor.u32 256, 56
        %599 = vbcast.lane.b32.xlu0 %v569, %s598
        %v600 = vpop.permute.xlu0 %599
        %s602 = sor.u32 256, 64
        %603 = vbcast.lane.b32.xlu0 %v569, %s602
        %v604 = vpop.permute.xlu0 %603
        %s606 = sor.u32 256, 72
        %607 = vbcast.lane.b32.xlu0 %v569, %s606
        %v608 = vpop.permute.xlu0 %607
        %s610 = sor.u32 256, 80
        %611 = vbcast.lane.b32.xlu0 %v569, %s610
        %v612 = vpop.permute.xlu0 %611
        %s614 = sor.u32 256, 88
        %615 = vbcast.lane.b32.xlu0 %v569, %s614
        %v616 = vpop.permute.xlu0 %615
        %s618 = sor.u32 256, 96
        %619 = vbcast.lane.b32.xlu0 %v569, %s618
        %v620 = vpop.permute.xlu0 %619
        %s622 = sor.u32 256, 104
        %623 = vbcast.lane.b32.xlu0 %v569, %s622
        %v624 = vpop.permute.xlu0 %623
        %s626 = sor.u32 256, 112
        %627 = vbcast.lane.b32.xlu0 %v569, %s626
        %v628 = vpop.permute.xlu0 %627
        %s630 = sor.u32 256, 120
        %631 = vbcast.lane.b32.xlu0 %v569, %s630
        %v632 = vpop.permute.xlu0 %631
        %v633 = vlaneseq
        %v634 = vshrl.u32 %v633, 7
        %v635 = vsub.s32 6, %v634
        %v636 = vrot.slane %v180, %v635
        %638 = vbcast.lane.b32.xlu0 %v636, 256
        %v639 = vpop.permute.xlu0 %638
        %s641 = sor.u32 256, 8
        %642 = vbcast.lane.b32.xlu0 %v636, %s641
        %v643 = vpop.permute.xlu0 %642
        %s645 = sor.u32 256, 16
        %646 = vbcast.lane.b32.xlu0 %v636, %s645
        %v647 = vpop.permute.xlu0 %646
        %s649 = sor.u32 256, 24
        %650 = vbcast.lane.b32.xlu0 %v636, %s649
        %v651 = vpop.permute.xlu0 %650
        %s653 = sor.u32 256, 32
        %654 = vbcast.lane.b32.xlu0 %v636, %s653
        %v655 = vpop.permute.xlu0 %654
        %s657 = sor.u32 256, 40
        %658 = vbcast.lane.b32.xlu0 %v636, %s657
        %v659 = vpop.permute.xlu0 %658
        %s661 = sor.u32 256, 48
        %662 = vbcast.lane.b32.xlu0 %v636, %s661
        %v663 = vpop.permute.xlu0 %662
        %s665 = sor.u32 256, 56
        %666 = vbcast.lane.b32.xlu0 %v636, %s665
        %v667 = vpop.permute.xlu0 %666
        %s669 = sor.u32 256, 64
        %670 = vbcast.lane.b32.xlu0 %v636, %s669
        %v671 = vpop.permute.xlu0 %670
        %s673 = sor.u32 256, 72
        %674 = vbcast.lane.b32.xlu0 %v636, %s673
        %v675 = vpop.permute.xlu0 %674
        %s677 = sor.u32 256, 80
        %678 = vbcast.lane.b32.xlu0 %v636, %s677
        %v679 = vpop.permute.xlu0 %678
        %s681 = sor.u32 256, 88
        %682 = vbcast.lane.b32.xlu0 %v636, %s681
        %v683 = vpop.permute.xlu0 %682
        %s685 = sor.u32 256, 96
        %686 = vbcast.lane.b32.xlu0 %v636, %s685
        %v687 = vpop.permute.xlu0 %686
        %s689 = sor.u32 256, 104
        %690 = vbcast.lane.b32.xlu0 %v636, %s689
        %v691 = vpop.permute.xlu0 %690
        %s693 = sor.u32 256, 112
        %694 = vbcast.lane.b32.xlu0 %v636, %s693
        %v695 = vpop.permute.xlu0 %694
        %s697 = sor.u32 256, 120
        %698 = vbcast.lane.b32.xlu0 %v636, %s697
        %v699 = vpop.permute.xlu0 %698
        %v700 = vlaneseq
        %v701 = vshrl.u32 %v700, 7
        %v702 = vsub.s32 7, %v701
        %v703 = vrot.slane %v180, %v702
        %705 = vbcast.lane.b32.xlu0 %v703, 256
        %v706 = vpop.permute.xlu0 %705
        %s708 = sor.u32 256, 8
        %709 = vbcast.lane.b32.xlu0 %v703, %s708
        %v710 = vpop.permute.xlu0 %709
        %s712 = sor.u32 256, 16
        %713 = vbcast.lane.b32.xlu0 %v703, %s712
        %v714 = vpop.permute.xlu0 %713
        %s716 = sor.u32 256, 24
        %717 = vbcast.lane.b32.xlu0 %v703, %s716
        %v718 = vpop.permute.xlu0 %717
        %s720 = sor.u32 256, 32
        %721 = vbcast.lane.b32.xlu0 %v703, %s720
        %v722 = vpop.permute.xlu0 %721
        %s724 = sor.u32 256, 40
        %725 = vbcast.lane.b32.xlu0 %v703, %s724
        %v726 = vpop.permute.xlu0 %725
        %s728 = sor.u32 256, 48
        %729 = vbcast.lane.b32.xlu0 %v703, %s728
        %v730 = vpop.permute.xlu0 %729
        %s732 = sor.u32 256, 56
        %733 = vbcast.lane.b32.xlu0 %v703, %s732
        %v734 = vpop.permute.xlu0 %733
        %s736 = sor.u32 256, 64
        %737 = vbcast.lane.b32.xlu0 %v703, %s736
        %v738 = vpop.permute.xlu0 %737
        %s740 = sor.u32 256, 72
        %741 = vbcast.lane.b32.xlu0 %v703, %s740
        %v742 = vpop.permute.xlu0 %741
        %s744 = sor.u32 256, 80
        %745 = vbcast.lane.b32.xlu0 %v703, %s744
        %v746 = vpop.permute.xlu0 %745
        %s748 = sor.u32 256, 88
        %749 = vbcast.lane.b32.xlu0 %v703, %s748
        %v750 = vpop.permute.xlu0 %749
        %s752 = sor.u32 256, 96
        %753 = vbcast.lane.b32.xlu0 %v703, %s752
        %v754 = vpop.permute.xlu0 %753
        %s756 = sor.u32 256, 104
        %757 = vbcast.lane.b32.xlu0 %v703, %s756
        %v758 = vpop.permute.xlu0 %757
        %s760 = sor.u32 256, 112
        %761 = vbcast.lane.b32.xlu0 %v703, %s760
        %v762 = vpop.permute.xlu0 %761
        %s764 = sor.u32 256, 120
        %765 = vbcast.lane.b32.xlu0 %v703, %s764
        %v766 = vpop.permute.xlu0 %765
        %v767 = vlaneseq
        %v768 = vshrl.u32 %v767, 7
        %v769 = vsub.s32 0, %v768
        %v770 = vrot.slane %v205, %v769
        %v771 = vlaneseq
        %v772 = vshrl.u32 %v771, 7
        %v773 = vsub.s32 0, %v772
        %v774 = vrot.slane %v219, %v773
        %v775 = vlaneseq
        %v776 = vshrl.u32 %v775, 7
        %v777 = vsub.s32 0, %v776
        %v778 = vrot.slane %v227, %v777
        %v779 = vlaneseq
        %v780 = vshrl.u32 %v779, 7
        %v781 = vsub.s32 0, %v780
        %v782 = vrot.slane %v229, %v781
        %v783 = vlaneseq
        %v784 = vshrl.u32 %v783, 7
        %v785 = vsub.s32 0, %v784
        %v786 = vrot.slane %v212, %v785
        %v787 = vlaneseq
        %v788 = vshrl.u32 %v787, 7
        %v789 = vsub.s32 0, %v788
        %v790 = vrot.slane %v226, %v789
        %v791 = vlaneseq
        %v792 = vshrl.u32 %v791, 7
        %v793 = vsub.s32 0, %v792
        %v794 = vrot.slane %v228, %v793
        %v795 = vlaneseq
        %v796 = vshrl.u32 %v795, 7
        %v797 = vsub.s32 0, %v796
        %v798 = vrot.slane %v230, %v797
        %v807 = vmul.f32 %v237, %v770
        %v808 = vmul.f32 %v241, %v770
        %v809 = vmul.f32 %v245, %v770
        %v810 = vmul.f32 %v249, %v770
        %v811 = vmul.f32 %v253, %v770
        %v812 = vmul.f32 %v257, %v770
        %v813 = vmul.f32 %v261, %v770
        %v814 = vmul.f32 %v265, %v770
        %v815 = vmul.f32 %v269, %v770
        %v816 = vmul.f32 %v273, %v770
        %v817 = vmul.f32 %v277, %v770
        %v818 = vmul.f32 %v281, %v770
        %v819 = vmul.f32 %v285, %v770
        %v820 = vmul.f32 %v289, %v770
        %v821 = vmul.f32 %v293, %v770
        %v822 = vmul.f32 %v297, %v770
        %v823 = vmul.f32 %v304, %v774
        %v824 = vmul.f32 %v308, %v774
        %v825 = vmul.f32 %v312, %v774
        %v826 = vmul.f32 %v316, %v774
        %v827 = vmul.f32 %v320, %v774
        %v828 = vmul.f32 %v324, %v774
        %v829 = vmul.f32 %v328, %v774
        %v830 = vmul.f32 %v332, %v774
        %v831 = vmul.f32 %v336, %v774
        %v832 = vmul.f32 %v340, %v774
        %v833 = vmul.f32 %v344, %v774
        %v834 = vmul.f32 %v348, %v774
        %v835 = vmul.f32 %v352, %v774
        %v836 = vmul.f32 %v356, %v774
        %v837 = vmul.f32 %v360, %v774
        %v838 = vmul.f32 %v364, %v774
        %v839 = vmul.f32 %v371, %v778
        %v840 = vmul.f32 %v375, %v778
        %v841 = vmul.f32 %v379, %v778
        %v842 = vmul.f32 %v383, %v778
        %v843 = vmul.f32 %v387, %v778
        %v844 = vmul.f32 %v391, %v778
        %v845 = vmul.f32 %v395, %v778
        %v846 = vmul.f32 %v399, %v778
        %v847 = vmul.f32 %v403, %v778
        %v848 = vmul.f32 %v407, %v778
        %v849 = vmul.f32 %v411, %v778
        %v850 = vmul.f32 %v415, %v778
        %v851 = vmul.f32 %v419, %v778
        %v852 = vmul.f32 %v423, %v778
        %v853 = vmul.f32 %v427, %v778
        %v854 = vmul.f32 %v431, %v778
        %v855 = vmul.f32 %v438, %v782
        %v856 = vmul.f32 %v442, %v782
        %v857 = vmul.f32 %v446, %v782
        %v858 = vmul.f32 %v450, %v782
        %v859 = vmul.f32 %v454, %v782
        %v860 = vmul.f32 %v458, %v782
        %v861 = vmul.f32 %v462, %v782
        %v862 = vmul.f32 %v466, %v782
        %v863 = vmul.f32 %v470, %v782
        %v864 = vmul.f32 %v474, %v782
        %v865 = vmul.f32 %v478, %v782
        %v866 = vmul.f32 %v482, %v782
        %v867 = vmul.f32 %v486, %v782
        %v868 = vmul.f32 %v490, %v782
        %v869 = vmul.f32 %v494, %v782
        %v870 = vmul.f32 %v498, %v782
        %v871 = vmul.f32 %v505, %v786
        %v872 = vmul.f32 %v509, %v786
        %v873 = vmul.f32 %v513, %v786
        %v874 = vmul.f32 %v517, %v786
        %v875 = vmul.f32 %v521, %v786
        %v876 = vmul.f32 %v525, %v786
        %v877 = vmul.f32 %v529, %v786
        %v878 = vmul.f32 %v533, %v786
        %v879 = vmul.f32 %v537, %v786
        %v880 = vmul.f32 %v541, %v786
        %v881 = vmul.f32 %v545, %v786
        %v882 = vmul.f32 %v549, %v786
        %v883 = vmul.f32 %v553, %v786
        %v884 = vmul.f32 %v557, %v786
        %v885 = vmul.f32 %v561, %v786
        %v886 = vmul.f32 %v565, %v786
        %v887 = vmul.f32 %v572, %v790
        %v888 = vmul.f32 %v576, %v790
        %v889 = vmul.f32 %v580, %v790
        %v890 = vmul.f32 %v584, %v790
        %v891 = vmul.f32 %v588, %v790
        %v892 = vmul.f32 %v592, %v790
        %v893 = vmul.f32 %v596, %v790
        %v894 = vmul.f32 %v600, %v790
        %v895 = vmul.f32 %v604, %v790
        %v896 = vmul.f32 %v608, %v790
        %v897 = vmul.f32 %v612, %v790
        %v898 = vmul.f32 %v616, %v790
        %v899 = vmul.f32 %v620, %v790
        %v900 = vmul.f32 %v624, %v790
        %v901 = vmul.f32 %v628, %v790
        %v902 = vmul.f32 %v632, %v790
        %v903 = vmul.f32 %v639, %v794
        %v904 = vmul.f32 %v643, %v794
        %v905 = vmul.f32 %v647, %v794
        %v906 = vmul.f32 %v651, %v794
        %v907 = vmul.f32 %v655, %v794
        %v908 = vmul.f32 %v659, %v794
        %v909 = vmul.f32 %v663, %v794
        %v910 = vmul.f32 %v667, %v794
        %v911 = vmul.f32 %v671, %v794
        %v912 = vmul.f32 %v675, %v794
        %v913 = vmul.f32 %v679, %v794
        %v914 = vmul.f32 %v683, %v794
        %v915 = vmul.f32 %v687, %v794
        %v916 = vmul.f32 %v691, %v794
        %v917 = vmul.f32 %v695, %v794
        %v918 = vmul.f32 %v699, %v794
        %v919 = vmul.f32 %v706, %v798
        %v920 = vmul.f32 %v710, %v798
        %v921 = vmul.f32 %v714, %v798
        %v922 = vmul.f32 %v718, %v798
        %v923 = vmul.f32 %v722, %v798
        %v924 = vmul.f32 %v726, %v798
        %v925 = vmul.f32 %v730, %v798
        %v926 = vmul.f32 %v734, %v798
        %v927 = vmul.f32 %v738, %v798
        %v928 = vmul.f32 %v742, %v798
        %v929 = vmul.f32 %v746, %v798
        %v930 = vmul.f32 %v750, %v798
        %v931 = vmul.f32 %v754, %v798
        %v932 = vmul.f32 %v758, %v798
        %v933 = vmul.f32 %v762, %v798
        %v934 = vmul.f32 %v766, %v798
        %935 = vmax.xlane.f32.xlu0 %v807
        %v936 = vpop.xlane.xlu0 %935
        %937 = vmax.xlane.f32.xlu0 %v808
        %v938 = vpop.xlane.xlu0 %937
        %939 = vmax.xlane.f32.xlu0 %v809
        %v940 = vpop.xlane.xlu0 %939
        %941 = vmax.xlane.f32.xlu0 %v810
        %v942 = vpop.xlane.xlu0 %941
        %943 = vmax.xlane.f32.xlu0 %v811
        %v944 = vpop.xlane.xlu0 %943
        %945 = vmax.xlane.f32.xlu0 %v812
        %v946 = vpop.xlane.xlu0 %945
        %947 = vmax.xlane.f32.xlu0 %v813
        %v948 = vpop.xlane.xlu0 %947
        %949 = vmax.xlane.f32.xlu0 %v814
        %v950 = vpop.xlane.xlu0 %949
        %951 = vmax.xlane.f32.xlu0 %v815
        %v952 = vpop.xlane.xlu0 %951
        %953 = vmax.xlane.f32.xlu0 %v816
        %v954 = vpop.xlane.xlu0 %953
        %955 = vmax.xlane.f32.xlu0 %v817
        %v956 = vpop.xlane.xlu0 %955
        %957 = vmax.xlane.f32.xlu0 %v818
        %v958 = vpop.xlane.xlu0 %957
        %959 = vmax.xlane.f32.xlu0 %v819
        %v960 = vpop.xlane.xlu0 %959
        %961 = vmax.xlane.f32.xlu0 %v820
        %v962 = vpop.xlane.xlu0 %961
        %963 = vmax.xlane.f32.xlu0 %v821
        %v964 = vpop.xlane.xlu0 %963
        %965 = vmax.xlane.f32.xlu0 %v822
        %v966 = vpop.xlane.xlu0 %965
        %967 = vmax.xlane.f32.xlu0 %v823
        %v968 = vpop.xlane.xlu0 %967
        %969 = vmax.xlane.f32.xlu0 %v824
        %v970 = vpop.xlane.xlu0 %969
        %971 = vmax.xlane.f32.xlu0 %v825
        %v972 = vpop.xlane.xlu0 %971
        %973 = vmax.xlane.f32.xlu0 %v826
        %v974 = vpop.xlane.xlu0 %973
        %975 = vmax.xlane.f32.xlu0 %v827
        %v976 = vpop.xlane.xlu0 %975
        %977 = vmax.xlane.f32.xlu0 %v828
        %v978 = vpop.xlane.xlu0 %977
        %979 = vmax.xlane.f32.xlu0 %v829
        %v980 = vpop.xlane.xlu0 %979
        %981 = vmax.xlane.f32.xlu0 %v830
        %v982 = vpop.xlane.xlu0 %981
        %983 = vmax.xlane.f32.xlu0 %v831
        %v984 = vpop.xlane.xlu0 %983
        %985 = vmax.xlane.f32.xlu0 %v832
        %v986 = vpop.xlane.xlu0 %985
        %987 = vmax.xlane.f32.xlu0 %v833
        %v988 = vpop.xlane.xlu0 %987
        %989 = vmax.xlane.f32.xlu0 %v834
        %v990 = vpop.xlane.xlu0 %989
        %991 = vmax.xlane.f32.xlu0 %v835
        %v992 = vpop.xlane.xlu0 %991
        %993 = vmax.xlane.f32.xlu0 %v836
        %v994 = vpop.xlane.xlu0 %993
        %995 = vmax.xlane.f32.xlu0 %v837
        %v996 = vpop.xlane.xlu0 %995
        %997 = vmax.xlane.f32.xlu0 %v838
        %v998 = vpop.xlane.xlu0 %997
        %999 = vmax.xlane.f32.xlu0 %v839
        %v1000 = vpop.xlane.xlu0 %999
        %1001 = vmax.xlane.f32.xlu0 %v840
        %v1002 = vpop.xlane.xlu0 %1001
        %1003 = vmax.xlane.f32.xlu0 %v841
        %v1004 = vpop.xlane.xlu0 %1003
        %1005 = vmax.xlane.f32.xlu0 %v842
        %v1006 = vpop.xlane.xlu0 %1005
        %1007 = vmax.xlane.f32.xlu0 %v843
        %v1008 = vpop.xlane.xlu0 %1007
        %1009 = vmax.xlane.f32.xlu0 %v844
        %v1010 = vpop.xlane.xlu0 %1009
        %1011 = vmax.xlane.f32.xlu0 %v845
        %v1012 = vpop.xlane.xlu0 %1011
        %1013 = vmax.xlane.f32.xlu0 %v846
        %v1014 = vpop.xlane.xlu0 %1013
        %1015 = vmax.xlane.f32.xlu0 %v847
        %v1016 = vpop.xlane.xlu0 %1015
        %1017 = vmax.xlane.f32.xlu0 %v848
        %v1018 = vpop.xlane.xlu0 %1017
        %1019 = vmax.xlane.f32.xlu0 %v849
        %v1020 = vpop.xlane.xlu0 %1019
        %1021 = vmax.xlane.f32.xlu0 %v850
        %v1022 = vpop.xlane.xlu0 %1021
        %1023 = vmax.xlane.f32.xlu0 %v851
        %v1024 = vpop.xlane.xlu0 %1023
        %1025 = vmax.xlane.f32.xlu0 %v852
        %v1026 = vpop.xlane.xlu0 %1025
        %1027 = vmax.xlane.f32.xlu0 %v853
        %v1028 = vpop.xlane.xlu0 %1027
        %1029 = vmax.xlane.f32.xlu0 %v854
        %v1030 = vpop.xlane.xlu0 %1029
        %1031 = vmax.xlane.f32.xlu0 %v855
        %v1032 = vpop.xlane.xlu0 %1031
        %1033 = vmax.xlane.f32.xlu0 %v856
        %v1034 = vpop.xlane.xlu0 %1033
        %1035 = vmax.xlane.f32.xlu0 %v857
        %v1036 = vpop.xlane.xlu0 %1035
        %1037 = vmax.xlane.f32.xlu0 %v858
        %v1038 = vpop.xlane.xlu0 %1037
        %1039 = vmax.xlane.f32.xlu0 %v859
        %v1040 = vpop.xlane.xlu0 %1039
        %1041 = vmax.xlane.f32.xlu0 %v860
        %v1042 = vpop.xlane.xlu0 %1041
        %1043 = vmax.xlane.f32.xlu0 %v861
        %v1044 = vpop.xlane.xlu0 %1043
        %1045 = vmax.xlane.f32.xlu0 %v862
        %v1046 = vpop.xlane.xlu0 %1045
        %1047 = vmax.xlane.f32.xlu0 %v863
        %v1048 = vpop.xlane.xlu0 %1047
        %1049 = vmax.xlane.f32.xlu0 %v864
        %v1050 = vpop.xlane.xlu0 %1049
        %1051 = vmax.xlane.f32.xlu0 %v865
        %v1052 = vpop.xlane.xlu0 %1051
        %1053 = vmax.xlane.f32.xlu0 %v866
        %v1054 = vpop.xlane.xlu0 %1053
        %1055 = vmax.xlane.f32.xlu0 %v867
        %v1056 = vpop.xlane.xlu0 %1055
        %1057 = vmax.xlane.f32.xlu0 %v868
        %v1058 = vpop.xlane.xlu0 %1057
        %1059 = vmax.xlane.f32.xlu0 %v869
        %v1060 = vpop.xlane.xlu0 %1059
        %1061 = vmax.xlane.f32.xlu0 %v870
        %v1062 = vpop.xlane.xlu0 %1061
        %1063 = vmax.xlane.f32.xlu0 %v871
        %v1064 = vpop.xlane.xlu0 %1063
        %1065 = vmax.xlane.f32.xlu0 %v872
        %v1066 = vpop.xlane.xlu0 %1065
        %1067 = vmax.xlane.f32.xlu0 %v873
        %v1068 = vpop.xlane.xlu0 %1067
        %1069 = vmax.xlane.f32.xlu0 %v874
        %v1070 = vpop.xlane.xlu0 %1069
        %1071 = vmax.xlane.f32.xlu0 %v875
        %v1072 = vpop.xlane.xlu0 %1071
        %1073 = vmax.xlane.f32.xlu0 %v876
        %v1074 = vpop.xlane.xlu0 %1073
        %1075 = vmax.xlane.f32.xlu0 %v877
        %v1076 = vpop.xlane.xlu0 %1075
        %1077 = vmax.xlane.f32.xlu0 %v878
        %v1078 = vpop.xlane.xlu0 %1077
        %1079 = vmax.xlane.f32.xlu0 %v879
        %v1080 = vpop.xlane.xlu0 %1079
        %1081 = vmax.xlane.f32.xlu0 %v880
        %v1082 = vpop.xlane.xlu0 %1081
        %1083 = vmax.xlane.f32.xlu0 %v881
        %v1084 = vpop.xlane.xlu0 %1083
        %1085 = vmax.xlane.f32.xlu0 %v882
        %v1086 = vpop.xlane.xlu0 %1085
        %1087 = vmax.xlane.f32.xlu0 %v883
        %v1088 = vpop.xlane.xlu0 %1087
        %1089 = vmax.xlane.f32.xlu0 %v884
        %v1090 = vpop.xlane.xlu0 %1089
        %1091 = vmax.xlane.f32.xlu0 %v885
        %v1092 = vpop.xlane.xlu0 %1091
        %1093 = vmax.xlane.f32.xlu0 %v886
        %v1094 = vpop.xlane.xlu0 %1093
        %1095 = vmax.xlane.f32.xlu0 %v887
        %v1096 = vpop.xlane.xlu0 %1095
        %1097 = vmax.xlane.f32.xlu0 %v888
        %v1098 = vpop.xlane.xlu0 %1097
        %1099 = vmax.xlane.f32.xlu0 %v889
        %v1100 = vpop.xlane.xlu0 %1099
        %1101 = vmax.xlane.f32.xlu0 %v890
        %v1102 = vpop.xlane.xlu0 %1101
        %1103 = vmax.xlane.f32.xlu0 %v891
        %v1104 = vpop.xlane.xlu0 %1103
        %1105 = vmax.xlane.f32.xlu0 %v892
        %v1106 = vpop.xlane.xlu0 %1105
        %1107 = vmax.xlane.f32.xlu0 %v893
        %v1108 = vpop.xlane.xlu0 %1107
        %1109 = vmax.xlane.f32.xlu0 %v894
        %v1110 = vpop.xlane.xlu0 %1109
        %1111 = vmax.xlane.f32.xlu0 %v895
        %v1112 = vpop.xlane.xlu0 %1111
        %1113 = vmax.xlane.f32.xlu0 %v896
        %v1114 = vpop.xlane.xlu0 %1113
        %1115 = vmax.xlane.f32.xlu0 %v897
        %v1116 = vpop.xlane.xlu0 %1115
        %1117 = vmax.xlane.f32.xlu0 %v898
        %v1118 = vpop.xlane.xlu0 %1117
        %1119 = vmax.xlane.f32.xlu0 %v899
        %v1120 = vpop.xlane.xlu0 %1119
        %1121 = vmax.xlane.f32.xlu0 %v900
        %v1122 = vpop.xlane.xlu0 %1121
        %1123 = vmax.xlane.f32.xlu0 %v901
        %v1124 = vpop.xlane.xlu0 %1123
        %1125 = vmax.xlane.f32.xlu0 %v902
        %v1126 = vpop.xlane.xlu0 %1125
        %1127 = vmax.xlane.f32.xlu0 %v903
        %v1128 = vpop.xlane.xlu0 %1127
        %1129 = vmax.xlane.f32.xlu0 %v904
        %v1130 = vpop.xlane.xlu0 %1129
        %1131 = vmax.xlane.f32.xlu0 %v905
        %v1132 = vpop.xlane.xlu0 %1131
        %1133 = vmax.xlane.f32.xlu0 %v906
        %v1134 = vpop.xlane.xlu0 %1133
        %1135 = vmax.xlane.f32.xlu0 %v907
        %v1136 = vpop.xlane.xlu0 %1135
        %1137 = vmax.xlane.f32.xlu0 %v908
        %v1138 = vpop.xlane.xlu0 %1137
        %1139 = vmax.xlane.f32.xlu0 %v909
        %v1140 = vpop.xlane.xlu0 %1139
        %1141 = vmax.xlane.f32.xlu0 %v910
        %v1142 = vpop.xlane.xlu0 %1141
        %1143 = vmax.xlane.f32.xlu0 %v911
        %v1144 = vpop.xlane.xlu0 %1143
        %1145 = vmax.xlane.f32.xlu0 %v912
        %v1146 = vpop.xlane.xlu0 %1145
        %1147 = vmax.xlane.f32.xlu0 %v913
        %v1148 = vpop.xlane.xlu0 %1147
        %1149 = vmax.xlane.f32.xlu0 %v914
        %v1150 = vpop.xlane.xlu0 %1149
        %1151 = vmax.xlane.f32.xlu0 %v915
        %v1152 = vpop.xlane.xlu0 %1151
        %1153 = vmax.xlane.f32.xlu0 %v916
        %v1154 = vpop.xlane.xlu0 %1153
        %1155 = vmax.xlane.f32.xlu0 %v917
        %v1156 = vpop.xlane.xlu0 %1155
        %1157 = vmax.xlane.f32.xlu0 %v918
        %v1158 = vpop.xlane.xlu0 %1157
        %1159 = vmax.xlane.f32.xlu0 %v919
        %v1160 = vpop.xlane.xlu0 %1159
        %1161 = vmax.xlane.f32.xlu0 %v920
        %v1162 = vpop.xlane.xlu0 %1161
        %1163 = vmax.xlane.f32.xlu0 %v921
        %v1164 = vpop.xlane.xlu0 %1163
        %1165 = vmax.xlane.f32.xlu0 %v922
        %v1166 = vpop.xlane.xlu0 %1165
        %1167 = vmax.xlane.f32.xlu0 %v923
        %v1168 = vpop.xlane.xlu0 %1167
        %1169 = vmax.xlane.f32.xlu0 %v924
        %v1170 = vpop.xlane.xlu0 %1169
        %1171 = vmax.xlane.f32.xlu0 %v925
        %v1172 = vpop.xlane.xlu0 %1171
        %1173 = vmax.xlane.f32.xlu0 %v926
        %v1174 = vpop.xlane.xlu0 %1173
        %1175 = vmax.xlane.f32.xlu0 %v927
        %v1176 = vpop.xlane.xlu0 %1175
        %1177 = vmax.xlane.f32.xlu0 %v928
        %v1178 = vpop.xlane.xlu0 %1177
        %1179 = vmax.xlane.f32.xlu0 %v929
        %v1180 = vpop.xlane.xlu0 %1179
        %1181 = vmax.xlane.f32.xlu0 %v930
        %v1182 = vpop.xlane.xlu0 %1181
        %1183 = vmax.xlane.f32.xlu0 %v931
        %v1184 = vpop.xlane.xlu0 %1183
        %1185 = vmax.xlane.f32.xlu0 %v932
        %v1186 = vpop.xlane.xlu0 %1185
        %1187 = vmax.xlane.f32.xlu0 %v933
        %v1188 = vpop.xlane.xlu0 %1187
        %1189 = vmax.xlane.f32.xlu0 %v934
        %v1190 = vpop.xlane.xlu0 %1189
        %v1191 = vsub.f32 %v807, %v936
        %v1192 = vsub.f32 %v808, %v938
        %v1193 = vsub.f32 %v809, %v940
        %v1194 = vsub.f32 %v810, %v942
        %v1195 = vsub.f32 %v811, %v944
        %v1196 = vsub.f32 %v812, %v946
        %v1197 = vsub.f32 %v813, %v948
        %v1198 = vsub.f32 %v814, %v950
        %v1199 = vsub.f32 %v815, %v952
        %v1200 = vsub.f32 %v816, %v954
        %v1201 = vsub.f32 %v817, %v956
        %v1202 = vsub.f32 %v818, %v958
        %v1203 = vsub.f32 %v819, %v960
        %v1204 = vsub.f32 %v820, %v962
        %v1205 = vsub.f32 %v821, %v964
        %v1206 = vsub.f32 %v822, %v966
        %v1207 = vsub.f32 %v823, %v968
        %v1208 = vsub.f32 %v824, %v970
        %v1209 = vsub.f32 %v825, %v972
        %v1210 = vsub.f32 %v826, %v974
        %v1211 = vsub.f32 %v827, %v976
        %v1212 = vsub.f32 %v828, %v978
        %v1213 = vsub.f32 %v829, %v980
        %v1214 = vsub.f32 %v830, %v982
        %v1215 = vsub.f32 %v831, %v984
        %v1216 = vsub.f32 %v832, %v986
        %v1217 = vsub.f32 %v833, %v988
        %v1218 = vsub.f32 %v834, %v990
        %v1219 = vsub.f32 %v835, %v992
        %v1220 = vsub.f32 %v836, %v994
        %v1221 = vsub.f32 %v837, %v996
        %v1222 = vsub.f32 %v838, %v998
        %v1223 = vsub.f32 %v839, %v1000
        %v1224 = vsub.f32 %v840, %v1002
        %v1225 = vsub.f32 %v841, %v1004
        %v1226 = vsub.f32 %v842, %v1006
        %v1227 = vsub.f32 %v843, %v1008
        %v1228 = vsub.f32 %v844, %v1010
        %v1229 = vsub.f32 %v845, %v1012
        %v1230 = vsub.f32 %v846, %v1014
        %v1231 = vsub.f32 %v847, %v1016
        %v1232 = vsub.f32 %v848, %v1018
        %v1233 = vsub.f32 %v849, %v1020
        %v1234 = vsub.f32 %v850, %v1022
        %v1235 = vsub.f32 %v851, %v1024
        %v1236 = vsub.f32 %v852, %v1026
        %v1237 = vsub.f32 %v853, %v1028
        %v1238 = vsub.f32 %v854, %v1030
        %v1239 = vsub.f32 %v855, %v1032
        %v1240 = vsub.f32 %v856, %v1034
        %v1241 = vsub.f32 %v857, %v1036
        %v1242 = vsub.f32 %v858, %v1038
        %v1243 = vsub.f32 %v859, %v1040
        %v1244 = vsub.f32 %v860, %v1042
        %v1245 = vsub.f32 %v861, %v1044
        %v1246 = vsub.f32 %v862, %v1046
        %v1247 = vsub.f32 %v863, %v1048
        %v1248 = vsub.f32 %v864, %v1050
        %v1249 = vsub.f32 %v865, %v1052
        %v1250 = vsub.f32 %v866, %v1054
        %v1251 = vsub.f32 %v867, %v1056
        %v1252 = vsub.f32 %v868, %v1058
        %v1253 = vsub.f32 %v869, %v1060
        %v1254 = vsub.f32 %v870, %v1062
        %v1255 = vsub.f32 %v871, %v1064
        %v1256 = vsub.f32 %v872, %v1066
        %v1257 = vsub.f32 %v873, %v1068
        %v1258 = vsub.f32 %v874, %v1070
        %v1259 = vsub.f32 %v875, %v1072
        %v1260 = vsub.f32 %v876, %v1074
        %v1261 = vsub.f32 %v877, %v1076
        %v1262 = vsub.f32 %v878, %v1078
        %v1263 = vsub.f32 %v879, %v1080
        %v1264 = vsub.f32 %v880, %v1082
        %v1265 = vsub.f32 %v881, %v1084
        %v1266 = vsub.f32 %v882, %v1086
        %v1267 = vsub.f32 %v883, %v1088
        %v1268 = vsub.f32 %v884, %v1090
        %v1269 = vsub.f32 %v885, %v1092
        %v1270 = vsub.f32 %v886, %v1094
        %v1271 = vsub.f32 %v887, %v1096
        %v1272 = vsub.f32 %v888, %v1098
        %v1273 = vsub.f32 %v889, %v1100
        %v1274 = vsub.f32 %v890, %v1102
        %v1275 = vsub.f32 %v891, %v1104
        %v1276 = vsub.f32 %v892, %v1106
        %v1277 = vsub.f32 %v893, %v1108
        %v1278 = vsub.f32 %v894, %v1110
        %v1279 = vsub.f32 %v895, %v1112
        %v1280 = vsub.f32 %v896, %v1114
        %v1281 = vsub.f32 %v897, %v1116
        %v1282 = vsub.f32 %v898, %v1118
        %v1283 = vsub.f32 %v899, %v1120
        %v1284 = vsub.f32 %v900, %v1122
        %v1285 = vsub.f32 %v901, %v1124
        %v1286 = vsub.f32 %v902, %v1126
        %v1287 = vsub.f32 %v903, %v1128
        %v1288 = vsub.f32 %v904, %v1130
        %v1289 = vsub.f32 %v905, %v1132
        %v1290 = vsub.f32 %v906, %v1134
        %v1291 = vsub.f32 %v907, %v1136
        %v1292 = vsub.f32 %v908, %v1138
        %v1293 = vsub.f32 %v909, %v1140
        %v1294 = vsub.f32 %v910, %v1142
        %v1295 = vsub.f32 %v911, %v1144
        %v1296 = vsub.f32 %v912, %v1146
        %v1297 = vsub.f32 %v913, %v1148
        %v1298 = vsub.f32 %v914, %v1150
        %v1299 = vsub.f32 %v915, %v1152
        %v1300 = vsub.f32 %v916, %v1154
        %v1301 = vsub.f32 %v917, %v1156
        %v1302 = vsub.f32 %v918, %v1158
        %v1303 = vsub.f32 %v919, %v1160
        %v1304 = vsub.f32 %v920, %v1162
        %v1305 = vsub.f32 %v921, %v1164
        %v1306 = vsub.f32 %v922, %v1166
        %v1307 = vsub.f32 %v923, %v1168
        %v1308 = vsub.f32 %v924, %v1170
        %v1309 = vsub.f32 %v925, %v1172
        %v1310 = vsub.f32 %v926, %v1174
        %v1311 = vsub.f32 %v927, %v1176
        %v1312 = vsub.f32 %v928, %v1178
        %v1313 = vsub.f32 %v929, %v1180
        %v1314 = vsub.f32 %v930, %v1182
        %v1315 = vsub.f32 %v931, %v1184
        %v1316 = vsub.f32 %v932, %v1186
        %v1317 = vsub.f32 %v933, %v1188
        %v1318 = vsub.f32 %v934, %v1190
        %v1319 = vmul.f32 %v1191, 1.442695
        %v1320 = vpow.pop %v1319
        %v1321 = vmul.f32 %v1192, 1.442695
        %v1322 = vpow.pop %v1321
        %v1323 = vmul.f32 %v1193, 1.442695
        %v1324 = vpow.pop %v1323
        %v1325 = vmul.f32 %v1194, 1.442695
        %v1326 = vpow.pop %v1325
        %v1327 = vmul.f32 %v1195, 1.442695
        %v1328 = vpow.pop %v1327
        %v1329 = vmul.f32 %v1196, 1.442695
        %v1330 = vpow.pop %v1329
        %v1331 = vmul.f32 %v1197, 1.442695
        %v1332 = vpow.pop %v1331
        %v1333 = vmul.f32 %v1198, 1.442695
        %v1334 = vpow.pop %v1333
        %v1335 = vmul.f32 %v1199, 1.442695
        %v1336 = vpow.pop %v1335
        %v1337 = vmul.f32 %v1200, 1.442695
        %v1338 = vpow.pop %v1337
        %v1339 = vmul.f32 %v1201, 1.442695
        %v1340 = vpow.pop %v1339
        %v1341 = vmul.f32 %v1202, 1.442695
        %v1342 = vpow.pop %v1341
        %v1343 = vmul.f32 %v1203, 1.442695
        %v1344 = vpow.pop %v1343
        %v1345 = vmul.f32 %v1204, 1.442695
        %v1346 = vpow.pop %v1345
        %v1347 = vmul.f32 %v1205, 1.442695
        %v1348 = vpow.pop %v1347
        %v1349 = vmul.f32 %v1206, 1.442695
        %v1350 = vpow.pop %v1349
        %v1351 = vmul.f32 %v1207, 1.442695
        %v1352 = vpow.pop %v1351
        %v1353 = vmul.f32 %v1208, 1.442695
        %v1354 = vpow.pop %v1353
        %v1355 = vmul.f32 %v1209, 1.442695
        %v1356 = vpow.pop %v1355
        %v1357 = vmul.f32 %v1210, 1.442695
        %v1358 = vpow.pop %v1357
        %v1359 = vmul.f32 %v1211, 1.442695
        %v1360 = vpow.pop %v1359
        %v1361 = vmul.f32 %v1212, 1.442695
        %v1362 = vpow.pop %v1361
        %v1363 = vmul.f32 %v1213, 1.442695
        %v1364 = vpow.pop %v1363
        %v1365 = vmul.f32 %v1214, 1.442695
        %v1366 = vpow.pop %v1365
        %v1367 = vmul.f32 %v1215, 1.442695
        %v1368 = vpow.pop %v1367
        %v1369 = vmul.f32 %v1216, 1.442695
        %v1370 = vpow.pop %v1369
        %v1371 = vmul.f32 %v1217, 1.442695
        %v1372 = vpow.pop %v1371
        %v1373 = vmul.f32 %v1218, 1.442695
        %v1374 = vpow.pop %v1373
        %v1375 = vmul.f32 %v1219, 1.442695
        %v1376 = vpow.pop %v1375
        %v1377 = vmul.f32 %v1220, 1.442695
        %v1378 = vpow.pop %v1377
        %v1379 = vmul.f32 %v1221, 1.442695
        %v1380 = vpow.pop %v1379
        %v1381 = vmul.f32 %v1222, 1.442695
        %v1382 = vpow.pop %v1381
        %v1383 = vmul.f32 %v1223, 1.442695
        %v1384 = vpow.pop %v1383
        %v1385 = vmul.f32 %v1224, 1.442695
        %v1386 = vpow.pop %v1385
        %v1387 = vmul.f32 %v1225, 1.442695
        %v1388 = vpow.pop %v1387
        %v1389 = vmul.f32 %v1226, 1.442695
        %v1390 = vpow.pop %v1389
        %v1391 = vmul.f32 %v1227, 1.442695
        %v1392 = vpow.pop %v1391
        %v1393 = vmul.f32 %v1228, 1.442695
        %v1394 = vpow.pop %v1393
        %v1395 = vmul.f32 %v1229, 1.442695
        %v1396 = vpow.pop %v1395
        %v1397 = vmul.f32 %v1230, 1.442695
        %v1398 = vpow.pop %v1397
        %v1399 = vmul.f32 %v1231, 1.442695
        %v1400 = vpow.pop %v1399
        %v1401 = vmul.f32 %v1232, 1.442695
        %v1402 = vpow.pop %v1401
        %v1403 = vmul.f32 %v1233, 1.442695
        %v1404 = vpow.pop %v1403
        %v1405 = vmul.f32 %v1234, 1.442695
        %v1406 = vpow.pop %v1405
        %v1407 = vmul.f32 %v1235, 1.442695
        %v1408 = vpow.pop %v1407
        %v1409 = vmul.f32 %v1236, 1.442695
        %v1410 = vpow.pop %v1409
        %v1411 = vmul.f32 %v1237, 1.442695
        %v1412 = vpow.pop %v1411
        %v1413 = vmul.f32 %v1238, 1.442695
        %v1414 = vpow.pop %v1413
        %v1415 = vmul.f32 %v1239, 1.442695
        %v1416 = vpow.pop %v1415
        %v1417 = vmul.f32 %v1240, 1.442695
        %v1418 = vpow.pop %v1417
        %v1419 = vmul.f32 %v1241, 1.442695
        %v1420 = vpow.pop %v1419
        %v1421 = vmul.f32 %v1242, 1.442695
        %v1422 = vpow.pop %v1421
        %v1423 = vmul.f32 %v1243, 1.442695
        %v1424 = vpow.pop %v1423
        %v1425 = vmul.f32 %v1244, 1.442695
        %v1426 = vpow.pop %v1425
        %v1427 = vmul.f32 %v1245, 1.442695
        %v1428 = vpow.pop %v1427
        %v1429 = vmul.f32 %v1246, 1.442695
        %v1430 = vpow.pop %v1429
        %v1431 = vmul.f32 %v1247, 1.442695
        %v1432 = vpow.pop %v1431
        %v1433 = vmul.f32 %v1248, 1.442695
        %v1434 = vpow.pop %v1433
        %v1435 = vmul.f32 %v1249, 1.442695
        %v1436 = vpow.pop %v1435
        %v1437 = vmul.f32 %v1250, 1.442695
        %v1438 = vpow.pop %v1437
        %v1439 = vmul.f32 %v1251, 1.442695
        %v1440 = vpow.pop %v1439
        %v1441 = vmul.f32 %v1252, 1.442695
        %v1442 = vpow.pop %v1441
        %v1443 = vmul.f32 %v1253, 1.442695
        %v1444 = vpow.pop %v1443
        %v1445 = vmul.f32 %v1254, 1.442695
        %v1446 = vpow.pop %v1445
        %v1447 = vmul.f32 %v1255, 1.442695
        %v1448 = vpow.pop %v1447
        %v1449 = vmul.f32 %v1256, 1.442695
        %v1450 = vpow.pop %v1449
        %v1451 = vmul.f32 %v1257, 1.442695
        %v1452 = vpow.pop %v1451
        %v1453 = vmul.f32 %v1258, 1.442695
        %v1454 = vpow.pop %v1453
        %v1455 = vmul.f32 %v1259, 1.442695
        %v1456 = vpow.pop %v1455
        %v1457 = vmul.f32 %v1260, 1.442695
        %v1458 = vpow.pop %v1457
        %v1459 = vmul.f32 %v1261, 1.442695
        %v1460 = vpow.pop %v1459
        %v1461 = vmul.f32 %v1262, 1.442695
        %v1462 = vpow.pop %v1461
        %v1463 = vmul.f32 %v1263, 1.442695
        %v1464 = vpow.pop %v1463
        %v1465 = vmul.f32 %v1264, 1.442695
        %v1466 = vpow.pop %v1465
        %v1467 = vmul.f32 %v1265, 1.442695
        %v1468 = vpow.pop %v1467
        %v1469 = vmul.f32 %v1266, 1.442695
        %v1470 = vpow.pop %v1469
        %v1471 = vmul.f32 %v1267, 1.442695
        %v1472 = vpow.pop %v1471
        %v1473 = vmul.f32 %v1268, 1.442695
        %v1474 = vpow.pop %v1473
        %v1475 = vmul.f32 %v1269, 1.442695
        %v1476 = vpow.pop %v1475
        %v1477 = vmul.f32 %v1270, 1.442695
        %v1478 = vpow.pop %v1477
        %v1479 = vmul.f32 %v1271, 1.442695
        %v1480 = vpow.pop %v1479
        %v1481 = vmul.f32 %v1272, 1.442695
        %v1482 = vpow.pop %v1481
        %v1483 = vmul.f32 %v1273, 1.442695
        %v1484 = vpow.pop %v1483
        %v1485 = vmul.f32 %v1274, 1.442695
        %v1486 = vpow.pop %v1485
        %v1487 = vmul.f32 %v1275, 1.442695
        %v1488 = vpow.pop %v1487
        %v1489 = vmul.f32 %v1276, 1.442695
        %v1490 = vpow.pop %v1489
        %v1491 = vmul.f32 %v1277, 1.442695
        %v1492 = vpow.pop %v1491
        %v1493 = vmul.f32 %v1278, 1.442695
        %v1494 = vpow.pop %v1493
        %v1495 = vmul.f32 %v1279, 1.442695
        %v1496 = vpow.pop %v1495
        %v1497 = vmul.f32 %v1280, 1.442695
        %v1498 = vpow.pop %v1497
        %v1499 = vmul.f32 %v1281, 1.442695
        %v1500 = vpow.pop %v1499
        %v1501 = vmul.f32 %v1282, 1.442695
        %v1502 = vpow.pop %v1501
        %v1503 = vmul.f32 %v1283, 1.442695
        %v1504 = vpow.pop %v1503
        %v1505 = vmul.f32 %v1284, 1.442695
        %v1506 = vpow.pop %v1505
        %v1507 = vmul.f32 %v1285, 1.442695
        %v1508 = vpow.pop %v1507
        %v1509 = vmul.f32 %v1286, 1.442695
        %v1510 = vpow.pop %v1509
        %v1511 = vmul.f32 %v1287, 1.442695
        %v1512 = vpow.pop %v1511
        %v1513 = vmul.f32 %v1288, 1.442695
        %v1514 = vpow.pop %v1513
        %v1515 = vmul.f32 %v1289, 1.442695
        %v1516 = vpow.pop %v1515
        %v1517 = vmul.f32 %v1290, 1.442695
        %v1518 = vpow.pop %v1517
        %v1519 = vmul.f32 %v1291, 1.442695
        %v1520 = vpow.pop %v1519
        %v1521 = vmul.f32 %v1292, 1.442695
        %v1522 = vpow.pop %v1521
        %v1523 = vmul.f32 %v1293, 1.442695
        %v1524 = vpow.pop %v1523
        %v1525 = vmul.f32 %v1294, 1.442695
        %v1526 = vpow.pop %v1525
        %v1527 = vmul.f32 %v1295, 1.442695
        %v1528 = vpow.pop %v1527
        %v1529 = vmul.f32 %v1296, 1.442695
        %v1530 = vpow.pop %v1529
        %v1531 = vmul.f32 %v1297, 1.442695
        %v1532 = vpow.pop %v1531
        %v1533 = vmul.f32 %v1298, 1.442695
        %v1534 = vpow.pop %v1533
        %v1535 = vmul.f32 %v1299, 1.442695
        %v1536 = vpow.pop %v1535
        %v1537 = vmul.f32 %v1300, 1.442695
        %v1538 = vpow.pop %v1537
        %v1539 = vmul.f32 %v1301, 1.442695
        %v1540 = vpow.pop %v1539
        %v1541 = vmul.f32 %v1302, 1.442695
        %v1542 = vpow.pop %v1541
        %v1543 = vmul.f32 %v1303, 1.442695
        %v1544 = vpow.pop %v1543
        %v1545 = vmul.f32 %v1304, 1.442695
        %v1546 = vpow.pop %v1545
        %v1547 = vmul.f32 %v1305, 1.442695
        %v1548 = vpow.pop %v1547
        %v1549 = vmul.f32 %v1306, 1.442695
        %v1550 = vpow.pop %v1549
        %v1551 = vmul.f32 %v1307, 1.442695
        %v1552 = vpow.pop %v1551
        %v1553 = vmul.f32 %v1308, 1.442695
        %v1554 = vpow.pop %v1553
        %v1555 = vmul.f32 %v1309, 1.442695
        %v1556 = vpow.pop %v1555
        %v1557 = vmul.f32 %v1310, 1.442695
        %v1558 = vpow.pop %v1557
        %v1559 = vmul.f32 %v1311, 1.442695
        %v1560 = vpow.pop %v1559
        %v1561 = vmul.f32 %v1312, 1.442695
        %v1562 = vpow.pop %v1561
        %v1563 = vmul.f32 %v1313, 1.442695
        %v1564 = vpow.pop %v1563
        %v1565 = vmul.f32 %v1314, 1.442695
        %v1566 = vpow.pop %v1565
        %v1567 = vmul.f32 %v1315, 1.442695
        %v1568 = vpow.pop %v1567
        %v1569 = vmul.f32 %v1316, 1.442695
        %v1570 = vpow.pop %v1569
        %v1571 = vmul.f32 %v1317, 1.442695
        %v1572 = vpow.pop %v1571
        %v1573 = vmul.f32 %v1318, 1.442695
        %v1574 = vpow.pop %v1573
        %1575 = vadd.xlane.f32.xlu0 %v1320
        %v1576 = vpop.xlane.xlu0 %1575
        %1577 = vadd.xlane.f32.xlu0 %v1322
        %v1578 = vpop.xlane.xlu0 %1577
        %1579 = vadd.xlane.f32.xlu0 %v1324
        %v1580 = vpop.xlane.xlu0 %1579
        %1581 = vadd.xlane.f32.xlu0 %v1326
        %v1582 = vpop.xlane.xlu0 %1581
        %1583 = vadd.xlane.f32.xlu0 %v1328
        %v1584 = vpop.xlane.xlu0 %1583
        %1585 = vadd.xlane.f32.xlu0 %v1330
        %v1586 = vpop.xlane.xlu0 %1585
        %1587 = vadd.xlane.f32.xlu0 %v1332
        %v1588 = vpop.xlane.xlu0 %1587
        %1589 = vadd.xlane.f32.xlu0 %v1334
        %v1590 = vpop.xlane.xlu0 %1589
        %1591 = vadd.xlane.f32.xlu0 %v1336
        %v1592 = vpop.xlane.xlu0 %1591
        %1593 = vadd.xlane.f32.xlu0 %v1338
        %v1594 = vpop.xlane.xlu0 %1593
        %1595 = vadd.xlane.f32.xlu0 %v1340
        %v1596 = vpop.xlane.xlu0 %1595
        %1597 = vadd.xlane.f32.xlu0 %v1342
        %v1598 = vpop.xlane.xlu0 %1597
        %1599 = vadd.xlane.f32.xlu0 %v1344
        %v1600 = vpop.xlane.xlu0 %1599
        %1601 = vadd.xlane.f32.xlu0 %v1346
        %v1602 = vpop.xlane.xlu0 %1601
        %1603 = vadd.xlane.f32.xlu0 %v1348
        %v1604 = vpop.xlane.xlu0 %1603
        %1605 = vadd.xlane.f32.xlu0 %v1350
        %v1606 = vpop.xlane.xlu0 %1605
        %1607 = vadd.xlane.f32.xlu0 %v1352
        %v1608 = vpop.xlane.xlu0 %1607
        %1609 = vadd.xlane.f32.xlu0 %v1354
        %v1610 = vpop.xlane.xlu0 %1609
        %1611 = vadd.xlane.f32.xlu0 %v1356
        %v1612 = vpop.xlane.xlu0 %1611
        %1613 = vadd.xlane.f32.xlu0 %v1358
        %v1614 = vpop.xlane.xlu0 %1613
        %1615 = vadd.xlane.f32.xlu0 %v1360
        %v1616 = vpop.xlane.xlu0 %1615
        %1617 = vadd.xlane.f32.xlu0 %v1362
        %v1618 = vpop.xlane.xlu0 %1617
        %1619 = vadd.xlane.f32.xlu0 %v1364
        %v1620 = vpop.xlane.xlu0 %1619
        %1621 = vadd.xlane.f32.xlu0 %v1366
        %v1622 = vpop.xlane.xlu0 %1621
        %1623 = vadd.xlane.f32.xlu0 %v1368
        %v1624 = vpop.xlane.xlu0 %1623
        %1625 = vadd.xlane.f32.xlu0 %v1370
        %v1626 = vpop.xlane.xlu0 %1625
        %1627 = vadd.xlane.f32.xlu0 %v1372
        %v1628 = vpop.xlane.xlu0 %1627
        %1629 = vadd.xlane.f32.xlu0 %v1374
        %v1630 = vpop.xlane.xlu0 %1629
        %1631 = vadd.xlane.f32.xlu0 %v1376
        %v1632 = vpop.xlane.xlu0 %1631
        %1633 = vadd.xlane.f32.xlu0 %v1378
        %v1634 = vpop.xlane.xlu0 %1633
        %1635 = vadd.xlane.f32.xlu0 %v1380
        %v1636 = vpop.xlane.xlu0 %1635
        %1637 = vadd.xlane.f32.xlu0 %v1382
        %v1638 = vpop.xlane.xlu0 %1637
        %1639 = vadd.xlane.f32.xlu0 %v1384
        %v1640 = vpop.xlane.xlu0 %1639
        %1641 = vadd.xlane.f32.xlu0 %v1386
        %v1642 = vpop.xlane.xlu0 %1641
        %1643 = vadd.xlane.f32.xlu0 %v1388
        %v1644 = vpop.xlane.xlu0 %1643
        %1645 = vadd.xlane.f32.xlu0 %v1390
        %v1646 = vpop.xlane.xlu0 %1645
        %1647 = vadd.xlane.f32.xlu0 %v1392
        %v1648 = vpop.xlane.xlu0 %1647
        %1649 = vadd.xlane.f32.xlu0 %v1394
        %v1650 = vpop.xlane.xlu0 %1649
        %1651 = vadd.xlane.f32.xlu0 %v1396
        %v1652 = vpop.xlane.xlu0 %1651
        %1653 = vadd.xlane.f32.xlu0 %v1398
        %v1654 = vpop.xlane.xlu0 %1653
        %1655 = vadd.xlane.f32.xlu0 %v1400
        %v1656 = vpop.xlane.xlu0 %1655
        %1657 = vadd.xlane.f32.xlu0 %v1402
        %v1658 = vpop.xlane.xlu0 %1657
        %1659 = vadd.xlane.f32.xlu0 %v1404
        %v1660 = vpop.xlane.xlu0 %1659
        %1661 = vadd.xlane.f32.xlu0 %v1406
        %v1662 = vpop.xlane.xlu0 %1661
        %1663 = vadd.xlane.f32.xlu0 %v1408
        %v1664 = vpop.xlane.xlu0 %1663
        %1665 = vadd.xlane.f32.xlu0 %v1410
        %v1666 = vpop.xlane.xlu0 %1665
        %1667 = vadd.xlane.f32.xlu0 %v1412
        %v1668 = vpop.xlane.xlu0 %1667
        %1669 = vadd.xlane.f32.xlu0 %v1414
        %v1670 = vpop.xlane.xlu0 %1669
        %1671 = vadd.xlane.f32.xlu0 %v1416
        %v1672 = vpop.xlane.xlu0 %1671
        %1673 = vadd.xlane.f32.xlu0 %v1418
        %v1674 = vpop.xlane.xlu0 %1673
        %1675 = vadd.xlane.f32.xlu0 %v1420
        %v1676 = vpop.xlane.xlu0 %1675
        %1677 = vadd.xlane.f32.xlu0 %v1422
        %v1678 = vpop.xlane.xlu0 %1677
        %1679 = vadd.xlane.f32.xlu0 %v1424
        %v1680 = vpop.xlane.xlu0 %1679
        %1681 = vadd.xlane.f32.xlu0 %v1426
        %v1682 = vpop.xlane.xlu0 %1681
        %1683 = vadd.xlane.f32.xlu0 %v1428
        %v1684 = vpop.xlane.xlu0 %1683
        %1685 = vadd.xlane.f32.xlu0 %v1430
        %v1686 = vpop.xlane.xlu0 %1685
        %1687 = vadd.xlane.f32.xlu0 %v1432
        %v1688 = vpop.xlane.xlu0 %1687
        %1689 = vadd.xlane.f32.xlu0 %v1434
        %v1690 = vpop.xlane.xlu0 %1689
        %1691 = vadd.xlane.f32.xlu0 %v1436
        %v1692 = vpop.xlane.xlu0 %1691
        %1693 = vadd.xlane.f32.xlu0 %v1438
        %v1694 = vpop.xlane.xlu0 %1693
        %1695 = vadd.xlane.f32.xlu0 %v1440
        %v1696 = vpop.xlane.xlu0 %1695
        %1697 = vadd.xlane.f32.xlu0 %v1442
        %v1698 = vpop.xlane.xlu0 %1697
        %1699 = vadd.xlane.f32.xlu0 %v1444
        %v1700 = vpop.xlane.xlu0 %1699
        %1701 = vadd.xlane.f32.xlu0 %v1446
        %v1702 = vpop.xlane.xlu0 %1701
        %1703 = vadd.xlane.f32.xlu0 %v1448
        %v1704 = vpop.xlane.xlu0 %1703
        %1705 = vadd.xlane.f32.xlu0 %v1450
        %v1706 = vpop.xlane.xlu0 %1705
        %1707 = vadd.xlane.f32.xlu0 %v1452
        %v1708 = vpop.xlane.xlu0 %1707
        %1709 = vadd.xlane.f32.xlu0 %v1454
        %v1710 = vpop.xlane.xlu0 %1709
        %1711 = vadd.xlane.f32.xlu0 %v1456
        %v1712 = vpop.xlane.xlu0 %1711
        %1713 = vadd.xlane.f32.xlu0 %v1458
        %v1714 = vpop.xlane.xlu0 %1713
        %1715 = vadd.xlane.f32.xlu0 %v1460
        %v1716 = vpop.xlane.xlu0 %1715
        %1717 = vadd.xlane.f32.xlu0 %v1462
        %v1718 = vpop.xlane.xlu0 %1717
        %1719 = vadd.xlane.f32.xlu0 %v1464
        %v1720 = vpop.xlane.xlu0 %1719
        %1721 = vadd.xlane.f32.xlu0 %v1466
        %v1722 = vpop.xlane.xlu0 %1721
        %1723 = vadd.xlane.f32.xlu0 %v1468
        %v1724 = vpop.xlane.xlu0 %1723
        %1725 = vadd.xlane.f32.xlu0 %v1470
        %v1726 = vpop.xlane.xlu0 %1725
        %1727 = vadd.xlane.f32.xlu0 %v1472
        %v1728 = vpop.xlane.xlu0 %1727
        %1729 = vadd.xlane.f32.xlu0 %v1474
        %v1730 = vpop.xlane.xlu0 %1729
        %1731 = vadd.xlane.f32.xlu0 %v1476
        %v1732 = vpop.xlane.xlu0 %1731
        %1733 = vadd.xlane.f32.xlu0 %v1478
        %v1734 = vpop.xlane.xlu0 %1733
        %1735 = vadd.xlane.f32.xlu0 %v1480
        %v1736 = vpop.xlane.xlu0 %1735
        %1737 = vadd.xlane.f32.xlu0 %v1482
        %v1738 = vpop.xlane.xlu0 %1737
        %1739 = vadd.xlane.f32.xlu0 %v1484
        %v1740 = vpop.xlane.xlu0 %1739
        %1741 = vadd.xlane.f32.xlu0 %v1486
        %v1742 = vpop.xlane.xlu0 %1741
        %1743 = vadd.xlane.f32.xlu0 %v1488
        %v1744 = vpop.xlane.xlu0 %1743
        %1745 = vadd.xlane.f32.xlu0 %v1490
        %v1746 = vpop.xlane.xlu0 %1745
        %1747 = vadd.xlane.f32.xlu0 %v1492
        %v1748 = vpop.xlane.xlu0 %1747
        %1749 = vadd.xlane.f32.xlu0 %v1494
        %v1750 = vpop.xlane.xlu0 %1749
        %1751 = vadd.xlane.f32.xlu0 %v1496
        %v1752 = vpop.xlane.xlu0 %1751
        %1753 = vadd.xlane.f32.xlu0 %v1498
        %v1754 = vpop.xlane.xlu0 %1753
        %1755 = vadd.xlane.f32.xlu0 %v1500
        %v1756 = vpop.xlane.xlu0 %1755
        %1757 = vadd.xlane.f32.xlu0 %v1502
        %v1758 = vpop.xlane.xlu0 %1757
        %1759 = vadd.xlane.f32.xlu0 %v1504
        %v1760 = vpop.xlane.xlu0 %1759
        %1761 = vadd.xlane.f32.xlu0 %v1506
        %v1762 = vpop.xlane.xlu0 %1761
        %1763 = vadd.xlane.f32.xlu0 %v1508
        %v1764 = vpop.xlane.xlu0 %1763
        %1765 = vadd.xlane.f32.xlu0 %v1510
        %v1766 = vpop.xlane.xlu0 %1765
        %1767 = vadd.xlane.f32.xlu0 %v1512
        %v1768 = vpop.xlane.xlu0 %1767
        %1769 = vadd.xlane.f32.xlu0 %v1514
        %v1770 = vpop.xlane.xlu0 %1769
        %1771 = vadd.xlane.f32.xlu0 %v1516
        %v1772 = vpop.xlane.xlu0 %1771
        %1773 = vadd.xlane.f32.xlu0 %v1518
        %v1774 = vpop.xlane.xlu0 %1773
        %1775 = vadd.xlane.f32.xlu0 %v1520
        %v1776 = vpop.xlane.xlu0 %1775
        %1777 = vadd.xlane.f32.xlu0 %v1522
        %v1778 = vpop.xlane.xlu0 %1777
        %1779 = vadd.xlane.f32.xlu0 %v1524
        %v1780 = vpop.xlane.xlu0 %1779
        %1781 = vadd.xlane.f32.xlu0 %v1526
        %v1782 = vpop.xlane.xlu0 %1781
        %1783 = vadd.xlane.f32.xlu0 %v1528
        %v1784 = vpop.xlane.xlu0 %1783
        %1785 = vadd.xlane.f32.xlu0 %v1530
        %v1786 = vpop.xlane.xlu0 %1785
        %1787 = vadd.xlane.f32.xlu0 %v1532
        %v1788 = vpop.xlane.xlu0 %1787
        %1789 = vadd.xlane.f32.xlu0 %v1534
        %v1790 = vpop.xlane.xlu0 %1789
        %1791 = vadd.xlane.f32.xlu0 %v1536
        %v1792 = vpop.xlane.xlu0 %1791
        %1793 = vadd.xlane.f32.xlu0 %v1538
        %v1794 = vpop.xlane.xlu0 %1793
        %1795 = vadd.xlane.f32.xlu0 %v1540
        %v1796 = vpop.xlane.xlu0 %1795
        %1797 = vadd.xlane.f32.xlu0 %v1542
        %v1798 = vpop.xlane.xlu0 %1797
        %1799 = vadd.xlane.f32.xlu0 %v1544
        %v1800 = vpop.xlane.xlu0 %1799
        %1801 = vadd.xlane.f32.xlu0 %v1546
        %v1802 = vpop.xlane.xlu0 %1801
        %1803 = vadd.xlane.f32.xlu0 %v1548
        %v1804 = vpop.xlane.xlu0 %1803
        %1805 = vadd.xlane.f32.xlu0 %v1550
        %v1806 = vpop.xlane.xlu0 %1805
        %1807 = vadd.xlane.f32.xlu0 %v1552
        %v1808 = vpop.xlane.xlu0 %1807
        %1809 = vadd.xlane.f32.xlu0 %v1554
        %v1810 = vpop.xlane.xlu0 %1809
        %1811 = vadd.xlane.f32.xlu0 %v1556
        %v1812 = vpop.xlane.xlu0 %1811
        %1813 = vadd.xlane.f32.xlu0 %v1558
        %v1814 = vpop.xlane.xlu0 %1813
        %1815 = vadd.xlane.f32.xlu0 %v1560
        %v1816 = vpop.xlane.xlu0 %1815
        %1817 = vadd.xlane.f32.xlu0 %v1562
        %v1818 = vpop.xlane.xlu0 %1817
        %1819 = vadd.xlane.f32.xlu0 %v1564
        %v1820 = vpop.xlane.xlu0 %1819
        %1821 = vadd.xlane.f32.xlu0 %v1566
        %v1822 = vpop.xlane.xlu0 %1821
        %1823 = vadd.xlane.f32.xlu0 %v1568
        %v1824 = vpop.xlane.xlu0 %1823
        %1825 = vadd.xlane.f32.xlu0 %v1570
        %v1826 = vpop.xlane.xlu0 %1825
        %1827 = vadd.xlane.f32.xlu0 %v1572
        %v1828 = vpop.xlane.xlu0 %1827
        %1829 = vadd.xlane.f32.xlu0 %v1574
        %v1830 = vpop.xlane.xlu0 %1829
        %v1831 = vmul.f32 %v1320, %v770
        %v1832 = vmul.f32 %v1322, %v770
        %v1833 = vmul.f32 %v1324, %v770
        %v1834 = vmul.f32 %v1326, %v770
        %v1835 = vmul.f32 %v1328, %v770
        %v1836 = vmul.f32 %v1330, %v770
        %v1837 = vmul.f32 %v1332, %v770
        %v1838 = vmul.f32 %v1334, %v770
        %v1839 = vmul.f32 %v1336, %v770
        %v1840 = vmul.f32 %v1338, %v770
        %v1841 = vmul.f32 %v1340, %v770
        %v1842 = vmul.f32 %v1342, %v770
        %v1843 = vmul.f32 %v1344, %v770
        %v1844 = vmul.f32 %v1346, %v770
        %v1845 = vmul.f32 %v1348, %v770
        %v1846 = vmul.f32 %v1350, %v770
        %v1847 = vmul.f32 %v1352, %v774
        %v1848 = vmul.f32 %v1354, %v774
        %v1849 = vmul.f32 %v1356, %v774
        %v1850 = vmul.f32 %v1358, %v774
        %v1851 = vmul.f32 %v1360, %v774
        %v1852 = vmul.f32 %v1362, %v774
        %v1853 = vmul.f32 %v1364, %v774
        %v1854 = vmul.f32 %v1366, %v774
        %v1855 = vmul.f32 %v1368, %v774
        %v1856 = vmul.f32 %v1370, %v774
        %v1857 = vmul.f32 %v1372, %v774
        %v1858 = vmul.f32 %v1374, %v774
        %v1859 = vmul.f32 %v1376, %v774
        %v1860 = vmul.f32 %v1378, %v774
        %v1861 = vmul.f32 %v1380, %v774
        %v1862 = vmul.f32 %v1382, %v774
        %v1863 = vmul.f32 %v1384, %v778
        %v1864 = vmul.f32 %v1386, %v778
        %v1865 = vmul.f32 %v1388, %v778
        %v1866 = vmul.f32 %v1390, %v778
        %v1867 = vmul.f32 %v1392, %v778
        %v1868 = vmul.f32 %v1394, %v778
        %v1869 = vmul.f32 %v1396, %v778
        %v1870 = vmul.f32 %v1398, %v778
        %v1871 = vmul.f32 %v1400, %v778
        %v1872 = vmul.f32 %v1402, %v778
        %v1873 = vmul.f32 %v1404, %v778
        %v1874 = vmul.f32 %v1406, %v778
        %v1875 = vmul.f32 %v1408, %v778
        %v1876 = vmul.f32 %v1410, %v778
        %v1877 = vmul.f32 %v1412, %v778
        %v1878 = vmul.f32 %v1414, %v778
        %v1879 = vmul.f32 %v1416, %v782
        %v1880 = vmul.f32 %v1418, %v782
        %v1881 = vmul.f32 %v1420, %v782
        %v1882 = vmul.f32 %v1422, %v782
        %v1883 = vmul.f32 %v1424, %v782
        %v1884 = vmul.f32 %v1426, %v782
        %v1885 = vmul.f32 %v1428, %v782
        %v1886 = vmul.f32 %v1430, %v782
        %v1887 = vmul.f32 %v1432, %v782
        %v1888 = vmul.f32 %v1434, %v782
        %v1889 = vmul.f32 %v1436, %v782
        %v1890 = vmul.f32 %v1438, %v782
        %v1891 = vmul.f32 %v1440, %v782
        %v1892 = vmul.f32 %v1442, %v782
        %v1893 = vmul.f32 %v1444, %v782
        %v1894 = vmul.f32 %v1446, %v782
        %v1895 = vmul.f32 %v1448, %v786
        %v1896 = vmul.f32 %v1450, %v786
        %v1897 = vmul.f32 %v1452, %v786
        %v1898 = vmul.f32 %v1454, %v786
        %v1899 = vmul.f32 %v1456, %v786
        %v1900 = vmul.f32 %v1458, %v786
        %v1901 = vmul.f32 %v1460, %v786
        %v1902 = vmul.f32 %v1462, %v786
        %v1903 = vmul.f32 %v1464, %v786
        %v1904 = vmul.f32 %v1466, %v786
        %v1905 = vmul.f32 %v1468, %v786
        %v1906 = vmul.f32 %v1470, %v786
        %v1907 = vmul.f32 %v1472, %v786
        %v1908 = vmul.f32 %v1474, %v786
        %v1909 = vmul.f32 %v1476, %v786
        %v1910 = vmul.f32 %v1478, %v786
        %v1911 = vmul.f32 %v1480, %v790
        %v1912 = vmul.f32 %v1482, %v790
        %v1913 = vmul.f32 %v1484, %v790
        %v1914 = vmul.f32 %v1486, %v790
        %v1915 = vmul.f32 %v1488, %v790
        %v1916 = vmul.f32 %v1490, %v790
        %v1917 = vmul.f32 %v1492, %v790
        %v1918 = vmul.f32 %v1494, %v790
        %v1919 = vmul.f32 %v1496, %v790
        %v1920 = vmul.f32 %v1498, %v790
        %v1921 = vmul.f32 %v1500, %v790
        %v1922 = vmul.f32 %v1502, %v790
        %v1923 = vmul.f32 %v1504, %v790
        %v1924 = vmul.f32 %v1506, %v790
        %v1925 = vmul.f32 %v1508, %v790
        %v1926 = vmul.f32 %v1510, %v790
        %v1927 = vmul.f32 %v1512, %v794
        %v1928 = vmul.f32 %v1514, %v794
        %v1929 = vmul.f32 %v1516, %v794
        %v1930 = vmul.f32 %v1518, %v794
        %v1931 = vmul.f32 %v1520, %v794
        %v1932 = vmul.f32 %v1522, %v794
        %v1933 = vmul.f32 %v1524, %v794
        %v1934 = vmul.f32 %v1526, %v794
        %v1935 = vmul.f32 %v1528, %v794
        %v1936 = vmul.f32 %v1530, %v794
        %v1937 = vmul.f32 %v1532, %v794
        %v1938 = vmul.f32 %v1534, %v794
        %v1939 = vmul.f32 %v1536, %v794
        %v1940 = vmul.f32 %v1538, %v794
        %v1941 = vmul.f32 %v1540, %v794
        %v1942 = vmul.f32 %v1542, %v794
        %v1943 = vmul.f32 %v1544, %v798
        %v1944 = vmul.f32 %v1546, %v798
        %v1945 = vmul.f32 %v1548, %v798
        %v1946 = vmul.f32 %v1550, %v798
        %v1947 = vmul.f32 %v1552, %v798
        %v1948 = vmul.f32 %v1554, %v798
        %v1949 = vmul.f32 %v1556, %v798
        %v1950 = vmul.f32 %v1558, %v798
        %v1951 = vmul.f32 %v1560, %v798
        %v1952 = vmul.f32 %v1562, %v798
        %v1953 = vmul.f32 %v1564, %v798
        %v1954 = vmul.f32 %v1566, %v798
        %v1955 = vmul.f32 %v1568, %v798
        %v1956 = vmul.f32 %v1570, %v798
        %v1957 = vmul.f32 %v1572, %v798
        %v1958 = vmul.f32 %v1574, %v798
        %1959 = vadd.xlane.f32.xlu0 %v1831
        %v1960 = vpop.xlane.xlu0 %1959
        %1961 = vadd.xlane.f32.xlu0 %v1832
        %v1962 = vpop.xlane.xlu0 %1961
        %1963 = vadd.xlane.f32.xlu0 %v1833
        %v1964 = vpop.xlane.xlu0 %1963
        %1965 = vadd.xlane.f32.xlu0 %v1834
        %v1966 = vpop.xlane.xlu0 %1965
        %1967 = vadd.xlane.f32.xlu0 %v1835
        %v1968 = vpop.xlane.xlu0 %1967
        %1969 = vadd.xlane.f32.xlu0 %v1836
        %v1970 = vpop.xlane.xlu0 %1969
        %1971 = vadd.xlane.f32.xlu0 %v1837
        %v1972 = vpop.xlane.xlu0 %1971
        %1973 = vadd.xlane.f32.xlu0 %v1838
        %v1974 = vpop.xlane.xlu0 %1973
        %1975 = vadd.xlane.f32.xlu0 %v1839
        %v1976 = vpop.xlane.xlu0 %1975
        %1977 = vadd.xlane.f32.xlu0 %v1840
        %v1978 = vpop.xlane.xlu0 %1977
        %1979 = vadd.xlane.f32.xlu0 %v1841
        %v1980 = vpop.xlane.xlu0 %1979
        %1981 = vadd.xlane.f32.xlu0 %v1842
        %v1982 = vpop.xlane.xlu0 %1981
        %1983 = vadd.xlane.f32.xlu0 %v1843
        %v1984 = vpop.xlane.xlu0 %1983
        %1985 = vadd.xlane.f32.xlu0 %v1844
        %v1986 = vpop.xlane.xlu0 %1985
        %1987 = vadd.xlane.f32.xlu0 %v1845
        %v1988 = vpop.xlane.xlu0 %1987
        %1989 = vadd.xlane.f32.xlu0 %v1846
        %v1990 = vpop.xlane.xlu0 %1989
        %1991 = vadd.xlane.f32.xlu0 %v1847
        %v1992 = vpop.xlane.xlu0 %1991
        %1993 = vadd.xlane.f32.xlu0 %v1848
        %v1994 = vpop.xlane.xlu0 %1993
        %1995 = vadd.xlane.f32.xlu0 %v1849
        %v1996 = vpop.xlane.xlu0 %1995
        %1997 = vadd.xlane.f32.xlu0 %v1850
        %v1998 = vpop.xlane.xlu0 %1997
        %1999 = vadd.xlane.f32.xlu0 %v1851
        %v2000 = vpop.xlane.xlu0 %1999
        %2001 = vadd.xlane.f32.xlu0 %v1852
        %v2002 = vpop.xlane.xlu0 %2001
        %2003 = vadd.xlane.f32.xlu0 %v1853
        %v2004 = vpop.xlane.xlu0 %2003
        %2005 = vadd.xlane.f32.xlu0 %v1854
        %v2006 = vpop.xlane.xlu0 %2005
        %2007 = vadd.xlane.f32.xlu0 %v1855
        %v2008 = vpop.xlane.xlu0 %2007
        %2009 = vadd.xlane.f32.xlu0 %v1856
        %v2010 = vpop.xlane.xlu0 %2009
        %2011 = vadd.xlane.f32.xlu0 %v1857
        %v2012 = vpop.xlane.xlu0 %2011
        %2013 = vadd.xlane.f32.xlu0 %v1858
        %v2014 = vpop.xlane.xlu0 %2013
        %2015 = vadd.xlane.f32.xlu0 %v1859
        %v2016 = vpop.xlane.xlu0 %2015
        %2017 = vadd.xlane.f32.xlu0 %v1860
        %v2018 = vpop.xlane.xlu0 %2017
        %2019 = vadd.xlane.f32.xlu0 %v1861
        %v2020 = vpop.xlane.xlu0 %2019
        %2021 = vadd.xlane.f32.xlu0 %v1862
        %v2022 = vpop.xlane.xlu0 %2021
        %2023 = vadd.xlane.f32.xlu0 %v1863
        %v2024 = vpop.xlane.xlu0 %2023
        %2025 = vadd.xlane.f32.xlu0 %v1864
        %v2026 = vpop.xlane.xlu0 %2025
        %2027 = vadd.xlane.f32.xlu0 %v1865
        %v2028 = vpop.xlane.xlu0 %2027
        %2029 = vadd.xlane.f32.xlu0 %v1866
        %v2030 = vpop.xlane.xlu0 %2029
        %2031 = vadd.xlane.f32.xlu0 %v1867
        %v2032 = vpop.xlane.xlu0 %2031
        %2033 = vadd.xlane.f32.xlu0 %v1868
        %v2034 = vpop.xlane.xlu0 %2033
        %2035 = vadd.xlane.f32.xlu0 %v1869
        %v2036 = vpop.xlane.xlu0 %2035
        %2037 = vadd.xlane.f32.xlu0 %v1870
        %v2038 = vpop.xlane.xlu0 %2037
        %2039 = vadd.xlane.f32.xlu0 %v1871
        %v2040 = vpop.xlane.xlu0 %2039
        %2041 = vadd.xlane.f32.xlu0 %v1872
        %v2042 = vpop.xlane.xlu0 %2041
        %2043 = vadd.xlane.f32.xlu0 %v1873
        %v2044 = vpop.xlane.xlu0 %2043
        %2045 = vadd.xlane.f32.xlu0 %v1874
        %v2046 = vpop.xlane.xlu0 %2045
        %2047 = vadd.xlane.f32.xlu0 %v1875
        %v2048 = vpop.xlane.xlu0 %2047
        %2049 = vadd.xlane.f32.xlu0 %v1876
        %v2050 = vpop.xlane.xlu0 %2049
        %2051 = vadd.xlane.f32.xlu0 %v1877
        %v2052 = vpop.xlane.xlu0 %2051
        %2053 = vadd.xlane.f32.xlu0 %v1878
        %v2054 = vpop.xlane.xlu0 %2053
        %2055 = vadd.xlane.f32.xlu0 %v1879
        %v2056 = vpop.xlane.xlu0 %2055
        %2057 = vadd.xlane.f32.xlu0 %v1880
        %v2058 = vpop.xlane.xlu0 %2057
        %2059 = vadd.xlane.f32.xlu0 %v1881
        %v2060 = vpop.xlane.xlu0 %2059
        %2061 = vadd.xlane.f32.xlu0 %v1882
        %v2062 = vpop.xlane.xlu0 %2061
        %2063 = vadd.xlane.f32.xlu0 %v1883
        %v2064 = vpop.xlane.xlu0 %2063
        %2065 = vadd.xlane.f32.xlu0 %v1884
        %v2066 = vpop.xlane.xlu0 %2065
        %2067 = vadd.xlane.f32.xlu0 %v1885
        %v2068 = vpop.xlane.xlu0 %2067
        %2069 = vadd.xlane.f32.xlu0 %v1886
        %v2070 = vpop.xlane.xlu0 %2069
        %2071 = vadd.xlane.f32.xlu0 %v1887
        %v2072 = vpop.xlane.xlu0 %2071
        %2073 = vadd.xlane.f32.xlu0 %v1888
        %v2074 = vpop.xlane.xlu0 %2073
        %2075 = vadd.xlane.f32.xlu0 %v1889
        %v2076 = vpop.xlane.xlu0 %2075
        %2077 = vadd.xlane.f32.xlu0 %v1890
        %v2078 = vpop.xlane.xlu0 %2077
        %2079 = vadd.xlane.f32.xlu0 %v1891
        %v2080 = vpop.xlane.xlu0 %2079
        %2081 = vadd.xlane.f32.xlu0 %v1892
        %v2082 = vpop.xlane.xlu0 %2081
        %2083 = vadd.xlane.f32.xlu0 %v1893
        %v2084 = vpop.xlane.xlu0 %2083
        %2085 = vadd.xlane.f32.xlu0 %v1894
        %v2086 = vpop.xlane.xlu0 %2085
        %2087 = vadd.xlane.f32.xlu0 %v1895
        %v2088 = vpop.xlane.xlu0 %2087
        %2089 = vadd.xlane.f32.xlu0 %v1896
        %v2090 = vpop.xlane.xlu0 %2089
        %2091 = vadd.xlane.f32.xlu0 %v1897
        %v2092 = vpop.xlane.xlu0 %2091
        %2093 = vadd.xlane.f32.xlu0 %v1898
        %v2094 = vpop.xlane.xlu0 %2093
        %2095 = vadd.xlane.f32.xlu0 %v1899
        %v2096 = vpop.xlane.xlu0 %2095
        %2097 = vadd.xlane.f32.xlu0 %v1900
        %v2098 = vpop.xlane.xlu0 %2097
        %2099 = vadd.xlane.f32.xlu0 %v1901
        %v2100 = vpop.xlane.xlu0 %2099
        %2101 = vadd.xlane.f32.xlu0 %v1902
        %v2102 = vpop.xlane.xlu0 %2101
        %2103 = vadd.xlane.f32.xlu0 %v1903
        %v2104 = vpop.xlane.xlu0 %2103
        %2105 = vadd.xlane.f32.xlu0 %v1904
        %v2106 = vpop.xlane.xlu0 %2105
        %2107 = vadd.xlane.f32.xlu0 %v1905
        %v2108 = vpop.xlane.xlu0 %2107
        %2109 = vadd.xlane.f32.xlu0 %v1906
        %v2110 = vpop.xlane.xlu0 %2109
        %2111 = vadd.xlane.f32.xlu0 %v1907
        %v2112 = vpop.xlane.xlu0 %2111
        %2113 = vadd.xlane.f32.xlu0 %v1908
        %v2114 = vpop.xlane.xlu0 %2113
        %2115 = vadd.xlane.f32.xlu0 %v1909
        %v2116 = vpop.xlane.xlu0 %2115
        %2117 = vadd.xlane.f32.xlu0 %v1910
        %v2118 = vpop.xlane.xlu0 %2117
        %2119 = vadd.xlane.f32.xlu0 %v1911
        %v2120 = vpop.xlane.xlu0 %2119
        %2121 = vadd.xlane.f32.xlu0 %v1912
        %v2122 = vpop.xlane.xlu0 %2121
        %2123 = vadd.xlane.f32.xlu0 %v1913
        %v2124 = vpop.xlane.xlu0 %2123
        %2125 = vadd.xlane.f32.xlu0 %v1914
        %v2126 = vpop.xlane.xlu0 %2125
        %2127 = vadd.xlane.f32.xlu0 %v1915
        %v2128 = vpop.xlane.xlu0 %2127
        %2129 = vadd.xlane.f32.xlu0 %v1916
        %v2130 = vpop.xlane.xlu0 %2129
        %2131 = vadd.xlane.f32.xlu0 %v1917
        %v2132 = vpop.xlane.xlu0 %2131
        %2133 = vadd.xlane.f32.xlu0 %v1918
        %v2134 = vpop.xlane.xlu0 %2133
        %2135 = vadd.xlane.f32.xlu0 %v1919
        %v2136 = vpop.xlane.xlu0 %2135
        %2137 = vadd.xlane.f32.xlu0 %v1920
        %v2138 = vpop.xlane.xlu0 %2137
        %2139 = vadd.xlane.f32.xlu0 %v1921
        %v2140 = vpop.xlane.xlu0 %2139
        %2141 = vadd.xlane.f32.xlu0 %v1922
        %v2142 = vpop.xlane.xlu0 %2141
        %2143 = vadd.xlane.f32.xlu0 %v1923
        %v2144 = vpop.xlane.xlu0 %2143
        %2145 = vadd.xlane.f32.xlu0 %v1924
        %v2146 = vpop.xlane.xlu0 %2145
        %2147 = vadd.xlane.f32.xlu0 %v1925
        %v2148 = vpop.xlane.xlu0 %2147
        %2149 = vadd.xlane.f32.xlu0 %v1926
        %v2150 = vpop.xlane.xlu0 %2149
        %2151 = vadd.xlane.f32.xlu0 %v1927
        %v2152 = vpop.xlane.xlu0 %2151
        %2153 = vadd.xlane.f32.xlu0 %v1928
        %v2154 = vpop.xlane.xlu0 %2153
        %2155 = vadd.xlane.f32.xlu0 %v1929
        %v2156 = vpop.xlane.xlu0 %2155
        %2157 = vadd.xlane.f32.xlu0 %v1930
        %v2158 = vpop.xlane.xlu0 %2157
        %2159 = vadd.xlane.f32.xlu0 %v1931
        %v2160 = vpop.xlane.xlu0 %2159
        %2161 = vadd.xlane.f32.xlu0 %v1932
        %v2162 = vpop.xlane.xlu0 %2161
        %2163 = vadd.xlane.f32.xlu0 %v1933
        %v2164 = vpop.xlane.xlu0 %2163
        %2165 = vadd.xlane.f32.xlu0 %v1934
        %v2166 = vpop.xlane.xlu0 %2165
        %2167 = vadd.xlane.f32.xlu0 %v1935
        %v2168 = vpop.xlane.xlu0 %2167
        %2169 = vadd.xlane.f32.xlu0 %v1936
        %v2170 = vpop.xlane.xlu0 %2169
        %2171 = vadd.xlane.f32.xlu0 %v1937
        %v2172 = vpop.xlane.xlu0 %2171
        %2173 = vadd.xlane.f32.xlu0 %v1938
        %v2174 = vpop.xlane.xlu0 %2173
        %2175 = vadd.xlane.f32.xlu0 %v1939
        %v2176 = vpop.xlane.xlu0 %2175
        %2177 = vadd.xlane.f32.xlu0 %v1940
        %v2178 = vpop.xlane.xlu0 %2177
        %2179 = vadd.xlane.f32.xlu0 %v1941
        %v2180 = vpop.xlane.xlu0 %2179
        %2181 = vadd.xlane.f32.xlu0 %v1942
        %v2182 = vpop.xlane.xlu0 %2181
        %2183 = vadd.xlane.f32.xlu0 %v1943
        %v2184 = vpop.xlane.xlu0 %2183
        %2185 = vadd.xlane.f32.xlu0 %v1944
        %v2186 = vpop.xlane.xlu0 %2185
        %2187 = vadd.xlane.f32.xlu0 %v1945
        %v2188 = vpop.xlane.xlu0 %2187
        %2189 = vadd.xlane.f32.xlu0 %v1946
        %v2190 = vpop.xlane.xlu0 %2189
        %2191 = vadd.xlane.f32.xlu0 %v1947
        %v2192 = vpop.xlane.xlu0 %2191
        %2193 = vadd.xlane.f32.xlu0 %v1948
        %v2194 = vpop.xlane.xlu0 %2193
        %2195 = vadd.xlane.f32.xlu0 %v1949
        %v2196 = vpop.xlane.xlu0 %2195
        %2197 = vadd.xlane.f32.xlu0 %v1950
        %v2198 = vpop.xlane.xlu0 %2197
        %2199 = vadd.xlane.f32.xlu0 %v1951
        %v2200 = vpop.xlane.xlu0 %2199
        %2201 = vadd.xlane.f32.xlu0 %v1952
        %v2202 = vpop.xlane.xlu0 %2201
        %2203 = vadd.xlane.f32.xlu0 %v1953
        %v2204 = vpop.xlane.xlu0 %2203
        %2205 = vadd.xlane.f32.xlu0 %v1954
        %v2206 = vpop.xlane.xlu0 %2205
        %2207 = vadd.xlane.f32.xlu0 %v1955
        %v2208 = vpop.xlane.xlu0 %2207
        %2209 = vadd.xlane.f32.xlu0 %v1956
        %v2210 = vpop.xlane.xlu0 %2209
        %2211 = vadd.xlane.f32.xlu0 %v1957
        %v2212 = vpop.xlane.xlu0 %2211
        %2213 = vadd.xlane.f32.xlu0 %v1958
        %v2214 = vpop.xlane.xlu0 %2213
        %v2215 = vrcp.pop %v1576
        %v2216 = vmul.f32 %v1960, %v2215
        %v2217 = vrcp.pop %v1578
        %v2218 = vmul.f32 %v1962, %v2217
        %v2219 = vrcp.pop %v1580
        %v2220 = vmul.f32 %v1964, %v2219
        %v2221 = vrcp.pop %v1582
        %v2222 = vmul.f32 %v1966, %v2221
        %v2223 = vrcp.pop %v1584
        %v2224 = vmul.f32 %v1968, %v2223
        %v2225 = vrcp.pop %v1586
        %v2226 = vmul.f32 %v1970, %v2225
        %v2227 = vrcp.pop %v1588
        %v2228 = vmul.f32 %v1972, %v2227
        %v2229 = vrcp.pop %v1590
        %v2230 = vmul.f32 %v1974, %v2229
        %v2231 = vrcp.pop %v1592
        %v2232 = vmul.f32 %v1976, %v2231
        %v2233 = vrcp.pop %v1594
        %v2234 = vmul.f32 %v1978, %v2233
        %v2235 = vrcp.pop %v1596
        %v2236 = vmul.f32 %v1980, %v2235
        %v2237 = vrcp.pop %v1598
        %v2238 = vmul.f32 %v1982, %v2237
        %v2239 = vrcp.pop %v1600
        %v2240 = vmul.f32 %v1984, %v2239
        %v2241 = vrcp.pop %v1602
        %v2242 = vmul.f32 %v1986, %v2241
        %v2243 = vrcp.pop %v1604
        %v2244 = vmul.f32 %v1988, %v2243
        %v2245 = vrcp.pop %v1606
        %v2246 = vmul.f32 %v1990, %v2245
        %v2247 = vrcp.pop %v1608
        %v2248 = vmul.f32 %v1992, %v2247
        %v2249 = vrcp.pop %v1610
        %v2250 = vmul.f32 %v1994, %v2249
        %v2251 = vrcp.pop %v1612
        %v2252 = vmul.f32 %v1996, %v2251
        %v2253 = vrcp.pop %v1614
        %v2254 = vmul.f32 %v1998, %v2253
        %v2255 = vrcp.pop %v1616
        %v2256 = vmul.f32 %v2000, %v2255
        %v2257 = vrcp.pop %v1618
        %v2258 = vmul.f32 %v2002, %v2257
        %v2259 = vrcp.pop %v1620
        %v2260 = vmul.f32 %v2004, %v2259
        %v2261 = vrcp.pop %v1622
        %v2262 = vmul.f32 %v2006, %v2261
        %v2263 = vrcp.pop %v1624
        %v2264 = vmul.f32 %v2008, %v2263
        %v2265 = vrcp.pop %v1626
        %v2266 = vmul.f32 %v2010, %v2265
        %v2267 = vrcp.pop %v1628
        %v2268 = vmul.f32 %v2012, %v2267
        %v2269 = vrcp.pop %v1630
        %v2270 = vmul.f32 %v2014, %v2269
        %v2271 = vrcp.pop %v1632
        %v2272 = vmul.f32 %v2016, %v2271
        %v2273 = vrcp.pop %v1634
        %v2274 = vmul.f32 %v2018, %v2273
        %v2275 = vrcp.pop %v1636
        %v2276 = vmul.f32 %v2020, %v2275
        %v2277 = vrcp.pop %v1638
        %v2278 = vmul.f32 %v2022, %v2277
        %v2279 = vrcp.pop %v1640
        %v2280 = vmul.f32 %v2024, %v2279
        %v2281 = vrcp.pop %v1642
        %v2282 = vmul.f32 %v2026, %v2281
        %v2283 = vrcp.pop %v1644
        %v2284 = vmul.f32 %v2028, %v2283
        %v2285 = vrcp.pop %v1646
        %v2286 = vmul.f32 %v2030, %v2285
        %v2287 = vrcp.pop %v1648
        %v2288 = vmul.f32 %v2032, %v2287
        %v2289 = vrcp.pop %v1650
        %v2290 = vmul.f32 %v2034, %v2289
        %v2291 = vrcp.pop %v1652
        %v2292 = vmul.f32 %v2036, %v2291
        %v2293 = vrcp.pop %v1654
        %v2294 = vmul.f32 %v2038, %v2293
        %v2295 = vrcp.pop %v1656
        %v2296 = vmul.f32 %v2040, %v2295
        %v2297 = vrcp.pop %v1658
        %v2298 = vmul.f32 %v2042, %v2297
        %v2299 = vrcp.pop %v1660
        %v2300 = vmul.f32 %v2044, %v2299
        %v2301 = vrcp.pop %v1662
        %v2302 = vmul.f32 %v2046, %v2301
        %v2303 = vrcp.pop %v1664
        %v2304 = vmul.f32 %v2048, %v2303
        %v2305 = vrcp.pop %v1666
        %v2306 = vmul.f32 %v2050, %v2305
        %v2307 = vrcp.pop %v1668
        %v2308 = vmul.f32 %v2052, %v2307
        %v2309 = vrcp.pop %v1670
        %v2310 = vmul.f32 %v2054, %v2309
        %v2311 = vrcp.pop %v1672
        %v2312 = vmul.f32 %v2056, %v2311
        %v2313 = vrcp.pop %v1674
        %v2314 = vmul.f32 %v2058, %v2313
        %v2315 = vrcp.pop %v1676
        %v2316 = vmul.f32 %v2060, %v2315
        %v2317 = vrcp.pop %v1678
        %v2318 = vmul.f32 %v2062, %v2317
        %v2319 = vrcp.pop %v1680
        %v2320 = vmul.f32 %v2064, %v2319
        %v2321 = vrcp.pop %v1682
        %v2322 = vmul.f32 %v2066, %v2321
        %v2323 = vrcp.pop %v1684
        %v2324 = vmul.f32 %v2068, %v2323
        %v2325 = vrcp.pop %v1686
        %v2326 = vmul.f32 %v2070, %v2325
        %v2327 = vrcp.pop %v1688
        %v2328 = vmul.f32 %v2072, %v2327
        %v2329 = vrcp.pop %v1690
        %v2330 = vmul.f32 %v2074, %v2329
        %v2331 = vrcp.pop %v1692
        %v2332 = vmul.f32 %v2076, %v2331
        %v2333 = vrcp.pop %v1694
        %v2334 = vmul.f32 %v2078, %v2333
        %v2335 = vrcp.pop %v1696
        %v2336 = vmul.f32 %v2080, %v2335
        %v2337 = vrcp.pop %v1698
        %v2338 = vmul.f32 %v2082, %v2337
        %v2339 = vrcp.pop %v1700
        %v2340 = vmul.f32 %v2084, %v2339
        %v2341 = vrcp.pop %v1702
        %v2342 = vmul.f32 %v2086, %v2341
        %v2343 = vrcp.pop %v1704
        %v2344 = vmul.f32 %v2088, %v2343
        %v2345 = vrcp.pop %v1706
        %v2346 = vmul.f32 %v2090, %v2345
        %v2347 = vrcp.pop %v1708
        %v2348 = vmul.f32 %v2092, %v2347
        %v2349 = vrcp.pop %v1710
        %v2350 = vmul.f32 %v2094, %v2349
        %v2351 = vrcp.pop %v1712
        %v2352 = vmul.f32 %v2096, %v2351
        %v2353 = vrcp.pop %v1714
        %v2354 = vmul.f32 %v2098, %v2353
        %v2355 = vrcp.pop %v1716
        %v2356 = vmul.f32 %v2100, %v2355
        %v2357 = vrcp.pop %v1718
        %v2358 = vmul.f32 %v2102, %v2357
        %v2359 = vrcp.pop %v1720
        %v2360 = vmul.f32 %v2104, %v2359
        %v2361 = vrcp.pop %v1722
        %v2362 = vmul.f32 %v2106, %v2361
        %v2363 = vrcp.pop %v1724
        %v2364 = vmul.f32 %v2108, %v2363
        %v2365 = vrcp.pop %v1726
        %v2366 = vmul.f32 %v2110, %v2365
        %v2367 = vrcp.pop %v1728
        %v2368 = vmul.f32 %v2112, %v2367
        %v2369 = vrcp.pop %v1730
        %v2370 = vmul.f32 %v2114, %v2369
        %v2371 = vrcp.pop %v1732
        %v2372 = vmul.f32 %v2116, %v2371
        %v2373 = vrcp.pop %v1734
        %v2374 = vmul.f32 %v2118, %v2373
        %v2375 = vrcp.pop %v1736
        %v2376 = vmul.f32 %v2120, %v2375
        %v2377 = vrcp.pop %v1738
        %v2378 = vmul.f32 %v2122, %v2377
        %v2379 = vrcp.pop %v1740
        %v2380 = vmul.f32 %v2124, %v2379
        %v2381 = vrcp.pop %v1742
        %v2382 = vmul.f32 %v2126, %v2381
        %v2383 = vrcp.pop %v1744
        %v2384 = vmul.f32 %v2128, %v2383
        %v2385 = vrcp.pop %v1746
        %v2386 = vmul.f32 %v2130, %v2385
        %v2387 = vrcp.pop %v1748
        %v2388 = vmul.f32 %v2132, %v2387
        %v2389 = vrcp.pop %v1750
        %v2390 = vmul.f32 %v2134, %v2389
        %v2391 = vrcp.pop %v1752
        %v2392 = vmul.f32 %v2136, %v2391
        %v2393 = vrcp.pop %v1754
        %v2394 = vmul.f32 %v2138, %v2393
        %v2395 = vrcp.pop %v1756
        %v2396 = vmul.f32 %v2140, %v2395
        %v2397 = vrcp.pop %v1758
        %v2398 = vmul.f32 %v2142, %v2397
        %v2399 = vrcp.pop %v1760
        %v2400 = vmul.f32 %v2144, %v2399
        %v2401 = vrcp.pop %v1762
        %v2402 = vmul.f32 %v2146, %v2401
        %v2403 = vrcp.pop %v1764
        %v2404 = vmul.f32 %v2148, %v2403
        %v2405 = vrcp.pop %v1766
        %v2406 = vmul.f32 %v2150, %v2405
        %v2407 = vrcp.pop %v1768
        %v2408 = vmul.f32 %v2152, %v2407
        %v2409 = vrcp.pop %v1770
        %v2410 = vmul.f32 %v2154, %v2409
        %v2411 = vrcp.pop %v1772
        %v2412 = vmul.f32 %v2156, %v2411
        %v2413 = vrcp.pop %v1774
        %v2414 = vmul.f32 %v2158, %v2413
        %v2415 = vrcp.pop %v1776
        %v2416 = vmul.f32 %v2160, %v2415
        %v2417 = vrcp.pop %v1778
        %v2418 = vmul.f32 %v2162, %v2417
        %v2419 = vrcp.pop %v1780
        %v2420 = vmul.f32 %v2164, %v2419
        %v2421 = vrcp.pop %v1782
        %v2422 = vmul.f32 %v2166, %v2421
        %v2423 = vrcp.pop %v1784
        %v2424 = vmul.f32 %v2168, %v2423
        %v2425 = vrcp.pop %v1786
        %v2426 = vmul.f32 %v2170, %v2425
        %v2427 = vrcp.pop %v1788
        %v2428 = vmul.f32 %v2172, %v2427
        %v2429 = vrcp.pop %v1790
        %v2430 = vmul.f32 %v2174, %v2429
        %v2431 = vrcp.pop %v1792
        %v2432 = vmul.f32 %v2176, %v2431
        %v2433 = vrcp.pop %v1794
        %v2434 = vmul.f32 %v2178, %v2433
        %v2435 = vrcp.pop %v1796
        %v2436 = vmul.f32 %v2180, %v2435
        %v2437 = vrcp.pop %v1798
        %v2438 = vmul.f32 %v2182, %v2437
        %v2439 = vrcp.pop %v1800
        %v2440 = vmul.f32 %v2184, %v2439
        %v2441 = vrcp.pop %v1802
        %v2442 = vmul.f32 %v2186, %v2441
        %v2443 = vrcp.pop %v1804
        %v2444 = vmul.f32 %v2188, %v2443
        %v2445 = vrcp.pop %v1806
        %v2446 = vmul.f32 %v2190, %v2445
        %v2447 = vrcp.pop %v1808
        %v2448 = vmul.f32 %v2192, %v2447
        %v2449 = vrcp.pop %v1810
        %v2450 = vmul.f32 %v2194, %v2449
        %v2451 = vrcp.pop %v1812
        %v2452 = vmul.f32 %v2196, %v2451
        %v2453 = vrcp.pop %v1814
        %v2454 = vmul.f32 %v2198, %v2453
        %v2455 = vrcp.pop %v1816
        %v2456 = vmul.f32 %v2200, %v2455
        %v2457 = vrcp.pop %v1818
        %v2458 = vmul.f32 %v2202, %v2457
        %v2459 = vrcp.pop %v1820
        %v2460 = vmul.f32 %v2204, %v2459
        %v2461 = vrcp.pop %v1822
        %v2462 = vmul.f32 %v2206, %v2461
        %v2463 = vrcp.pop %v1824
        %v2464 = vmul.f32 %v2208, %v2463
        %v2465 = vrcp.pop %v1826
        %v2466 = vmul.f32 %v2210, %v2465
        %v2467 = vrcp.pop %v1828
        %v2468 = vmul.f32 %v2212, %v2467
        %v2469 = vrcp.pop %v1830
        %v2470 = vmul.f32 %v2214, %v2469
        %s2471 = smul.f32 %s175, %s173
        %v2472 = vstv %s2471
        %v2473 = vmul.f32 %v2472, %v2216
        %v2474 = vmul.f32 %v2472, %v2218
        %v2475 = vmul.f32 %v2472, %v2220
        %v2476 = vmul.f32 %v2472, %v2222
        %v2477 = vmul.f32 %v2472, %v2224
        %v2478 = vmul.f32 %v2472, %v2226
        %v2479 = vmul.f32 %v2472, %v2228
        %v2480 = vmul.f32 %v2472, %v2230
        %v2481 = vmul.f32 %v2472, %v2232
        %v2482 = vmul.f32 %v2472, %v2234
        %v2483 = vmul.f32 %v2472, %v2236
        %v2484 = vmul.f32 %v2472, %v2238
        %v2485 = vmul.f32 %v2472, %v2240
        %v2486 = vmul.f32 %v2472, %v2242
        %v2487 = vmul.f32 %v2472, %v2244
        %v2488 = vmul.f32 %v2472, %v2246
        %v2489 = vmul.f32 %v2472, %v2248
        %v2490 = vmul.f32 %v2472, %v2250
        %v2491 = vmul.f32 %v2472, %v2252
        %v2492 = vmul.f32 %v2472, %v2254
        %v2493 = vmul.f32 %v2472, %v2256
        %v2494 = vmul.f32 %v2472, %v2258
        %v2495 = vmul.f32 %v2472, %v2260
        %v2496 = vmul.f32 %v2472, %v2262
        %v2497 = vmul.f32 %v2472, %v2264
        %v2498 = vmul.f32 %v2472, %v2266
        %v2499 = vmul.f32 %v2472, %v2268
        %v2500 = vmul.f32 %v2472, %v2270
        %v2501 = vmul.f32 %v2472, %v2272
        %v2502 = vmul.f32 %v2472, %v2274
        %v2503 = vmul.f32 %v2472, %v2276
        %v2504 = vmul.f32 %v2472, %v2278
        %v2505 = vmul.f32 %v2472, %v2280
        %v2506 = vmul.f32 %v2472, %v2282
        %v2507 = vmul.f32 %v2472, %v2284
        %v2508 = vmul.f32 %v2472, %v2286
        %v2509 = vmul.f32 %v2472, %v2288
        %v2510 = vmul.f32 %v2472, %v2290
        %v2511 = vmul.f32 %v2472, %v2292
        %v2512 = vmul.f32 %v2472, %v2294
        %v2513 = vmul.f32 %v2472, %v2296
        %v2514 = vmul.f32 %v2472, %v2298
        %v2515 = vmul.f32 %v2472, %v2300
        %v2516 = vmul.f32 %v2472, %v2302
        %v2517 = vmul.f32 %v2472, %v2304
        %v2518 = vmul.f32 %v2472, %v2306
        %v2519 = vmul.f32 %v2472, %v2308
        %v2520 = vmul.f32 %v2472, %v2310
        %v2521 = vmul.f32 %v2472, %v2312
        %v2522 = vmul.f32 %v2472, %v2314
        %v2523 = vmul.f32 %v2472, %v2316
        %v2524 = vmul.f32 %v2472, %v2318
        %v2525 = vmul.f32 %v2472, %v2320
        %v2526 = vmul.f32 %v2472, %v2322
        %v2527 = vmul.f32 %v2472, %v2324
        %v2528 = vmul.f32 %v2472, %v2326
        %v2529 = vmul.f32 %v2472, %v2328
        %v2530 = vmul.f32 %v2472, %v2330
        %v2531 = vmul.f32 %v2472, %v2332
        %v2532 = vmul.f32 %v2472, %v2334
        %v2533 = vmul.f32 %v2472, %v2336
        %v2534 = vmul.f32 %v2472, %v2338
        %v2535 = vmul.f32 %v2472, %v2340
        %v2536 = vmul.f32 %v2472, %v2342
        %v2537 = vmul.f32 %v2472, %v2344
        %v2538 = vmul.f32 %v2472, %v2346
        %v2539 = vmul.f32 %v2472, %v2348
        %v2540 = vmul.f32 %v2472, %v2350
        %v2541 = vmul.f32 %v2472, %v2352
        %v2542 = vmul.f32 %v2472, %v2354
        %v2543 = vmul.f32 %v2472, %v2356
        %v2544 = vmul.f32 %v2472, %v2358
        %v2545 = vmul.f32 %v2472, %v2360
        %v2546 = vmul.f32 %v2472, %v2362
        %v2547 = vmul.f32 %v2472, %v2364
        %v2548 = vmul.f32 %v2472, %v2366
        %v2549 = vmul.f32 %v2472, %v2368
        %v2550 = vmul.f32 %v2472, %v2370
        %v2551 = vmul.f32 %v2472, %v2372
        %v2552 = vmul.f32 %v2472, %v2374
        %v2553 = vmul.f32 %v2472, %v2376
        %v2554 = vmul.f32 %v2472, %v2378
        %v2555 = vmul.f32 %v2472, %v2380
        %v2556 = vmul.f32 %v2472, %v2382
        %v2557 = vmul.f32 %v2472, %v2384
        %v2558 = vmul.f32 %v2472, %v2386
        %v2559 = vmul.f32 %v2472, %v2388
        %v2560 = vmul.f32 %v2472, %v2390
        %v2561 = vmul.f32 %v2472, %v2392
        %v2562 = vmul.f32 %v2472, %v2394
        %v2563 = vmul.f32 %v2472, %v2396
        %v2564 = vmul.f32 %v2472, %v2398
        %v2565 = vmul.f32 %v2472, %v2400
        %v2566 = vmul.f32 %v2472, %v2402
        %v2567 = vmul.f32 %v2472, %v2404
        %v2568 = vmul.f32 %v2472, %v2406
        %v2569 = vmul.f32 %v2472, %v2408
        %v2570 = vmul.f32 %v2472, %v2410
        %v2571 = vmul.f32 %v2472, %v2412
        %v2572 = vmul.f32 %v2472, %v2414
        %v2573 = vmul.f32 %v2472, %v2416
        %v2574 = vmul.f32 %v2472, %v2418
        %v2575 = vmul.f32 %v2472, %v2420
        %v2576 = vmul.f32 %v2472, %v2422
        %v2577 = vmul.f32 %v2472, %v2424
        %v2578 = vmul.f32 %v2472, %v2426
        %v2579 = vmul.f32 %v2472, %v2428
        %v2580 = vmul.f32 %v2472, %v2430
        %v2581 = vmul.f32 %v2472, %v2432
        %v2582 = vmul.f32 %v2472, %v2434
        %v2583 = vmul.f32 %v2472, %v2436
        %v2584 = vmul.f32 %v2472, %v2438
        %v2585 = vmul.f32 %v2472, %v2440
        %v2586 = vmul.f32 %v2472, %v2442
        %v2587 = vmul.f32 %v2472, %v2444
        %v2588 = vmul.f32 %v2472, %v2446
        %v2589 = vmul.f32 %v2472, %v2448
        %v2590 = vmul.f32 %v2472, %v2450
        %v2591 = vmul.f32 %v2472, %v2452
        %v2592 = vmul.f32 %v2472, %v2454
        %v2593 = vmul.f32 %v2472, %v2456
        %v2594 = vmul.f32 %v2472, %v2458
        %v2595 = vmul.f32 %v2472, %v2460
        %v2596 = vmul.f32 %v2472, %v2462
        %v2597 = vmul.f32 %v2472, %v2464
        %v2598 = vmul.f32 %v2472, %v2466
        %v2599 = vmul.f32 %v2472, %v2468
        %v2600 = vmul.f32 %v2472, %v2470
        %s2601 = smul.f32 %s175, %s174
        %v2602 = vstv %s2601
        %v2603 = vadd.f32 %v2473, %v2602
        %v2604 = vadd.f32 %v2474, %v2602
        %v2605 = vadd.f32 %v2475, %v2602
        %v2606 = vadd.f32 %v2476, %v2602
        %v2607 = vadd.f32 %v2477, %v2602
        %v2608 = vadd.f32 %v2478, %v2602
        %v2609 = vadd.f32 %v2479, %v2602
        %v2610 = vadd.f32 %v2480, %v2602
        %v2611 = vadd.f32 %v2481, %v2602
        %v2612 = vadd.f32 %v2482, %v2602
        %v2613 = vadd.f32 %v2483, %v2602
        %v2614 = vadd.f32 %v2484, %v2602
        %v2615 = vadd.f32 %v2485, %v2602
        %v2616 = vadd.f32 %v2486, %v2602
        %v2617 = vadd.f32 %v2487, %v2602
        %v2618 = vadd.f32 %v2488, %v2602
        %v2619 = vadd.f32 %v2489, %v2602
        %v2620 = vadd.f32 %v2490, %v2602
        %v2621 = vadd.f32 %v2491, %v2602
        %v2622 = vadd.f32 %v2492, %v2602
        %v2623 = vadd.f32 %v2493, %v2602
        %v2624 = vadd.f32 %v2494, %v2602
        %v2625 = vadd.f32 %v2495, %v2602
        %v2626 = vadd.f32 %v2496, %v2602
        %v2627 = vadd.f32 %v2497, %v2602
        %v2628 = vadd.f32 %v2498, %v2602
        %v2629 = vadd.f32 %v2499, %v2602
        %v2630 = vadd.f32 %v2500, %v2602
        %v2631 = vadd.f32 %v2501, %v2602
        %v2632 = vadd.f32 %v2502, %v2602
        %v2633 = vadd.f32 %v2503, %v2602
        %v2634 = vadd.f32 %v2504, %v2602
        %v2635 = vadd.f32 %v2505, %v2602
        %v2636 = vadd.f32 %v2506, %v2602
        %v2637 = vadd.f32 %v2507, %v2602
        %v2638 = vadd.f32 %v2508, %v2602
        %v2639 = vadd.f32 %v2509, %v2602
        %v2640 = vadd.f32 %v2510, %v2602
        %v2641 = vadd.f32 %v2511, %v2602
        %v2642 = vadd.f32 %v2512, %v2602
        %v2643 = vadd.f32 %v2513, %v2602
        %v2644 = vadd.f32 %v2514, %v2602
        %v2645 = vadd.f32 %v2515, %v2602
        %v2646 = vadd.f32 %v2516, %v2602
        %v2647 = vadd.f32 %v2517, %v2602
        %v2648 = vadd.f32 %v2518, %v2602
        %v2649 = vadd.f32 %v2519, %v2602
        %v2650 = vadd.f32 %v2520, %v2602
        %v2651 = vadd.f32 %v2521, %v2602
        %v2652 = vadd.f32 %v2522, %v2602
        %v2653 = vadd.f32 %v2523, %v2602
        %v2654 = vadd.f32 %v2524, %v2602
        %v2655 = vadd.f32 %v2525, %v2602
        %v2656 = vadd.f32 %v2526, %v2602
        %v2657 = vadd.f32 %v2527, %v2602
        %v2658 = vadd.f32 %v2528, %v2602
        %v2659 = vadd.f32 %v2529, %v2602
        %v2660 = vadd.f32 %v2530, %v2602
        %v2661 = vadd.f32 %v2531, %v2602
        %v2662 = vadd.f32 %v2532, %v2602
        %v2663 = vadd.f32 %v2533, %v2602
        %v2664 = vadd.f32 %v2534, %v2602
        %v2665 = vadd.f32 %v2535, %v2602
        %v2666 = vadd.f32 %v2536, %v2602
        %v2667 = vadd.f32 %v2537, %v2602
        %v2668 = vadd.f32 %v2538, %v2602
        %v2669 = vadd.f32 %v2539, %v2602
        %v2670 = vadd.f32 %v2540, %v2602
        %v2671 = vadd.f32 %v2541, %v2602
        %v2672 = vadd.f32 %v2542, %v2602
        %v2673 = vadd.f32 %v2543, %v2602
        %v2674 = vadd.f32 %v2544, %v2602
        %v2675 = vadd.f32 %v2545, %v2602
        %v2676 = vadd.f32 %v2546, %v2602
        %v2677 = vadd.f32 %v2547, %v2602
        %v2678 = vadd.f32 %v2548, %v2602
        %v2679 = vadd.f32 %v2549, %v2602
        %v2680 = vadd.f32 %v2550, %v2602
        %v2681 = vadd.f32 %v2551, %v2602
        %v2682 = vadd.f32 %v2552, %v2602
        %v2683 = vadd.f32 %v2553, %v2602
        %v2684 = vadd.f32 %v2554, %v2602
        %v2685 = vadd.f32 %v2555, %v2602
        %v2686 = vadd.f32 %v2556, %v2602
        %v2687 = vadd.f32 %v2557, %v2602
        %v2688 = vadd.f32 %v2558, %v2602
        %v2689 = vadd.f32 %v2559, %v2602
        %v2690 = vadd.f32 %v2560, %v2602
        %v2691 = vadd.f32 %v2561, %v2602
        %v2692 = vadd.f32 %v2562, %v2602
        %v2693 = vadd.f32 %v2563, %v2602
        %v2694 = vadd.f32 %v2564, %v2602
        %v2695 = vadd.f32 %v2565, %v2602
        %v2696 = vadd.f32 %v2566, %v2602
        %v2697 = vadd.f32 %v2567, %v2602
        %v2698 = vadd.f32 %v2568, %v2602
        %v2699 = vadd.f32 %v2569, %v2602
        %v2700 = vadd.f32 %v2570, %v2602
        %v2701 = vadd.f32 %v2571, %v2602
        %v2702 = vadd.f32 %v2572, %v2602
        %v2703 = vadd.f32 %v2573, %v2602
        %v2704 = vadd.f32 %v2574, %v2602
        %v2705 = vadd.f32 %v2575, %v2602
        %v2706 = vadd.f32 %v2576, %v2602
        %v2707 = vadd.f32 %v2577, %v2602
        %v2708 = vadd.f32 %v2578, %v2602
        %v2709 = vadd.f32 %v2579, %v2602
        %v2710 = vadd.f32 %v2580, %v2602
        %v2711 = vadd.f32 %v2581, %v2602
        %v2712 = vadd.f32 %v2582, %v2602
        %v2713 = vadd.f32 %v2583, %v2602
        %v2714 = vadd.f32 %v2584, %v2602
        %v2715 = vadd.f32 %v2585, %v2602
        %v2716 = vadd.f32 %v2586, %v2602
        %v2717 = vadd.f32 %v2587, %v2602
        %v2718 = vadd.f32 %v2588, %v2602
        %v2719 = vadd.f32 %v2589, %v2602
        %v2720 = vadd.f32 %v2590, %v2602
        %v2721 = vadd.f32 %v2591, %v2602
        %v2722 = vadd.f32 %v2592, %v2602
        %v2723 = vadd.f32 %v2593, %v2602
        %v2724 = vadd.f32 %v2594, %v2602
        %v2725 = vadd.f32 %v2595, %v2602
        %v2726 = vadd.f32 %v2596, %v2602
        %v2727 = vadd.f32 %v2597, %v2602
        %v2728 = vadd.f32 %v2598, %v2602
        %v2729 = vadd.f32 %v2599, %v2602
        %v2730 = vadd.f32 %v2600, %v2602
        %v2731 = vlaneseq
        %v2732 = vshrl.u32 %v2731, 7
        %v2733 = vsub.s32 0, %v2732
        %v2734 = vrot.slane %v176, %v2733
        %2736 = vbcast.lane.b32.xlu0 %v2734, 256
        %v2737 = vpop.permute.xlu0 %2736
        %s2739 = sor.u32 256, 8
        %2740 = vbcast.lane.b32.xlu0 %v2734, %s2739
        %v2741 = vpop.permute.xlu0 %2740
        %s2743 = sor.u32 256, 16
        %2744 = vbcast.lane.b32.xlu0 %v2734, %s2743
        %v2745 = vpop.permute.xlu0 %2744
        %s2747 = sor.u32 256, 24
        %2748 = vbcast.lane.b32.xlu0 %v2734, %s2747
        %v2749 = vpop.permute.xlu0 %2748
        %s2751 = sor.u32 256, 32
        %2752 = vbcast.lane.b32.xlu0 %v2734, %s2751
        %v2753 = vpop.permute.xlu0 %2752
        %s2755 = sor.u32 256, 40
        %2756 = vbcast.lane.b32.xlu0 %v2734, %s2755
        %v2757 = vpop.permute.xlu0 %2756
        %s2759 = sor.u32 256, 48
        %2760 = vbcast.lane.b32.xlu0 %v2734, %s2759
        %v2761 = vpop.permute.xlu0 %2760
        %s2763 = sor.u32 256, 56
        %2764 = vbcast.lane.b32.xlu0 %v2734, %s2763
        %v2765 = vpop.permute.xlu0 %2764
        %s2767 = sor.u32 256, 64
        %2768 = vbcast.lane.b32.xlu0 %v2734, %s2767
        %v2769 = vpop.permute.xlu0 %2768
        %s2771 = sor.u32 256, 72
        %2772 = vbcast.lane.b32.xlu0 %v2734, %s2771
        %v2773 = vpop.permute.xlu0 %2772
        %s2775 = sor.u32 256, 80
        %2776 = vbcast.lane.b32.xlu0 %v2734, %s2775
        %v2777 = vpop.permute.xlu0 %2776
        %s2779 = sor.u32 256, 88
        %2780 = vbcast.lane.b32.xlu0 %v2734, %s2779
        %v2781 = vpop.permute.xlu0 %2780
        %s2783 = sor.u32 256, 96
        %2784 = vbcast.lane.b32.xlu0 %v2734, %s2783
        %v2785 = vpop.permute.xlu0 %2784
        %s2787 = sor.u32 256, 104
        %2788 = vbcast.lane.b32.xlu0 %v2734, %s2787
        %v2789 = vpop.permute.xlu0 %2788
        %s2791 = sor.u32 256, 112
        %2792 = vbcast.lane.b32.xlu0 %v2734, %s2791
        %v2793 = vpop.permute.xlu0 %2792
        %s2795 = sor.u32 256, 120
        %2796 = vbcast.lane.b32.xlu0 %v2734, %s2795
        %v2797 = vpop.permute.xlu0 %2796
        %v2798 = vlaneseq
        %v2799 = vshrl.u32 %v2798, 7
        %v2800 = vsub.s32 1, %v2799
        %v2801 = vrot.slane %v176, %v2800
        %2803 = vbcast.lane.b32.xlu0 %v2801, 256
        %v2804 = vpop.permute.xlu0 %2803
        %s2806 = sor.u32 256, 8
        %2807 = vbcast.lane.b32.xlu0 %v2801, %s2806
        %v2808 = vpop.permute.xlu0 %2807
        %s2810 = sor.u32 256, 16
        %2811 = vbcast.lane.b32.xlu0 %v2801, %s2810
        %v2812 = vpop.permute.xlu0 %2811
        %s2814 = sor.u32 256, 24
        %2815 = vbcast.lane.b32.xlu0 %v2801, %s2814
        %v2816 = vpop.permute.xlu0 %2815
        %s2818 = sor.u32 256, 32
        %2819 = vbcast.lane.b32.xlu0 %v2801, %s2818
        %v2820 = vpop.permute.xlu0 %2819
        %s2822 = sor.u32 256, 40
        %2823 = vbcast.lane.b32.xlu0 %v2801, %s2822
        %v2824 = vpop.permute.xlu0 %2823
        %s2826 = sor.u32 256, 48
        %2827 = vbcast.lane.b32.xlu0 %v2801, %s2826
        %v2828 = vpop.permute.xlu0 %2827
        %s2830 = sor.u32 256, 56
        %2831 = vbcast.lane.b32.xlu0 %v2801, %s2830
        %v2832 = vpop.permute.xlu0 %2831
        %s2834 = sor.u32 256, 64
        %2835 = vbcast.lane.b32.xlu0 %v2801, %s2834
        %v2836 = vpop.permute.xlu0 %2835
        %s2838 = sor.u32 256, 72
        %2839 = vbcast.lane.b32.xlu0 %v2801, %s2838
        %v2840 = vpop.permute.xlu0 %2839
        %s2842 = sor.u32 256, 80
        %2843 = vbcast.lane.b32.xlu0 %v2801, %s2842
        %v2844 = vpop.permute.xlu0 %2843
        %s2846 = sor.u32 256, 88
        %2847 = vbcast.lane.b32.xlu0 %v2801, %s2846
        %v2848 = vpop.permute.xlu0 %2847
        %s2850 = sor.u32 256, 96
        %2851 = vbcast.lane.b32.xlu0 %v2801, %s2850
        %v2852 = vpop.permute.xlu0 %2851
        %s2854 = sor.u32 256, 104
        %2855 = vbcast.lane.b32.xlu0 %v2801, %s2854
        %v2856 = vpop.permute.xlu0 %2855
        %s2858 = sor.u32 256, 112
        %2859 = vbcast.lane.b32.xlu0 %v2801, %s2858
        %v2860 = vpop.permute.xlu0 %2859
        %s2862 = sor.u32 256, 120
        %2863 = vbcast.lane.b32.xlu0 %v2801, %s2862
        %v2864 = vpop.permute.xlu0 %2863
        %v2865 = vlaneseq
        %v2866 = vshrl.u32 %v2865, 7
        %v2867 = vsub.s32 2, %v2866
        %v2868 = vrot.slane %v176, %v2867
        %2870 = vbcast.lane.b32.xlu0 %v2868, 256
        %v2871 = vpop.permute.xlu0 %2870
        %s2873 = sor.u32 256, 8
        %2874 = vbcast.lane.b32.xlu0 %v2868, %s2873
        %v2875 = vpop.permute.xlu0 %2874
        %s2877 = sor.u32 256, 16
        %2878 = vbcast.lane.b32.xlu0 %v2868, %s2877
        %v2879 = vpop.permute.xlu0 %2878
        %s2881 = sor.u32 256, 24
        %2882 = vbcast.lane.b32.xlu0 %v2868, %s2881
        %v2883 = vpop.permute.xlu0 %2882
        %s2885 = sor.u32 256, 32
        %2886 = vbcast.lane.b32.xlu0 %v2868, %s2885
        %v2887 = vpop.permute.xlu0 %2886
        %s2889 = sor.u32 256, 40
        %2890 = vbcast.lane.b32.xlu0 %v2868, %s2889
        %v2891 = vpop.permute.xlu0 %2890
        %s2893 = sor.u32 256, 48
        %2894 = vbcast.lane.b32.xlu0 %v2868, %s2893
        %v2895 = vpop.permute.xlu0 %2894
        %s2897 = sor.u32 256, 56
        %2898 = vbcast.lane.b32.xlu0 %v2868, %s2897
        %v2899 = vpop.permute.xlu0 %2898
        %s2901 = sor.u32 256, 64
        %2902 = vbcast.lane.b32.xlu0 %v2868, %s2901
        %v2903 = vpop.permute.xlu0 %2902
        %s2905 = sor.u32 256, 72
        %2906 = vbcast.lane.b32.xlu0 %v2868, %s2905
        %v2907 = vpop.permute.xlu0 %2906
        %s2909 = sor.u32 256, 80
        %2910 = vbcast.lane.b32.xlu0 %v2868, %s2909
        %v2911 = vpop.permute.xlu0 %2910
        %s2913 = sor.u32 256, 88
        %2914 = vbcast.lane.b32.xlu0 %v2868, %s2913
        %v2915 = vpop.permute.xlu0 %2914
        %s2917 = sor.u32 256, 96
        %2918 = vbcast.lane.b32.xlu0 %v2868, %s2917
        %v2919 = vpop.permute.xlu0 %2918
        %s2921 = sor.u32 256, 104
        %2922 = vbcast.lane.b32.xlu0 %v2868, %s2921
        %v2923 = vpop.permute.xlu0 %2922
        %s2925 = sor.u32 256, 112
        %2926 = vbcast.lane.b32.xlu0 %v2868, %s2925
        %v2927 = vpop.permute.xlu0 %2926
        %s2929 = sor.u32 256, 120
        %2930 = vbcast.lane.b32.xlu0 %v2868, %s2929
        %v2931 = vpop.permute.xlu0 %2930
        %v2932 = vlaneseq
        %v2933 = vshrl.u32 %v2932, 7
        %v2934 = vsub.s32 3, %v2933
        %v2935 = vrot.slane %v176, %v2934
        %2937 = vbcast.lane.b32.xlu0 %v2935, 256
        %v2938 = vpop.permute.xlu0 %2937
        %s2940 = sor.u32 256, 8
        %2941 = vbcast.lane.b32.xlu0 %v2935, %s2940
        %v2942 = vpop.permute.xlu0 %2941
        %s2944 = sor.u32 256, 16
        %2945 = vbcast.lane.b32.xlu0 %v2935, %s2944
        %v2946 = vpop.permute.xlu0 %2945
        %s2948 = sor.u32 256, 24
        %2949 = vbcast.lane.b32.xlu0 %v2935, %s2948
        %v2950 = vpop.permute.xlu0 %2949
        %s2952 = sor.u32 256, 32
        %2953 = vbcast.lane.b32.xlu0 %v2935, %s2952
        %v2954 = vpop.permute.xlu0 %2953
        %s2956 = sor.u32 256, 40
        %2957 = vbcast.lane.b32.xlu0 %v2935, %s2956
        %v2958 = vpop.permute.xlu0 %2957
        %s2960 = sor.u32 256, 48
        %2961 = vbcast.lane.b32.xlu0 %v2935, %s2960
        %v2962 = vpop.permute.xlu0 %2961
        %s2964 = sor.u32 256, 56
        %2965 = vbcast.lane.b32.xlu0 %v2935, %s2964
        %v2966 = vpop.permute.xlu0 %2965
        %s2968 = sor.u32 256, 64
        %2969 = vbcast.lane.b32.xlu0 %v2935, %s2968
        %v2970 = vpop.permute.xlu0 %2969
        %s2972 = sor.u32 256, 72
        %2973 = vbcast.lane.b32.xlu0 %v2935, %s2972
        %v2974 = vpop.permute.xlu0 %2973
        %s2976 = sor.u32 256, 80
        %2977 = vbcast.lane.b32.xlu0 %v2935, %s2976
        %v2978 = vpop.permute.xlu0 %2977
        %s2980 = sor.u32 256, 88
        %2981 = vbcast.lane.b32.xlu0 %v2935, %s2980
        %v2982 = vpop.permute.xlu0 %2981
        %s2984 = sor.u32 256, 96
        %2985 = vbcast.lane.b32.xlu0 %v2935, %s2984
        %v2986 = vpop.permute.xlu0 %2985
        %s2988 = sor.u32 256, 104
        %2989 = vbcast.lane.b32.xlu0 %v2935, %s2988
        %v2990 = vpop.permute.xlu0 %2989
        %s2992 = sor.u32 256, 112
        %2993 = vbcast.lane.b32.xlu0 %v2935, %s2992
        %v2994 = vpop.permute.xlu0 %2993
        %s2996 = sor.u32 256, 120
        %2997 = vbcast.lane.b32.xlu0 %v2935, %s2996
        %v2998 = vpop.permute.xlu0 %2997
        %v2999 = vlaneseq
        %v3000 = vshrl.u32 %v2999, 7
        %v3001 = vsub.s32 4, %v3000
        %v3002 = vrot.slane %v176, %v3001
        %3004 = vbcast.lane.b32.xlu0 %v3002, 256
        %v3005 = vpop.permute.xlu0 %3004
        %s3007 = sor.u32 256, 8
        %3008 = vbcast.lane.b32.xlu0 %v3002, %s3007
        %v3009 = vpop.permute.xlu0 %3008
        %s3011 = sor.u32 256, 16
        %3012 = vbcast.lane.b32.xlu0 %v3002, %s3011
        %v3013 = vpop.permute.xlu0 %3012
        %s3015 = sor.u32 256, 24
        %3016 = vbcast.lane.b32.xlu0 %v3002, %s3015
        %v3017 = vpop.permute.xlu0 %3016
        %s3019 = sor.u32 256, 32
        %3020 = vbcast.lane.b32.xlu0 %v3002, %s3019
        %v3021 = vpop.permute.xlu0 %3020
        %s3023 = sor.u32 256, 40
        %3024 = vbcast.lane.b32.xlu0 %v3002, %s3023
        %v3025 = vpop.permute.xlu0 %3024
        %s3027 = sor.u32 256, 48
        %3028 = vbcast.lane.b32.xlu0 %v3002, %s3027
        %v3029 = vpop.permute.xlu0 %3028
        %s3031 = sor.u32 256, 56
        %3032 = vbcast.lane.b32.xlu0 %v3002, %s3031
        %v3033 = vpop.permute.xlu0 %3032
        %s3035 = sor.u32 256, 64
        %3036 = vbcast.lane.b32.xlu0 %v3002, %s3035
        %v3037 = vpop.permute.xlu0 %3036
        %s3039 = sor.u32 256, 72
        %3040 = vbcast.lane.b32.xlu0 %v3002, %s3039
        %v3041 = vpop.permute.xlu0 %3040
        %s3043 = sor.u32 256, 80
        %3044 = vbcast.lane.b32.xlu0 %v3002, %s3043
        %v3045 = vpop.permute.xlu0 %3044
        %s3047 = sor.u32 256, 88
        %3048 = vbcast.lane.b32.xlu0 %v3002, %s3047
        %v3049 = vpop.permute.xlu0 %3048
        %s3051 = sor.u32 256, 96
        %3052 = vbcast.lane.b32.xlu0 %v3002, %s3051
        %v3053 = vpop.permute.xlu0 %3052
        %s3055 = sor.u32 256, 104
        %3056 = vbcast.lane.b32.xlu0 %v3002, %s3055
        %v3057 = vpop.permute.xlu0 %3056
        %s3059 = sor.u32 256, 112
        %3060 = vbcast.lane.b32.xlu0 %v3002, %s3059
        %v3061 = vpop.permute.xlu0 %3060
        %s3063 = sor.u32 256, 120
        %3064 = vbcast.lane.b32.xlu0 %v3002, %s3063
        %v3065 = vpop.permute.xlu0 %3064
        %v3066 = vlaneseq
        %v3067 = vshrl.u32 %v3066, 7
        %v3068 = vsub.s32 5, %v3067
        %v3069 = vrot.slane %v176, %v3068
        %3071 = vbcast.lane.b32.xlu0 %v3069, 256
        %v3072 = vpop.permute.xlu0 %3071
        %s3074 = sor.u32 256, 8
        %3075 = vbcast.lane.b32.xlu0 %v3069, %s3074
        %v3076 = vpop.permute.xlu0 %3075
        %s3078 = sor.u32 256, 16
        %3079 = vbcast.lane.b32.xlu0 %v3069, %s3078
        %v3080 = vpop.permute.xlu0 %3079
        %s3082 = sor.u32 256, 24
        %3083 = vbcast.lane.b32.xlu0 %v3069, %s3082
        %v3084 = vpop.permute.xlu0 %3083
        %s3086 = sor.u32 256, 32
        %3087 = vbcast.lane.b32.xlu0 %v3069, %s3086
        %v3088 = vpop.permute.xlu0 %3087
        %s3090 = sor.u32 256, 40
        %3091 = vbcast.lane.b32.xlu0 %v3069, %s3090
        %v3092 = vpop.permute.xlu0 %3091
        %s3094 = sor.u32 256, 48
        %3095 = vbcast.lane.b32.xlu0 %v3069, %s3094
        %v3096 = vpop.permute.xlu0 %3095
        %s3098 = sor.u32 256, 56
        %3099 = vbcast.lane.b32.xlu0 %v3069, %s3098
        %v3100 = vpop.permute.xlu0 %3099
        %s3102 = sor.u32 256, 64
        %3103 = vbcast.lane.b32.xlu0 %v3069, %s3102
        %v3104 = vpop.permute.xlu0 %3103
        %s3106 = sor.u32 256, 72
        %3107 = vbcast.lane.b32.xlu0 %v3069, %s3106
        %v3108 = vpop.permute.xlu0 %3107
        %s3110 = sor.u32 256, 80
        %3111 = vbcast.lane.b32.xlu0 %v3069, %s3110
        %v3112 = vpop.permute.xlu0 %3111
        %s3114 = sor.u32 256, 88
        %3115 = vbcast.lane.b32.xlu0 %v3069, %s3114
        %v3116 = vpop.permute.xlu0 %3115
        %s3118 = sor.u32 256, 96
        %3119 = vbcast.lane.b32.xlu0 %v3069, %s3118
        %v3120 = vpop.permute.xlu0 %3119
        %s3122 = sor.u32 256, 104
        %3123 = vbcast.lane.b32.xlu0 %v3069, %s3122
        %v3124 = vpop.permute.xlu0 %3123
        %s3126 = sor.u32 256, 112
        %3127 = vbcast.lane.b32.xlu0 %v3069, %s3126
        %v3128 = vpop.permute.xlu0 %3127
        %s3130 = sor.u32 256, 120
        %3131 = vbcast.lane.b32.xlu0 %v3069, %s3130
        %v3132 = vpop.permute.xlu0 %3131
        %v3133 = vlaneseq
        %v3134 = vshrl.u32 %v3133, 7
        %v3135 = vsub.s32 6, %v3134
        %v3136 = vrot.slane %v176, %v3135
        %3138 = vbcast.lane.b32.xlu0 %v3136, 256
        %v3139 = vpop.permute.xlu0 %3138
        %s3141 = sor.u32 256, 8
        %3142 = vbcast.lane.b32.xlu0 %v3136, %s3141
        %v3143 = vpop.permute.xlu0 %3142
        %s3145 = sor.u32 256, 16
        %3146 = vbcast.lane.b32.xlu0 %v3136, %s3145
        %v3147 = vpop.permute.xlu0 %3146
        %s3149 = sor.u32 256, 24
        %3150 = vbcast.lane.b32.xlu0 %v3136, %s3149
        %v3151 = vpop.permute.xlu0 %3150
        %s3153 = sor.u32 256, 32
        %3154 = vbcast.lane.b32.xlu0 %v3136, %s3153
        %v3155 = vpop.permute.xlu0 %3154
        %s3157 = sor.u32 256, 40
        %3158 = vbcast.lane.b32.xlu0 %v3136, %s3157
        %v3159 = vpop.permute.xlu0 %3158
        %s3161 = sor.u32 256, 48
        %3162 = vbcast.lane.b32.xlu0 %v3136, %s3161
        %v3163 = vpop.permute.xlu0 %3162
        %s3165 = sor.u32 256, 56
        %3166 = vbcast.lane.b32.xlu0 %v3136, %s3165
        %v3167 = vpop.permute.xlu0 %3166
        %s3169 = sor.u32 256, 64
        %3170 = vbcast.lane.b32.xlu0 %v3136, %s3169
        %v3171 = vpop.permute.xlu0 %3170
        %s3173 = sor.u32 256, 72
        %3174 = vbcast.lane.b32.xlu0 %v3136, %s3173
        %v3175 = vpop.permute.xlu0 %3174
        %s3177 = sor.u32 256, 80
        %3178 = vbcast.lane.b32.xlu0 %v3136, %s3177
        %v3179 = vpop.permute.xlu0 %3178
        %s3181 = sor.u32 256, 88
        %3182 = vbcast.lane.b32.xlu0 %v3136, %s3181
        %v3183 = vpop.permute.xlu0 %3182
        %s3185 = sor.u32 256, 96
        %3186 = vbcast.lane.b32.xlu0 %v3136, %s3185
        %v3187 = vpop.permute.xlu0 %3186
        %s3189 = sor.u32 256, 104
        %3190 = vbcast.lane.b32.xlu0 %v3136, %s3189
        %v3191 = vpop.permute.xlu0 %3190
        %s3193 = sor.u32 256, 112
        %3194 = vbcast.lane.b32.xlu0 %v3136, %s3193
        %v3195 = vpop.permute.xlu0 %3194
        %s3197 = sor.u32 256, 120
        %3198 = vbcast.lane.b32.xlu0 %v3136, %s3197
        %v3199 = vpop.permute.xlu0 %3198
        %v3200 = vlaneseq
        %v3201 = vshrl.u32 %v3200, 7
        %v3202 = vsub.s32 7, %v3201
        %v3203 = vrot.slane %v176, %v3202
        %3205 = vbcast.lane.b32.xlu0 %v3203, 256
        %v3206 = vpop.permute.xlu0 %3205
        %s3208 = sor.u32 256, 8
        %3209 = vbcast.lane.b32.xlu0 %v3203, %s3208
        %v3210 = vpop.permute.xlu0 %3209
        %s3212 = sor.u32 256, 16
        %3213 = vbcast.lane.b32.xlu0 %v3203, %s3212
        %v3214 = vpop.permute.xlu0 %3213
        %s3216 = sor.u32 256, 24
        %3217 = vbcast.lane.b32.xlu0 %v3203, %s3216
        %v3218 = vpop.permute.xlu0 %3217
        %s3220 = sor.u32 256, 32
        %3221 = vbcast.lane.b32.xlu0 %v3203, %s3220
        %v3222 = vpop.permute.xlu0 %3221
        %s3224 = sor.u32 256, 40
        %3225 = vbcast.lane.b32.xlu0 %v3203, %s3224
        %v3226 = vpop.permute.xlu0 %3225
        %s3228 = sor.u32 256, 48
        %3229 = vbcast.lane.b32.xlu0 %v3203, %s3228
        %v3230 = vpop.permute.xlu0 %3229
        %s3232 = sor.u32 256, 56
        %3233 = vbcast.lane.b32.xlu0 %v3203, %s3232
        %v3234 = vpop.permute.xlu0 %3233
        %s3236 = sor.u32 256, 64
        %3237 = vbcast.lane.b32.xlu0 %v3203, %s3236
        %v3238 = vpop.permute.xlu0 %3237
        %s3240 = sor.u32 256, 72
        %3241 = vbcast.lane.b32.xlu0 %v3203, %s3240
        %v3242 = vpop.permute.xlu0 %3241
        %s3244 = sor.u32 256, 80
        %3245 = vbcast.lane.b32.xlu0 %v3203, %s3244
        %v3246 = vpop.permute.xlu0 %3245
        %s3248 = sor.u32 256, 88
        %3249 = vbcast.lane.b32.xlu0 %v3203, %s3248
        %v3250 = vpop.permute.xlu0 %3249
        %s3252 = sor.u32 256, 96
        %3253 = vbcast.lane.b32.xlu0 %v3203, %s3252
        %v3254 = vpop.permute.xlu0 %3253
        %s3256 = sor.u32 256, 104
        %3257 = vbcast.lane.b32.xlu0 %v3203, %s3256
        %v3258 = vpop.permute.xlu0 %3257
        %s3260 = sor.u32 256, 112
        %3261 = vbcast.lane.b32.xlu0 %v3203, %s3260
        %v3262 = vpop.permute.xlu0 %3261
        %s3264 = sor.u32 256, 120
        %3265 = vbcast.lane.b32.xlu0 %v3203, %s3264
        %v3266 = vpop.permute.xlu0 %3265
        %v3395 = vadd.f32 %v2603, %v2737
        %v3396 = vadd.f32 %v2604, %v2741
        %v3397 = vadd.f32 %v2605, %v2745
        %v3398 = vadd.f32 %v2606, %v2749
        %v3399 = vadd.f32 %v2607, %v2753
        %v3400 = vadd.f32 %v2608, %v2757
        %v3401 = vadd.f32 %v2609, %v2761
        %v3402 = vadd.f32 %v2610, %v2765
        %v3403 = vadd.f32 %v2611, %v2769
        %v3404 = vadd.f32 %v2612, %v2773
        %v3405 = vadd.f32 %v2613, %v2777
        %v3406 = vadd.f32 %v2614, %v2781
        %v3407 = vadd.f32 %v2615, %v2785
        %v3408 = vadd.f32 %v2616, %v2789
        %v3409 = vadd.f32 %v2617, %v2793
        %v3410 = vadd.f32 %v2618, %v2797
        %v3411 = vadd.f32 %v2619, %v2804
        %v3412 = vadd.f32 %v2620, %v2808
        %v3413 = vadd.f32 %v2621, %v2812
        %v3414 = vadd.f32 %v2622, %v2816
        %v3415 = vadd.f32 %v2623, %v2820
        %v3416 = vadd.f32 %v2624, %v2824
        %v3417 = vadd.f32 %v2625, %v2828
        %v3418 = vadd.f32 %v2626, %v2832
        %v3419 = vadd.f32 %v2627, %v2836
        %v3420 = vadd.f32 %v2628, %v2840
        %v3421 = vadd.f32 %v2629, %v2844
        %v3422 = vadd.f32 %v2630, %v2848
        %v3423 = vadd.f32 %v2631, %v2852
        %v3424 = vadd.f32 %v2632, %v2856
        %v3425 = vadd.f32 %v2633, %v2860
        %v3426 = vadd.f32 %v2634, %v2864
        %v3427 = vadd.f32 %v2635, %v2871
        %v3428 = vadd.f32 %v2636, %v2875
        %v3429 = vadd.f32 %v2637, %v2879
        %v3430 = vadd.f32 %v2638, %v2883
        %v3431 = vadd.f32 %v2639, %v2887
        %v3432 = vadd.f32 %v2640, %v2891
        %v3433 = vadd.f32 %v2641, %v2895
        %v3434 = vadd.f32 %v2642, %v2899
        %v3435 = vadd.f32 %v2643, %v2903
        %v3436 = vadd.f32 %v2644, %v2907
        %v3437 = vadd.f32 %v2645, %v2911
        %v3438 = vadd.f32 %v2646, %v2915
        %v3439 = vadd.f32 %v2647, %v2919
        %v3440 = vadd.f32 %v2648, %v2923
        %v3441 = vadd.f32 %v2649, %v2927
        %v3442 = vadd.f32 %v2650, %v2931
        %v3443 = vadd.f32 %v2651, %v2938
        %v3444 = vadd.f32 %v2652, %v2942
        %v3445 = vadd.f32 %v2653, %v2946
        %v3446 = vadd.f32 %v2654, %v2950
        %v3447 = vadd.f32 %v2655, %v2954
        %v3448 = vadd.f32 %v2656, %v2958
        %v3449 = vadd.f32 %v2657, %v2962
        %v3450 = vadd.f32 %v2658, %v2966
        %v3451 = vadd.f32 %v2659, %v2970
        %v3452 = vadd.f32 %v2660, %v2974
        %v3453 = vadd.f32 %v2661, %v2978
        %v3454 = vadd.f32 %v2662, %v2982
        %v3455 = vadd.f32 %v2663, %v2986
        %v3456 = vadd.f32 %v2664, %v2990
        %v3457 = vadd.f32 %v2665, %v2994
        %v3458 = vadd.f32 %v2666, %v2998
        %v3459 = vadd.f32 %v2667, %v3005
        %v3460 = vadd.f32 %v2668, %v3009
        %v3461 = vadd.f32 %v2669, %v3013
        %v3462 = vadd.f32 %v2670, %v3017
        %v3463 = vadd.f32 %v2671, %v3021
        %v3464 = vadd.f32 %v2672, %v3025
        %v3465 = vadd.f32 %v2673, %v3029
        %v3466 = vadd.f32 %v2674, %v3033
        %v3467 = vadd.f32 %v2675, %v3037
        %v3468 = vadd.f32 %v2676, %v3041
        %v3469 = vadd.f32 %v2677, %v3045
        %v3470 = vadd.f32 %v2678, %v3049
        %v3471 = vadd.f32 %v2679, %v3053
        %v3472 = vadd.f32 %v2680, %v3057
        %v3473 = vadd.f32 %v2681, %v3061
        %v3474 = vadd.f32 %v2682, %v3065
        %v3475 = vadd.f32 %v2683, %v3072
        %v3476 = vadd.f32 %v2684, %v3076
        %v3477 = vadd.f32 %v2685, %v3080
        %v3478 = vadd.f32 %v2686, %v3084
        %v3479 = vadd.f32 %v2687, %v3088
        %v3480 = vadd.f32 %v2688, %v3092
        %v3481 = vadd.f32 %v2689, %v3096
        %v3482 = vadd.f32 %v2690, %v3100
        %v3483 = vadd.f32 %v2691, %v3104
        %v3484 = vadd.f32 %v2692, %v3108
        %v3485 = vadd.f32 %v2693, %v3112
        %v3486 = vadd.f32 %v2694, %v3116
        %v3487 = vadd.f32 %v2695, %v3120
        %v3488 = vadd.f32 %v2696, %v3124
        %v3489 = vadd.f32 %v2697, %v3128
        %v3490 = vadd.f32 %v2698, %v3132
        %v3491 = vadd.f32 %v2699, %v3139
        %v3492 = vadd.f32 %v2700, %v3143
        %v3493 = vadd.f32 %v2701, %v3147
        %v3494 = vadd.f32 %v2702, %v3151
        %v3495 = vadd.f32 %v2703, %v3155
        %v3496 = vadd.f32 %v2704, %v3159
        %v3497 = vadd.f32 %v2705, %v3163
        %v3498 = vadd.f32 %v2706, %v3167
        %v3499 = vadd.f32 %v2707, %v3171
        %v3500 = vadd.f32 %v2708, %v3175
        %v3501 = vadd.f32 %v2709, %v3179
        %v3502 = vadd.f32 %v2710, %v3183
        %v3503 = vadd.f32 %v2711, %v3187
        %v3504 = vadd.f32 %v2712, %v3191
        %v3505 = vadd.f32 %v2713, %v3195
        %v3506 = vadd.f32 %v2714, %v3199
        %v3507 = vadd.f32 %v2715, %v3206
        %v3508 = vadd.f32 %v2716, %v3210
        %v3509 = vadd.f32 %v2717, %v3214
        %v3510 = vadd.f32 %v2718, %v3218
        %v3511 = vadd.f32 %v2719, %v3222
        %v3512 = vadd.f32 %v2720, %v3226
        %v3513 = vadd.f32 %v2721, %v3230
        %v3514 = vadd.f32 %v2722, %v3234
        %v3515 = vadd.f32 %v2723, %v3238
        %v3516 = vadd.f32 %v2724, %v3242
        %v3517 = vadd.f32 %v2725, %v3246
        %v3518 = vadd.f32 %v2726, %v3250
        %v3519 = vadd.f32 %v2727, %v3254
        %v3520 = vadd.f32 %v2728, %v3258
        %v3521 = vadd.f32 %v2729, %v3262
        %v3522 = vadd.f32 %v2730, %v3266
        %3651 = vset.pattern.permute.xlu0 0
        %3652 = vperm.xlu0 %3651, %v3395
        %v3653 = vpop.permute.xlu0 %3652
        %3654 = vset.pattern.permute.xlu0 0
        %3655 = vperm.xlu0 %3654, %v3396
        %v3656 = vpop.permute.xlu0 %3655
        %3657 = vset.pattern.permute.xlu0 0
        %3658 = vperm.xlu0 %3657, %v3397
        %v3659 = vpop.permute.xlu0 %3658
        %3660 = vset.pattern.permute.xlu0 0
        %3661 = vperm.xlu0 %3660, %v3398
        %v3662 = vpop.permute.xlu0 %3661
        %3663 = vset.pattern.permute.xlu0 0
        %3664 = vperm.xlu0 %3663, %v3399
        %v3665 = vpop.permute.xlu0 %3664
        %3666 = vset.pattern.permute.xlu0 0
        %3667 = vperm.xlu0 %3666, %v3400
        %v3668 = vpop.permute.xlu0 %3667
        %3669 = vset.pattern.permute.xlu0 0
        %3670 = vperm.xlu0 %3669, %v3401
        %v3671 = vpop.permute.xlu0 %3670
        %3672 = vset.pattern.permute.xlu0 0
        %3673 = vperm.xlu0 %3672, %v3402
        %v3674 = vpop.permute.xlu0 %3673
        %3675 = vset.pattern.permute.xlu0 0
        %3676 = vperm.xlu0 %3675, %v3403
        %v3677 = vpop.permute.xlu0 %3676
        %3678 = vset.pattern.permute.xlu0 0
        %3679 = vperm.xlu0 %3678, %v3404
        %v3680 = vpop.permute.xlu0 %3679
        %3681 = vset.pattern.permute.xlu0 0
        %3682 = vperm.xlu0 %3681, %v3405
        %v3683 = vpop.permute.xlu0 %3682
        %3684 = vset.pattern.permute.xlu0 0
        %3685 = vperm.xlu0 %3684, %v3406
        %v3686 = vpop.permute.xlu0 %3685
        %3687 = vset.pattern.permute.xlu0 0
        %3688 = vperm.xlu0 %3687, %v3407
        %v3689 = vpop.permute.xlu0 %3688
        %3690 = vset.pattern.permute.xlu0 0
        %3691 = vperm.xlu0 %3690, %v3408
        %v3692 = vpop.permute.xlu0 %3691
        %3693 = vset.pattern.permute.xlu0 0
        %3694 = vperm.xlu0 %3693, %v3409
        %v3695 = vpop.permute.xlu0 %3694
        %3696 = vset.pattern.permute.xlu0 0
        %3697 = vperm.xlu0 %3696, %v3410
        %v3698 = vpop.permute.xlu0 %3697
        %3699 = vset.pattern.permute.xlu0 0
        %3700 = vperm.xlu0 %3699, %v3411
        %v3701 = vpop.permute.xlu0 %3700
        %3702 = vset.pattern.permute.xlu0 0
        %3703 = vperm.xlu0 %3702, %v3412
        %v3704 = vpop.permute.xlu0 %3703
        %3705 = vset.pattern.permute.xlu0 0
        %3706 = vperm.xlu0 %3705, %v3413
        %v3707 = vpop.permute.xlu0 %3706
        %3708 = vset.pattern.permute.xlu0 0
        %3709 = vperm.xlu0 %3708, %v3414
        %v3710 = vpop.permute.xlu0 %3709
        %3711 = vset.pattern.permute.xlu0 0
        %3712 = vperm.xlu0 %3711, %v3415
        %v3713 = vpop.permute.xlu0 %3712
        %3714 = vset.pattern.permute.xlu0 0
        %3715 = vperm.xlu0 %3714, %v3416
        %v3716 = vpop.permute.xlu0 %3715
        %3717 = vset.pattern.permute.xlu0 0
        %3718 = vperm.xlu0 %3717, %v3417
        %v3719 = vpop.permute.xlu0 %3718
        %3720 = vset.pattern.permute.xlu0 0
        %3721 = vperm.xlu0 %3720, %v3418
        %v3722 = vpop.permute.xlu0 %3721
        %3723 = vset.pattern.permute.xlu0 0
        %3724 = vperm.xlu0 %3723, %v3419
        %v3725 = vpop.permute.xlu0 %3724
        %3726 = vset.pattern.permute.xlu0 0
        %3727 = vperm.xlu0 %3726, %v3420
        %v3728 = vpop.permute.xlu0 %3727
        %3729 = vset.pattern.permute.xlu0 0
        %3730 = vperm.xlu0 %3729, %v3421
        %v3731 = vpop.permute.xlu0 %3730
        %3732 = vset.pattern.permute.xlu0 0
        %3733 = vperm.xlu0 %3732, %v3422
        %v3734 = vpop.permute.xlu0 %3733
        %3735 = vset.pattern.permute.xlu0 0
        %3736 = vperm.xlu0 %3735, %v3423
        %v3737 = vpop.permute.xlu0 %3736
        %3738 = vset.pattern.permute.xlu0 0
        %3739 = vperm.xlu0 %3738, %v3424
        %v3740 = vpop.permute.xlu0 %3739
        %3741 = vset.pattern.permute.xlu0 0
        %3742 = vperm.xlu0 %3741, %v3425
        %v3743 = vpop.permute.xlu0 %3742
        %3744 = vset.pattern.permute.xlu0 0
        %3745 = vperm.xlu0 %3744, %v3426
        %v3746 = vpop.permute.xlu0 %3745
        %3747 = vset.pattern.permute.xlu0 0
        %3748 = vperm.xlu0 %3747, %v3427
        %v3749 = vpop.permute.xlu0 %3748
        %3750 = vset.pattern.permute.xlu0 0
        %3751 = vperm.xlu0 %3750, %v3428
        %v3752 = vpop.permute.xlu0 %3751
        %3753 = vset.pattern.permute.xlu0 0
        %3754 = vperm.xlu0 %3753, %v3429
        %v3755 = vpop.permute.xlu0 %3754
        %3756 = vset.pattern.permute.xlu0 0
        %3757 = vperm.xlu0 %3756, %v3430
        %v3758 = vpop.permute.xlu0 %3757
        %3759 = vset.pattern.permute.xlu0 0
        %3760 = vperm.xlu0 %3759, %v3431
        %v3761 = vpop.permute.xlu0 %3760
        %3762 = vset.pattern.permute.xlu0 0
        %3763 = vperm.xlu0 %3762, %v3432
        %v3764 = vpop.permute.xlu0 %3763
        %3765 = vset.pattern.permute.xlu0 0
        %3766 = vperm.xlu0 %3765, %v3433
        %v3767 = vpop.permute.xlu0 %3766
        %3768 = vset.pattern.permute.xlu0 0
        %3769 = vperm.xlu0 %3768, %v3434
        %v3770 = vpop.permute.xlu0 %3769
        %3771 = vset.pattern.permute.xlu0 0
        %3772 = vperm.xlu0 %3771, %v3435
        %v3773 = vpop.permute.xlu0 %3772
        %3774 = vset.pattern.permute.xlu0 0
        %3775 = vperm.xlu0 %3774, %v3436
        %v3776 = vpop.permute.xlu0 %3775
        %3777 = vset.pattern.permute.xlu0 0
        %3778 = vperm.xlu0 %3777, %v3437
        %v3779 = vpop.permute.xlu0 %3778
        %3780 = vset.pattern.permute.xlu0 0
        %3781 = vperm.xlu0 %3780, %v3438
        %v3782 = vpop.permute.xlu0 %3781
        %3783 = vset.pattern.permute.xlu0 0
        %3784 = vperm.xlu0 %3783, %v3439
        %v3785 = vpop.permute.xlu0 %3784
        %3786 = vset.pattern.permute.xlu0 0
        %3787 = vperm.xlu0 %3786, %v3440
        %v3788 = vpop.permute.xlu0 %3787
        %3789 = vset.pattern.permute.xlu0 0
        %3790 = vperm.xlu0 %3789, %v3441
        %v3791 = vpop.permute.xlu0 %3790
        %3792 = vset.pattern.permute.xlu0 0
        %3793 = vperm.xlu0 %3792, %v3442
        %v3794 = vpop.permute.xlu0 %3793
        %3795 = vset.pattern.permute.xlu0 0
        %3796 = vperm.xlu0 %3795, %v3443
        %v3797 = vpop.permute.xlu0 %3796
        %3798 = vset.pattern.permute.xlu0 0
        %3799 = vperm.xlu0 %3798, %v3444
        %v3800 = vpop.permute.xlu0 %3799
        %3801 = vset.pattern.permute.xlu0 0
        %3802 = vperm.xlu0 %3801, %v3445
        %v3803 = vpop.permute.xlu0 %3802
        %3804 = vset.pattern.permute.xlu0 0
        %3805 = vperm.xlu0 %3804, %v3446
        %v3806 = vpop.permute.xlu0 %3805
        %3807 = vset.pattern.permute.xlu0 0
        %3808 = vperm.xlu0 %3807, %v3447
        %v3809 = vpop.permute.xlu0 %3808
        %3810 = vset.pattern.permute.xlu0 0
        %3811 = vperm.xlu0 %3810, %v3448
        %v3812 = vpop.permute.xlu0 %3811
        %3813 = vset.pattern.permute.xlu0 0
        %3814 = vperm.xlu0 %3813, %v3449
        %v3815 = vpop.permute.xlu0 %3814
        %3816 = vset.pattern.permute.xlu0 0
        %3817 = vperm.xlu0 %3816, %v3450
        %v3818 = vpop.permute.xlu0 %3817
        %3819 = vset.pattern.permute.xlu0 0
        %3820 = vperm.xlu0 %3819, %v3451
        %v3821 = vpop.permute.xlu0 %3820
        %3822 = vset.pattern.permute.xlu0 0
        %3823 = vperm.xlu0 %3822, %v3452
        %v3824 = vpop.permute.xlu0 %3823
        %3825 = vset.pattern.permute.xlu0 0
        %3826 = vperm.xlu0 %3825, %v3453
        %v3827 = vpop.permute.xlu0 %3826
        %3828 = vset.pattern.permute.xlu0 0
        %3829 = vperm.xlu0 %3828, %v3454
        %v3830 = vpop.permute.xlu0 %3829
        %3831 = vset.pattern.permute.xlu0 0
        %3832 = vperm.xlu0 %3831, %v3455
        %v3833 = vpop.permute.xlu0 %3832
        %3834 = vset.pattern.permute.xlu0 0
        %3835 = vperm.xlu0 %3834, %v3456
        %v3836 = vpop.permute.xlu0 %3835
        %3837 = vset.pattern.permute.xlu0 0
        %3838 = vperm.xlu0 %3837, %v3457
        %v3839 = vpop.permute.xlu0 %3838
        %3840 = vset.pattern.permute.xlu0 0
        %3841 = vperm.xlu0 %3840, %v3458
        %v3842 = vpop.permute.xlu0 %3841
        %3843 = vset.pattern.permute.xlu0 0
        %3844 = vperm.xlu0 %3843, %v3459
        %v3845 = vpop.permute.xlu0 %3844
        %3846 = vset.pattern.permute.xlu0 0
        %3847 = vperm.xlu0 %3846, %v3460
        %v3848 = vpop.permute.xlu0 %3847
        %3849 = vset.pattern.permute.xlu0 0
        %3850 = vperm.xlu0 %3849, %v3461
        %v3851 = vpop.permute.xlu0 %3850
        %3852 = vset.pattern.permute.xlu0 0
        %3853 = vperm.xlu0 %3852, %v3462
        %v3854 = vpop.permute.xlu0 %3853
        %3855 = vset.pattern.permute.xlu0 0
        %3856 = vperm.xlu0 %3855, %v3463
        %v3857 = vpop.permute.xlu0 %3856
        %3858 = vset.pattern.permute.xlu0 0
        %3859 = vperm.xlu0 %3858, %v3464
        %v3860 = vpop.permute.xlu0 %3859
        %3861 = vset.pattern.permute.xlu0 0
        %3862 = vperm.xlu0 %3861, %v3465
        %v3863 = vpop.permute.xlu0 %3862
        %3864 = vset.pattern.permute.xlu0 0
        %3865 = vperm.xlu0 %3864, %v3466
        %v3866 = vpop.permute.xlu0 %3865
        %3867 = vset.pattern.permute.xlu0 0
        %3868 = vperm.xlu0 %3867, %v3467
        %v3869 = vpop.permute.xlu0 %3868
        %3870 = vset.pattern.permute.xlu0 0
        %3871 = vperm.xlu0 %3870, %v3468
        %v3872 = vpop.permute.xlu0 %3871
        %3873 = vset.pattern.permute.xlu0 0
        %3874 = vperm.xlu0 %3873, %v3469
        %v3875 = vpop.permute.xlu0 %3874
        %3876 = vset.pattern.permute.xlu0 0
        %3877 = vperm.xlu0 %3876, %v3470
        %v3878 = vpop.permute.xlu0 %3877
        %3879 = vset.pattern.permute.xlu0 0
        %3880 = vperm.xlu0 %3879, %v3471
        %v3881 = vpop.permute.xlu0 %3880
        %3882 = vset.pattern.permute.xlu0 0
        %3883 = vperm.xlu0 %3882, %v3472
        %v3884 = vpop.permute.xlu0 %3883
        %3885 = vset.pattern.permute.xlu0 0
        %3886 = vperm.xlu0 %3885, %v3473
        %v3887 = vpop.permute.xlu0 %3886
        %3888 = vset.pattern.permute.xlu0 0
        %3889 = vperm.xlu0 %3888, %v3474
        %v3890 = vpop.permute.xlu0 %3889
        %3891 = vset.pattern.permute.xlu0 0
        %3892 = vperm.xlu0 %3891, %v3475
        %v3893 = vpop.permute.xlu0 %3892
        %3894 = vset.pattern.permute.xlu0 0
        %3895 = vperm.xlu0 %3894, %v3476
        %v3896 = vpop.permute.xlu0 %3895
        %3897 = vset.pattern.permute.xlu0 0
        %3898 = vperm.xlu0 %3897, %v3477
        %v3899 = vpop.permute.xlu0 %3898
        %3900 = vset.pattern.permute.xlu0 0
        %3901 = vperm.xlu0 %3900, %v3478
        %v3902 = vpop.permute.xlu0 %3901
        %3903 = vset.pattern.permute.xlu0 0
        %3904 = vperm.xlu0 %3903, %v3479
        %v3905 = vpop.permute.xlu0 %3904
        %3906 = vset.pattern.permute.xlu0 0
        %3907 = vperm.xlu0 %3906, %v3480
        %v3908 = vpop.permute.xlu0 %3907
        %3909 = vset.pattern.permute.xlu0 0
        %3910 = vperm.xlu0 %3909, %v3481
        %v3911 = vpop.permute.xlu0 %3910
        %3912 = vset.pattern.permute.xlu0 0
        %3913 = vperm.xlu0 %3912, %v3482
        %v3914 = vpop.permute.xlu0 %3913
        %3915 = vset.pattern.permute.xlu0 0
        %3916 = vperm.xlu0 %3915, %v3483
        %v3917 = vpop.permute.xlu0 %3916
        %3918 = vset.pattern.permute.xlu0 0
        %3919 = vperm.xlu0 %3918, %v3484
        %v3920 = vpop.permute.xlu0 %3919
        %3921 = vset.pattern.permute.xlu0 0
        %3922 = vperm.xlu0 %3921, %v3485
        %v3923 = vpop.permute.xlu0 %3922
        %3924 = vset.pattern.permute.xlu0 0
        %3925 = vperm.xlu0 %3924, %v3486
        %v3926 = vpop.permute.xlu0 %3925
        %3927 = vset.pattern.permute.xlu0 0
        %3928 = vperm.xlu0 %3927, %v3487
        %v3929 = vpop.permute.xlu0 %3928
        %3930 = vset.pattern.permute.xlu0 0
        %3931 = vperm.xlu0 %3930, %v3488
        %v3932 = vpop.permute.xlu0 %3931
        %3933 = vset.pattern.permute.xlu0 0
        %3934 = vperm.xlu0 %3933, %v3489
        %v3935 = vpop.permute.xlu0 %3934
        %3936 = vset.pattern.permute.xlu0 0
        %3937 = vperm.xlu0 %3936, %v3490
        %v3938 = vpop.permute.xlu0 %3937
        %3939 = vset.pattern.permute.xlu0 0
        %3940 = vperm.xlu0 %3939, %v3491
        %v3941 = vpop.permute.xlu0 %3940
        %3942 = vset.pattern.permute.xlu0 0
        %3943 = vperm.xlu0 %3942, %v3492
        %v3944 = vpop.permute.xlu0 %3943
        %3945 = vset.pattern.permute.xlu0 0
        %3946 = vperm.xlu0 %3945, %v3493
        %v3947 = vpop.permute.xlu0 %3946
        %3948 = vset.pattern.permute.xlu0 0
        %3949 = vperm.xlu0 %3948, %v3494
        %v3950 = vpop.permute.xlu0 %3949
        %3951 = vset.pattern.permute.xlu0 0
        %3952 = vperm.xlu0 %3951, %v3495
        %v3953 = vpop.permute.xlu0 %3952
        %3954 = vset.pattern.permute.xlu0 0
        %3955 = vperm.xlu0 %3954, %v3496
        %v3956 = vpop.permute.xlu0 %3955
        %3957 = vset.pattern.permute.xlu0 0
        %3958 = vperm.xlu0 %3957, %v3497
        %v3959 = vpop.permute.xlu0 %3958
        %3960 = vset.pattern.permute.xlu0 0
        %3961 = vperm.xlu0 %3960, %v3498
        %v3962 = vpop.permute.xlu0 %3961
        %3963 = vset.pattern.permute.xlu0 0
        %3964 = vperm.xlu0 %3963, %v3499
        %v3965 = vpop.permute.xlu0 %3964
        %3966 = vset.pattern.permute.xlu0 0
        %3967 = vperm.xlu0 %3966, %v3500
        %v3968 = vpop.permute.xlu0 %3967
        %3969 = vset.pattern.permute.xlu0 0
        %3970 = vperm.xlu0 %3969, %v3501
        %v3971 = vpop.permute.xlu0 %3970
        %3972 = vset.pattern.permute.xlu0 0
        %3973 = vperm.xlu0 %3972, %v3502
        %v3974 = vpop.permute.xlu0 %3973
        %3975 = vset.pattern.permute.xlu0 0
        %3976 = vperm.xlu0 %3975, %v3503
        %v3977 = vpop.permute.xlu0 %3976
        %3978 = vset.pattern.permute.xlu0 0
        %3979 = vperm.xlu0 %3978, %v3504
        %v3980 = vpop.permute.xlu0 %3979
        %3981 = vset.pattern.permute.xlu0 0
        %3982 = vperm.xlu0 %3981, %v3505
        %v3983 = vpop.permute.xlu0 %3982
        %3984 = vset.pattern.permute.xlu0 0
        %3985 = vperm.xlu0 %3984, %v3506
        %v3986 = vpop.permute.xlu0 %3985
        %3987 = vset.pattern.permute.xlu0 0
        %3988 = vperm.xlu0 %3987, %v3507
        %v3989 = vpop.permute.xlu0 %3988
        %3990 = vset.pattern.permute.xlu0 0
        %3991 = vperm.xlu0 %3990, %v3508
        %v3992 = vpop.permute.xlu0 %3991
        %3993 = vset.pattern.permute.xlu0 0
        %3994 = vperm.xlu0 %3993, %v3509
        %v3995 = vpop.permute.xlu0 %3994
        %3996 = vset.pattern.permute.xlu0 0
        %3997 = vperm.xlu0 %3996, %v3510
        %v3998 = vpop.permute.xlu0 %3997
        %3999 = vset.pattern.permute.xlu0 0
        %4000 = vperm.xlu0 %3999, %v3511
        %v4001 = vpop.permute.xlu0 %4000
        %4002 = vset.pattern.permute.xlu0 0
        %4003 = vperm.xlu0 %4002, %v3512
        %v4004 = vpop.permute.xlu0 %4003
        %4005 = vset.pattern.permute.xlu0 0
        %4006 = vperm.xlu0 %4005, %v3513
        %v4007 = vpop.permute.xlu0 %4006
        %4008 = vset.pattern.permute.xlu0 0
        %4009 = vperm.xlu0 %4008, %v3514
        %v4010 = vpop.permute.xlu0 %4009
        %4011 = vset.pattern.permute.xlu0 0
        %4012 = vperm.xlu0 %4011, %v3515
        %v4013 = vpop.permute.xlu0 %4012
        %4014 = vset.pattern.permute.xlu0 0
        %4015 = vperm.xlu0 %4014, %v3516
        %v4016 = vpop.permute.xlu0 %4015
        %4017 = vset.pattern.permute.xlu0 0
        %4018 = vperm.xlu0 %4017, %v3517
        %v4019 = vpop.permute.xlu0 %4018
        %4020 = vset.pattern.permute.xlu0 0
        %4021 = vperm.xlu0 %4020, %v3518
        %v4022 = vpop.permute.xlu0 %4021
        %4023 = vset.pattern.permute.xlu0 0
        %4024 = vperm.xlu0 %4023, %v3519
        %v4025 = vpop.permute.xlu0 %4024
        %4026 = vset.pattern.permute.xlu0 0
        %4027 = vperm.xlu0 %4026, %v3520
        %v4028 = vpop.permute.xlu0 %4027
        %4029 = vset.pattern.permute.xlu0 0
        %4030 = vperm.xlu0 %4029, %v3521
        %v4031 = vpop.permute.xlu0 %4030
        %4032 = vset.pattern.permute.xlu0 0
        %4033 = vperm.xlu0 %4032, %v3522
        %v4034 = vpop.permute.xlu0 %4033
        %v4035 = vlaneseq
        %v4036 = vand.u32 %v4035, 127
        %v4037 = vlaneseq
        %v4038 = vshrl.u32 %v4037, 7
        %v4039 = vsub.s32 %v4036, %v4038
        %v4040 = vrot.slane %v3653, %v4039
        %v4041 = vadd.s32 %v4036, 4294967288
        %v4042 = vlaneseq
        %v4043 = vshrl.u32 %v4042, 7
        %v4044 = vsub.s32 %v4041, %v4043
        %v4045 = vrot.slane %v3656, %v4044
        %vm4046 = vcmask 130112
        %v4047 = vsel %vm4046, %v4045, %v4040
        %v4048 = vadd.s32 %v4036, 4294967280
        %v4049 = vlaneseq
        %v4050 = vshrl.u32 %v4049, 7
        %v4051 = vsub.s32 %v4048, %v4050
        %v4052 = vrot.slane %v3659, %v4051
        %vm4053 = vcmask 195712
        %v4054 = vsel %vm4053, %v4052, %v4047
        %v4055 = vadd.s32 %v4036, 4294967272
        %v4056 = vlaneseq
        %v4057 = vshrl.u32 %v4056, 7
        %v4058 = vsub.s32 %v4055, %v4057
        %v4059 = vrot.slane %v3662, %v4058
        %vm4060 = vcmask 261312
        %v4061 = vsel %vm4060, %v4059, %v4054
        %v4062 = vadd.s32 %v4036, 4294967264
        %v4063 = vlaneseq
        %v4064 = vshrl.u32 %v4063, 7
        %v4065 = vsub.s32 %v4062, %v4064
        %v4066 = vrot.slane %v3665, %v4065
        %vm4067 = vcmask 326912
        %v4068 = vsel %vm4067, %v4066, %v4061
        %v4069 = vadd.s32 %v4036, 4294967256
        %v4070 = vlaneseq
        %v4071 = vshrl.u32 %v4070, 7
        %v4072 = vsub.s32 %v4069, %v4071
        %v4073 = vrot.slane %v3668, %v4072
        %vm4074 = vcmask 392512
        %v4075 = vsel %vm4074, %v4073, %v4068
        %v4076 = vadd.s32 %v4036, 4294967248
        %v4077 = vlaneseq
        %v4078 = vshrl.u32 %v4077, 7
        %v4079 = vsub.s32 %v4076, %v4078
        %v4080 = vrot.slane %v3671, %v4079
        %vm4081 = vcmask 458112
        %v4082 = vsel %vm4081, %v4080, %v4075
        %v4083 = vadd.s32 %v4036, 4294967240
        %v4084 = vlaneseq
        %v4085 = vshrl.u32 %v4084, 7
        %v4086 = vsub.s32 %v4083, %v4085
        %v4087 = vrot.slane %v3674, %v4086
        %vm4088 = vcmask 523712
        %v4089 = vsel %vm4088, %v4087, %v4082
        %v4090 = vadd.s32 %v4036, 4294967232
        %v4091 = vlaneseq
        %v4092 = vshrl.u32 %v4091, 7
        %v4093 = vsub.s32 %v4090, %v4092
        %v4094 = vrot.slane %v3677, %v4093
        %vm4095 = vcmask 589312
        %v4096 = vsel %vm4095, %v4094, %v4089
        %v4097 = vadd.s32 %v4036, 4294967224
        %v4098 = vlaneseq
        %v4099 = vshrl.u32 %v4098, 7
        %v4100 = vsub.s32 %v4097, %v4099
        %v4101 = vrot.slane %v3680, %v4100
        %vm4102 = vcmask 654912
        %v4103 = vsel %vm4102, %v4101, %v4096
        %v4104 = vadd.s32 %v4036, 4294967216
        %v4105 = vlaneseq
        %v4106 = vshrl.u32 %v4105, 7
        %v4107 = vsub.s32 %v4104, %v4106
        %v4108 = vrot.slane %v3683, %v4107
        %vm4109 = vcmask 720512
        %v4110 = vsel %vm4109, %v4108, %v4103
        %v4111 = vadd.s32 %v4036, 4294967208
        %v4112 = vlaneseq
        %v4113 = vshrl.u32 %v4112, 7
        %v4114 = vsub.s32 %v4111, %v4113
        %v4115 = vrot.slane %v3686, %v4114
        %vm4116 = vcmask 786112
        %v4117 = vsel %vm4116, %v4115, %v4110
        %v4118 = vadd.s32 %v4036, 4294967200
        %v4119 = vlaneseq
        %v4120 = vshrl.u32 %v4119, 7
        %v4121 = vsub.s32 %v4118, %v4120
        %v4122 = vrot.slane %v3689, %v4121
        %vm4123 = vcmask 851712
        %v4124 = vsel %vm4123, %v4122, %v4117
        %v4125 = vadd.s32 %v4036, 4294967192
        %v4126 = vlaneseq
        %v4127 = vshrl.u32 %v4126, 7
        %v4128 = vsub.s32 %v4125, %v4127
        %v4129 = vrot.slane %v3692, %v4128
        %vm4130 = vcmask 917312
        %v4131 = vsel %vm4130, %v4129, %v4124
        %v4132 = vadd.s32 %v4036, 4294967184
        %v4133 = vlaneseq
        %v4134 = vshrl.u32 %v4133, 7
        %v4135 = vsub.s32 %v4132, %v4134
        %v4136 = vrot.slane %v3695, %v4135
        %vm4137 = vcmask 982912
        %v4138 = vsel %vm4137, %v4136, %v4131
        %v4139 = vadd.s32 %v4036, 4294967176
        %v4140 = vlaneseq
        %v4141 = vshrl.u32 %v4140, 7
        %v4142 = vsub.s32 %v4139, %v4141
        %v4143 = vrot.slane %v3698, %v4142
        %vm4144 = vcmask 1048512
        %v4145 = vsel %vm4144, %v4143, %v4138
        %v4146 = vlaneseq
        %v4147 = vshrl.u32 %v4146, 7
        %v4148 = vsub.s32 %v4036, %v4147
        %v4149 = vrot.slane %v3701, %v4148
        %v4150 = vlaneseq
        %v4151 = vshrl.u32 %v4150, 7
        %v4152 = vsub.s32 %v4041, %v4151
        %v4153 = vrot.slane %v3704, %v4152
        %v4154 = vsel %vm4046, %v4153, %v4149
        %v4155 = vlaneseq
        %v4156 = vshrl.u32 %v4155, 7
        %v4157 = vsub.s32 %v4048, %v4156
        %v4158 = vrot.slane %v3707, %v4157
        %v4159 = vsel %vm4053, %v4158, %v4154
        %v4160 = vlaneseq
        %v4161 = vshrl.u32 %v4160, 7
        %v4162 = vsub.s32 %v4055, %v4161
        %v4163 = vrot.slane %v3710, %v4162
        %v4164 = vsel %vm4060, %v4163, %v4159
        %v4165 = vlaneseq
        %v4166 = vshrl.u32 %v4165, 7
        %v4167 = vsub.s32 %v4062, %v4166
        %v4168 = vrot.slane %v3713, %v4167
        %v4169 = vsel %vm4067, %v4168, %v4164
        %v4170 = vlaneseq
        %v4171 = vshrl.u32 %v4170, 7
        %v4172 = vsub.s32 %v4069, %v4171
        %v4173 = vrot.slane %v3716, %v4172
        %v4174 = vsel %vm4074, %v4173, %v4169
        %v4175 = vlaneseq
        %v4176 = vshrl.u32 %v4175, 7
        %v4177 = vsub.s32 %v4076, %v4176
        %v4178 = vrot.slane %v3719, %v4177
        %v4179 = vsel %vm4081, %v4178, %v4174
        %v4180 = vlaneseq
        %v4181 = vshrl.u32 %v4180, 7
        %v4182 = vsub.s32 %v4083, %v4181
        %v4183 = vrot.slane %v3722, %v4182
        %v4184 = vsel %vm4088, %v4183, %v4179
        %v4185 = vlaneseq
        %v4186 = vshrl.u32 %v4185, 7
        %v4187 = vsub.s32 %v4090, %v4186
        %v4188 = vrot.slane %v3725, %v4187
        %v4189 = vsel %vm4095, %v4188, %v4184
        %v4190 = vlaneseq
        %v4191 = vshrl.u32 %v4190, 7
        %v4192 = vsub.s32 %v4097, %v4191
        %v4193 = vrot.slane %v3728, %v4192
        %v4194 = vsel %vm4102, %v4193, %v4189
        %v4195 = vlaneseq
        %v4196 = vshrl.u32 %v4195, 7
        %v4197 = vsub.s32 %v4104, %v4196
        %v4198 = vrot.slane %v3731, %v4197
        %v4199 = vsel %vm4109, %v4198, %v4194
        %v4200 = vlaneseq
        %v4201 = vshrl.u32 %v4200, 7
        %v4202 = vsub.s32 %v4111, %v4201
        %v4203 = vrot.slane %v3734, %v4202
        %v4204 = vsel %vm4116, %v4203, %v4199
        %v4205 = vlaneseq
        %v4206 = vshrl.u32 %v4205, 7
        %v4207 = vsub.s32 %v4118, %v4206
        %v4208 = vrot.slane %v3737, %v4207
        %v4209 = vsel %vm4123, %v4208, %v4204
        %v4210 = vlaneseq
        %v4211 = vshrl.u32 %v4210, 7
        %v4212 = vsub.s32 %v4125, %v4211
        %v4213 = vrot.slane %v3740, %v4212
        %v4214 = vsel %vm4130, %v4213, %v4209
        %v4215 = vlaneseq
        %v4216 = vshrl.u32 %v4215, 7
        %v4217 = vsub.s32 %v4132, %v4216
        %v4218 = vrot.slane %v3743, %v4217
        %v4219 = vsel %vm4137, %v4218, %v4214
        %v4220 = vlaneseq
        %v4221 = vshrl.u32 %v4220, 7
        %v4222 = vsub.s32 %v4139, %v4221
        %v4223 = vrot.slane %v3746, %v4222
        %v4224 = vsel %vm4144, %v4223, %v4219
        %v4225 = vlaneseq
        %v4226 = vshrl.u32 %v4225, 7
        %v4227 = vsub.s32 %v4036, %v4226
        %v4228 = vrot.slane %v3749, %v4227
        %v4229 = vlaneseq
        %v4230 = vshrl.u32 %v4229, 7
        %v4231 = vsub.s32 %v4041, %v4230
        %v4232 = vrot.slane %v3752, %v4231
        %v4233 = vsel %vm4046, %v4232, %v4228
        %v4234 = vlaneseq
        %v4235 = vshrl.u32 %v4234, 7
        %v4236 = vsub.s32 %v4048, %v4235
        %v4237 = vrot.slane %v3755, %v4236
        %v4238 = vsel %vm4053, %v4237, %v4233
        %v4239 = vlaneseq
        %v4240 = vshrl.u32 %v4239, 7
        %v4241 = vsub.s32 %v4055, %v4240
        %v4242 = vrot.slane %v3758, %v4241
        %v4243 = vsel %vm4060, %v4242, %v4238
        %v4244 = vlaneseq
        %v4245 = vshrl.u32 %v4244, 7
        %v4246 = vsub.s32 %v4062, %v4245
        %v4247 = vrot.slane %v3761, %v4246
        %v4248 = vsel %vm4067, %v4247, %v4243
        %v4249 = vlaneseq
        %v4250 = vshrl.u32 %v4249, 7
        %v4251 = vsub.s32 %v4069, %v4250
        %v4252 = vrot.slane %v3764, %v4251
        %v4253 = vsel %vm4074, %v4252, %v4248
        %v4254 = vlaneseq
        %v4255 = vshrl.u32 %v4254, 7
        %v4256 = vsub.s32 %v4076, %v4255
        %v4257 = vrot.slane %v3767, %v4256
        %v4258 = vsel %vm4081, %v4257, %v4253
        %v4259 = vlaneseq
        %v4260 = vshrl.u32 %v4259, 7
        %v4261 = vsub.s32 %v4083, %v4260
        %v4262 = vrot.slane %v3770, %v4261
        %v4263 = vsel %vm4088, %v4262, %v4258
        %v4264 = vlaneseq
        %v4265 = vshrl.u32 %v4264, 7
        %v4266 = vsub.s32 %v4090, %v4265
        %v4267 = vrot.slane %v3773, %v4266
        %v4268 = vsel %vm4095, %v4267, %v4263
        %v4269 = vlaneseq
        %v4270 = vshrl.u32 %v4269, 7
        %v4271 = vsub.s32 %v4097, %v4270
        %v4272 = vrot.slane %v3776, %v4271
        %v4273 = vsel %vm4102, %v4272, %v4268
        %v4274 = vlaneseq
        %v4275 = vshrl.u32 %v4274, 7
        %v4276 = vsub.s32 %v4104, %v4275
        %v4277 = vrot.slane %v3779, %v4276
        %v4278 = vsel %vm4109, %v4277, %v4273
        %v4279 = vlaneseq
        %v4280 = vshrl.u32 %v4279, 7
        %v4281 = vsub.s32 %v4111, %v4280
        %v4282 = vrot.slane %v3782, %v4281
        %v4283 = vsel %vm4116, %v4282, %v4278
        %v4284 = vlaneseq
        %v4285 = vshrl.u32 %v4284, 7
        %v4286 = vsub.s32 %v4118, %v4285
        %v4287 = vrot.slane %v3785, %v4286
        %v4288 = vsel %vm4123, %v4287, %v4283
        %v4289 = vlaneseq
        %v4290 = vshrl.u32 %v4289, 7
        %v4291 = vsub.s32 %v4125, %v4290
        %v4292 = vrot.slane %v3788, %v4291
        %v4293 = vsel %vm4130, %v4292, %v4288
        %v4294 = vlaneseq
        %v4295 = vshrl.u32 %v4294, 7
        %v4296 = vsub.s32 %v4132, %v4295
        %v4297 = vrot.slane %v3791, %v4296
        %v4298 = vsel %vm4137, %v4297, %v4293
        %v4299 = vlaneseq
        %v4300 = vshrl.u32 %v4299, 7
        %v4301 = vsub.s32 %v4139, %v4300
        %v4302 = vrot.slane %v3794, %v4301
        %v4303 = vsel %vm4144, %v4302, %v4298
        %v4304 = vlaneseq
        %v4305 = vshrl.u32 %v4304, 7
        %v4306 = vsub.s32 %v4036, %v4305
        %v4307 = vrot.slane %v3797, %v4306
        %v4308 = vlaneseq
        %v4309 = vshrl.u32 %v4308, 7
        %v4310 = vsub.s32 %v4041, %v4309
        %v4311 = vrot.slane %v3800, %v4310
        %v4312 = vsel %vm4046, %v4311, %v4307
        %v4313 = vlaneseq
        %v4314 = vshrl.u32 %v4313, 7
        %v4315 = vsub.s32 %v4048, %v4314
        %v4316 = vrot.slane %v3803, %v4315
        %v4317 = vsel %vm4053, %v4316, %v4312
        %v4318 = vlaneseq
        %v4319 = vshrl.u32 %v4318, 7
        %v4320 = vsub.s32 %v4055, %v4319
        %v4321 = vrot.slane %v3806, %v4320
        %v4322 = vsel %vm4060, %v4321, %v4317
        %v4323 = vlaneseq
        %v4324 = vshrl.u32 %v4323, 7
        %v4325 = vsub.s32 %v4062, %v4324
        %v4326 = vrot.slane %v3809, %v4325
        %v4327 = vsel %vm4067, %v4326, %v4322
        %v4328 = vlaneseq
        %v4329 = vshrl.u32 %v4328, 7
        %v4330 = vsub.s32 %v4069, %v4329
        %v4331 = vrot.slane %v3812, %v4330
        %v4332 = vsel %vm4074, %v4331, %v4327
        %v4333 = vlaneseq
        %v4334 = vshrl.u32 %v4333, 7
        %v4335 = vsub.s32 %v4076, %v4334
        %v4336 = vrot.slane %v3815, %v4335
        %v4337 = vsel %vm4081, %v4336, %v4332
        %v4338 = vlaneseq
        %v4339 = vshrl.u32 %v4338, 7
        %v4340 = vsub.s32 %v4083, %v4339
        %v4341 = vrot.slane %v3818, %v4340
        %v4342 = vsel %vm4088, %v4341, %v4337
        %v4343 = vlaneseq
        %v4344 = vshrl.u32 %v4343, 7
        %v4345 = vsub.s32 %v4090, %v4344
        %v4346 = vrot.slane %v3821, %v4345
        %v4347 = vsel %vm4095, %v4346, %v4342
        %v4348 = vlaneseq
        %v4349 = vshrl.u32 %v4348, 7
        %v4350 = vsub.s32 %v4097, %v4349
        %v4351 = vrot.slane %v3824, %v4350
        %v4352 = vsel %vm4102, %v4351, %v4347
        %v4353 = vlaneseq
        %v4354 = vshrl.u32 %v4353, 7
        %v4355 = vsub.s32 %v4104, %v4354
        %v4356 = vrot.slane %v3827, %v4355
        %v4357 = vsel %vm4109, %v4356, %v4352
        %v4358 = vlaneseq
        %v4359 = vshrl.u32 %v4358, 7
        %v4360 = vsub.s32 %v4111, %v4359
        %v4361 = vrot.slane %v3830, %v4360
        %v4362 = vsel %vm4116, %v4361, %v4357
        %v4363 = vlaneseq
        %v4364 = vshrl.u32 %v4363, 7
        %v4365 = vsub.s32 %v4118, %v4364
        %v4366 = vrot.slane %v3833, %v4365
        %v4367 = vsel %vm4123, %v4366, %v4362
        %v4368 = vlaneseq
        %v4369 = vshrl.u32 %v4368, 7
        %v4370 = vsub.s32 %v4125, %v4369
        %v4371 = vrot.slane %v3836, %v4370
        %v4372 = vsel %vm4130, %v4371, %v4367
        %v4373 = vlaneseq
        %v4374 = vshrl.u32 %v4373, 7
        %v4375 = vsub.s32 %v4132, %v4374
        %v4376 = vrot.slane %v3839, %v4375
        %v4377 = vsel %vm4137, %v4376, %v4372
        %v4378 = vlaneseq
        %v4379 = vshrl.u32 %v4378, 7
        %v4380 = vsub.s32 %v4139, %v4379
        %v4381 = vrot.slane %v3842, %v4380
        %v4382 = vsel %vm4144, %v4381, %v4377
        %v4383 = vlaneseq
        %v4384 = vshrl.u32 %v4383, 7
        %v4385 = vsub.s32 %v4036, %v4384
        %v4386 = vrot.slane %v3845, %v4385
        %v4387 = vlaneseq
        %v4388 = vshrl.u32 %v4387, 7
        %v4389 = vsub.s32 %v4041, %v4388
        %v4390 = vrot.slane %v3848, %v4389
        %v4391 = vsel %vm4046, %v4390, %v4386
        %v4392 = vlaneseq
        %v4393 = vshrl.u32 %v4392, 7
        %v4394 = vsub.s32 %v4048, %v4393
        %v4395 = vrot.slane %v3851, %v4394
        %v4396 = vsel %vm4053, %v4395, %v4391
        %v4397 = vlaneseq
        %v4398 = vshrl.u32 %v4397, 7
        %v4399 = vsub.s32 %v4055, %v4398
        %v4400 = vrot.slane %v3854, %v4399
        %v4401 = vsel %vm4060, %v4400, %v4396
        %v4402 = vlaneseq
        %v4403 = vshrl.u32 %v4402, 7
        %v4404 = vsub.s32 %v4062, %v4403
        %v4405 = vrot.slane %v3857, %v4404
        %v4406 = vsel %vm4067, %v4405, %v4401
        %v4407 = vlaneseq
        %v4408 = vshrl.u32 %v4407, 7
        %v4409 = vsub.s32 %v4069, %v4408
        %v4410 = vrot.slane %v3860, %v4409
        %v4411 = vsel %vm4074, %v4410, %v4406
        %v4412 = vlaneseq
        %v4413 = vshrl.u32 %v4412, 7
        %v4414 = vsub.s32 %v4076, %v4413
        %v4415 = vrot.slane %v3863, %v4414
        %v4416 = vsel %vm4081, %v4415, %v4411
        %v4417 = vlaneseq
        %v4418 = vshrl.u32 %v4417, 7
        %v4419 = vsub.s32 %v4083, %v4418
        %v4420 = vrot.slane %v3866, %v4419
        %v4421 = vsel %vm4088, %v4420, %v4416
        %v4422 = vlaneseq
        %v4423 = vshrl.u32 %v4422, 7
        %v4424 = vsub.s32 %v4090, %v4423
        %v4425 = vrot.slane %v3869, %v4424
        %v4426 = vsel %vm4095, %v4425, %v4421
        %v4427 = vlaneseq
        %v4428 = vshrl.u32 %v4427, 7
        %v4429 = vsub.s32 %v4097, %v4428
        %v4430 = vrot.slane %v3872, %v4429
        %v4431 = vsel %vm4102, %v4430, %v4426
        %v4432 = vlaneseq
        %v4433 = vshrl.u32 %v4432, 7
        %v4434 = vsub.s32 %v4104, %v4433
        %v4435 = vrot.slane %v3875, %v4434
        %v4436 = vsel %vm4109, %v4435, %v4431
        %v4437 = vlaneseq
        %v4438 = vshrl.u32 %v4437, 7
        %v4439 = vsub.s32 %v4111, %v4438
        %v4440 = vrot.slane %v3878, %v4439
        %v4441 = vsel %vm4116, %v4440, %v4436
        %v4442 = vlaneseq
        %v4443 = vshrl.u32 %v4442, 7
        %v4444 = vsub.s32 %v4118, %v4443
        %v4445 = vrot.slane %v3881, %v4444
        %v4446 = vsel %vm4123, %v4445, %v4441
        %v4447 = vlaneseq
        %v4448 = vshrl.u32 %v4447, 7
        %v4449 = vsub.s32 %v4125, %v4448
        %v4450 = vrot.slane %v3884, %v4449
        %v4451 = vsel %vm4130, %v4450, %v4446
        %v4452 = vlaneseq
        %v4453 = vshrl.u32 %v4452, 7
        %v4454 = vsub.s32 %v4132, %v4453
        %v4455 = vrot.slane %v3887, %v4454
        %v4456 = vsel %vm4137, %v4455, %v4451
        %v4457 = vlaneseq
        %v4458 = vshrl.u32 %v4457, 7
        %v4459 = vsub.s32 %v4139, %v4458
        %v4460 = vrot.slane %v3890, %v4459
        %v4461 = vsel %vm4144, %v4460, %v4456
        %v4462 = vlaneseq
        %v4463 = vshrl.u32 %v4462, 7
        %v4464 = vsub.s32 %v4036, %v4463
        %v4465 = vrot.slane %v3893, %v4464
        %v4466 = vlaneseq
        %v4467 = vshrl.u32 %v4466, 7
        %v4468 = vsub.s32 %v4041, %v4467
        %v4469 = vrot.slane %v3896, %v4468
        %v4470 = vsel %vm4046, %v4469, %v4465
        %v4471 = vlaneseq
        %v4472 = vshrl.u32 %v4471, 7
        %v4473 = vsub.s32 %v4048, %v4472
        %v4474 = vrot.slane %v3899, %v4473
        %v4475 = vsel %vm4053, %v4474, %v4470
        %v4476 = vlaneseq
        %v4477 = vshrl.u32 %v4476, 7
        %v4478 = vsub.s32 %v4055, %v4477
        %v4479 = vrot.slane %v3902, %v4478
        %v4480 = vsel %vm4060, %v4479, %v4475
        %v4481 = vlaneseq
        %v4482 = vshrl.u32 %v4481, 7
        %v4483 = vsub.s32 %v4062, %v4482
        %v4484 = vrot.slane %v3905, %v4483
        %v4485 = vsel %vm4067, %v4484, %v4480
        %v4486 = vlaneseq
        %v4487 = vshrl.u32 %v4486, 7
        %v4488 = vsub.s32 %v4069, %v4487
        %v4489 = vrot.slane %v3908, %v4488
        %v4490 = vsel %vm4074, %v4489, %v4485
        %v4491 = vlaneseq
        %v4492 = vshrl.u32 %v4491, 7
        %v4493 = vsub.s32 %v4076, %v4492
        %v4494 = vrot.slane %v3911, %v4493
        %v4495 = vsel %vm4081, %v4494, %v4490
        %v4496 = vlaneseq
        %v4497 = vshrl.u32 %v4496, 7
        %v4498 = vsub.s32 %v4083, %v4497
        %v4499 = vrot.slane %v3914, %v4498
        %v4500 = vsel %vm4088, %v4499, %v4495
        %v4501 = vlaneseq
        %v4502 = vshrl.u32 %v4501, 7
        %v4503 = vsub.s32 %v4090, %v4502
        %v4504 = vrot.slane %v3917, %v4503
        %v4505 = vsel %vm4095, %v4504, %v4500
        %v4506 = vlaneseq
        %v4507 = vshrl.u32 %v4506, 7
        %v4508 = vsub.s32 %v4097, %v4507
        %v4509 = vrot.slane %v3920, %v4508
        %v4510 = vsel %vm4102, %v4509, %v4505
        %v4511 = vlaneseq
        %v4512 = vshrl.u32 %v4511, 7
        %v4513 = vsub.s32 %v4104, %v4512
        %v4514 = vrot.slane %v3923, %v4513
        %v4515 = vsel %vm4109, %v4514, %v4510
        %v4516 = vlaneseq
        %v4517 = vshrl.u32 %v4516, 7
        %v4518 = vsub.s32 %v4111, %v4517
        %v4519 = vrot.slane %v3926, %v4518
        %v4520 = vsel %vm4116, %v4519, %v4515
        %v4521 = vlaneseq
        %v4522 = vshrl.u32 %v4521, 7
        %v4523 = vsub.s32 %v4118, %v4522
        %v4524 = vrot.slane %v3929, %v4523
        %v4525 = vsel %vm4123, %v4524, %v4520
        %v4526 = vlaneseq
        %v4527 = vshrl.u32 %v4526, 7
        %v4528 = vsub.s32 %v4125, %v4527
        %v4529 = vrot.slane %v3932, %v4528
        %v4530 = vsel %vm4130, %v4529, %v4525
        %v4531 = vlaneseq
        %v4532 = vshrl.u32 %v4531, 7
        %v4533 = vsub.s32 %v4132, %v4532
        %v4534 = vrot.slane %v3935, %v4533
        %v4535 = vsel %vm4137, %v4534, %v4530
        %v4536 = vlaneseq
        %v4537 = vshrl.u32 %v4536, 7
        %v4538 = vsub.s32 %v4139, %v4537
        %v4539 = vrot.slane %v3938, %v4538
        %v4540 = vsel %vm4144, %v4539, %v4535
        %v4541 = vlaneseq
        %v4542 = vshrl.u32 %v4541, 7
        %v4543 = vsub.s32 %v4036, %v4542
        %v4544 = vrot.slane %v3941, %v4543
        %v4545 = vlaneseq
        %v4546 = vshrl.u32 %v4545, 7
        %v4547 = vsub.s32 %v4041, %v4546
        %v4548 = vrot.slane %v3944, %v4547
        %v4549 = vsel %vm4046, %v4548, %v4544
        %v4550 = vlaneseq
        %v4551 = vshrl.u32 %v4550, 7
        %v4552 = vsub.s32 %v4048, %v4551
        %v4553 = vrot.slane %v3947, %v4552
        %v4554 = vsel %vm4053, %v4553, %v4549
        %v4555 = vlaneseq
        %v4556 = vshrl.u32 %v4555, 7
        %v4557 = vsub.s32 %v4055, %v4556
        %v4558 = vrot.slane %v3950, %v4557
        %v4559 = vsel %vm4060, %v4558, %v4554
        %v4560 = vlaneseq
        %v4561 = vshrl.u32 %v4560, 7
        %v4562 = vsub.s32 %v4062, %v4561
        %v4563 = vrot.slane %v3953, %v4562
        %v4564 = vsel %vm4067, %v4563, %v4559
        %v4565 = vlaneseq
        %v4566 = vshrl.u32 %v4565, 7
        %v4567 = vsub.s32 %v4069, %v4566
        %v4568 = vrot.slane %v3956, %v4567
        %v4569 = vsel %vm4074, %v4568, %v4564
        %v4570 = vlaneseq
        %v4571 = vshrl.u32 %v4570, 7
        %v4572 = vsub.s32 %v4076, %v4571
        %v4573 = vrot.slane %v3959, %v4572
        %v4574 = vsel %vm4081, %v4573, %v4569
        %v4575 = vlaneseq
        %v4576 = vshrl.u32 %v4575, 7
        %v4577 = vsub.s32 %v4083, %v4576
        %v4578 = vrot.slane %v3962, %v4577
        %v4579 = vsel %vm4088, %v4578, %v4574
        %v4580 = vlaneseq
        %v4581 = vshrl.u32 %v4580, 7
        %v4582 = vsub.s32 %v4090, %v4581
        %v4583 = vrot.slane %v3965, %v4582
        %v4584 = vsel %vm4095, %v4583, %v4579
        %v4585 = vlaneseq
        %v4586 = vshrl.u32 %v4585, 7
        %v4587 = vsub.s32 %v4097, %v4586
        %v4588 = vrot.slane %v3968, %v4587
        %v4589 = vsel %vm4102, %v4588, %v4584
        %v4590 = vlaneseq
        %v4591 = vshrl.u32 %v4590, 7
        %v4592 = vsub.s32 %v4104, %v4591
        %v4593 = vrot.slane %v3971, %v4592
        %v4594 = vsel %vm4109, %v4593, %v4589
        %v4595 = vlaneseq
        %v4596 = vshrl.u32 %v4595, 7
        %v4597 = vsub.s32 %v4111, %v4596
        %v4598 = vrot.slane %v3974, %v4597
        %v4599 = vsel %vm4116, %v4598, %v4594
        %v4600 = vlaneseq
        %v4601 = vshrl.u32 %v4600, 7
        %v4602 = vsub.s32 %v4118, %v4601
        %v4603 = vrot.slane %v3977, %v4602
        %v4604 = vsel %vm4123, %v4603, %v4599
        %v4605 = vlaneseq
        %v4606 = vshrl.u32 %v4605, 7
        %v4607 = vsub.s32 %v4125, %v4606
        %v4608 = vrot.slane %v3980, %v4607
        %v4609 = vsel %vm4130, %v4608, %v4604
        %v4610 = vlaneseq
        %v4611 = vshrl.u32 %v4610, 7
        %v4612 = vsub.s32 %v4132, %v4611
        %v4613 = vrot.slane %v3983, %v4612
        %v4614 = vsel %vm4137, %v4613, %v4609
        %v4615 = vlaneseq
        %v4616 = vshrl.u32 %v4615, 7
        %v4617 = vsub.s32 %v4139, %v4616
        %v4618 = vrot.slane %v3986, %v4617
        %v4619 = vsel %vm4144, %v4618, %v4614
        %v4620 = vlaneseq
        %v4621 = vshrl.u32 %v4620, 7
        %v4622 = vsub.s32 %v4036, %v4621
        %v4623 = vrot.slane %v3989, %v4622
        %v4624 = vlaneseq
        %v4625 = vshrl.u32 %v4624, 7
        %v4626 = vsub.s32 %v4041, %v4625
        %v4627 = vrot.slane %v3992, %v4626
        %v4628 = vsel %vm4046, %v4627, %v4623
        %v4629 = vlaneseq
        %v4630 = vshrl.u32 %v4629, 7
        %v4631 = vsub.s32 %v4048, %v4630
        %v4632 = vrot.slane %v3995, %v4631
        %v4633 = vsel %vm4053, %v4632, %v4628
        %v4634 = vlaneseq
        %v4635 = vshrl.u32 %v4634, 7
        %v4636 = vsub.s32 %v4055, %v4635
        %v4637 = vrot.slane %v3998, %v4636
        %v4638 = vsel %vm4060, %v4637, %v4633
        %v4639 = vlaneseq
        %v4640 = vshrl.u32 %v4639, 7
        %v4641 = vsub.s32 %v4062, %v4640
        %v4642 = vrot.slane %v4001, %v4641
        %v4643 = vsel %vm4067, %v4642, %v4638
        %v4644 = vlaneseq
        %v4645 = vshrl.u32 %v4644, 7
        %v4646 = vsub.s32 %v4069, %v4645
        %v4647 = vrot.slane %v4004, %v4646
        %v4648 = vsel %vm4074, %v4647, %v4643
        %v4649 = vlaneseq
        %v4650 = vshrl.u32 %v4649, 7
        %v4651 = vsub.s32 %v4076, %v4650
        %v4652 = vrot.slane %v4007, %v4651
        %v4653 = vsel %vm4081, %v4652, %v4648
        %v4654 = vlaneseq
        %v4655 = vshrl.u32 %v4654, 7
        %v4656 = vsub.s32 %v4083, %v4655
        %v4657 = vrot.slane %v4010, %v4656
        %v4658 = vsel %vm4088, %v4657, %v4653
        %v4659 = vlaneseq
        %v4660 = vshrl.u32 %v4659, 7
        %v4661 = vsub.s32 %v4090, %v4660
        %v4662 = vrot.slane %v4013, %v4661
        %v4663 = vsel %vm4095, %v4662, %v4658
        %v4664 = vlaneseq
        %v4665 = vshrl.u32 %v4664, 7
        %v4666 = vsub.s32 %v4097, %v4665
        %v4667 = vrot.slane %v4016, %v4666
        %v4668 = vsel %vm4102, %v4667, %v4663
        %v4669 = vlaneseq
        %v4670 = vshrl.u32 %v4669, 7
        %v4671 = vsub.s32 %v4104, %v4670
        %v4672 = vrot.slane %v4019, %v4671
        %v4673 = vsel %vm4109, %v4672, %v4668
        %v4674 = vlaneseq
        %v4675 = vshrl.u32 %v4674, 7
        %v4676 = vsub.s32 %v4111, %v4675
        %v4677 = vrot.slane %v4022, %v4676
        %v4678 = vsel %vm4116, %v4677, %v4673
        %v4679 = vlaneseq
        %v4680 = vshrl.u32 %v4679, 7
        %v4681 = vsub.s32 %v4118, %v4680
        %v4682 = vrot.slane %v4025, %v4681
        %v4683 = vsel %vm4123, %v4682, %v4678
        %v4684 = vlaneseq
        %v4685 = vshrl.u32 %v4684, 7
        %v4686 = vsub.s32 %v4125, %v4685
        %v4687 = vrot.slane %v4028, %v4686
        %v4688 = vsel %vm4130, %v4687, %v4683
        %v4689 = vlaneseq
        %v4690 = vshrl.u32 %v4689, 7
        %v4691 = vsub.s32 %v4132, %v4690
        %v4692 = vrot.slane %v4031, %v4691
        %v4693 = vsel %vm4137, %v4692, %v4688
        %v4694 = vlaneseq
        %v4695 = vshrl.u32 %v4694, 7
        %v4696 = vsub.s32 %v4139, %v4695
        %v4697 = vrot.slane %v4034, %v4696
        %v4698 = vsel %vm4144, %v4697, %v4693
        %vm4699 = vcmask 1041409
        %v4700 = vsel %vm4699, %v4224, %v4145
        %vm4701 = vcmask 1042434
        %v4702 = vsel %vm4701, %v4303, %v4700
        %vm4703 = vcmask 1043459
        %v4704 = vsel %vm4703, %v4382, %v4702
        %vm4705 = vcmask 1044484
        %v4706 = vsel %vm4705, %v4461, %v4704
        %vm4707 = vcmask 1045509
        %v4708 = vsel %vm4707, %v4540, %v4706
        %vm4709 = vcmask 1046534
        %v4710 = vsel %vm4709, %v4619, %v4708
        %vm4711 = vcmask 1047559
        %v4712 = vsel %vm4711, %v4698, %v4710
        %4714 = vst [vmem:[%s170] sm:$0xff] %v4712
        %s4715 = sand.u32 %s75, 1
        %s4716 = scalar_lea.sflag [#allocation4], %s4715
        %s4717 = sand.u32 %s75, 1
        %s4718 = smul.addr %s4717, 8
        %s4719 = scalar_lea.vmem [#allocation7], %s4718
        // Predicated region
        $region37: #{tpu_custom_call.1} parent=27 // pred_check
          %p4720 = pneg %p85
        $region38: #{tpu_custom_call.1} parent=27 // pred_check_branch
          %4722 = sbr.rel (%p4720) target = $region40
        $region39: #{tpu_custom_call.1} parent=27 // pred_region
          %s4724 = ssub.s32 128, 128
          %4725 = vsyncadd %s4716, %s4724
          %s4726 = smul.addr %s20, 128
          %s4727 = scalar_lea.hbm %s2, %s4726
          %s4729 = sshll.u32 %s4719, 4
          %s4730 = int_to_ptr.vmem [resolvable:$true] %s4729
          %4732 = dma.vmem_to_hbm [thread:$0]  %s4730, 128, %s4727, %s4716
        $region40: #{tpu_custom_call.1} parent=27 // pred_fallthru
          _
      $region28: #{tpu_custom_call.1} parent=5 // pred_fallthru
        _
      %p4733 = scmp.le.s32.totalorder 2, %s15
      // Predicated region
      $region41: #{tpu_custom_call.1} parent=5 // pred_check
        %p4734 = pneg %p4733
      $region42: #{tpu_custom_call.1} parent=5 // pred_check_branch
        %4736 = sbr.rel (%p4734) target = $region44
      $region43: #{tpu_custom_call.1} parent=5 // pred_region
        %s4737 = ssub.s32 %s15, 2
        // Predicated region
        $region45: #{tpu_custom_call.1} parent=43 // pred_check
          %p4738 = pneg %p91
        $region46: #{tpu_custom_call.1} parent=43 // pred_check_branch
          %4740 = sbr.rel (%p4738) target = $region48
        $region47: #{tpu_custom_call.1} parent=43 // pred_region
          %s4741 = sand.u32 %s76, 1
          %s4742 = scalar_lea.sflag [#allocation4], %s4741
          %s4743 = sand.u32 %s76, 1
          %s4744 = smul.addr %s4743, 8
          %s4745 = scalar_lea.vmem [#allocation7], %s4744
          %4746 = dma.done %s4742, 128
        $region48: #{tpu_custom_call.1} parent=43 // pred_fallthru
          _
      $region44: #{tpu_custom_call.1} parent=5 // pred_fallthru
        _
    $region6: #{tpu_custom_call.1} parent=1 // loop_footer
      %s19 = sadd.s32 1, %s15
    $region7: #{tpu_custom_call.1} parent=1 // loop_footer_branch
      %14 = sbr.rel target = $region3
    $region8: #{tpu_custom_call.1} parent=1 // loop_exit
      _
    %4747 = vsyncpa [#allocation3], 1
    %s4748 = scalar_lea.sflag [#allocation3], 1
    %4749 = vsyncpa %s4748, 1
    %4750 = vsyncpa [#allocation4], 1
    %s4751 = scalar_lea.sflag [#allocation4], 1
    %4752 = vsyncpa %s4751, 1
    %4753 = vsyncpa [#allocation5], 1
    %s4754 = scalar_lea.sflag [#allocation5], 1
    %4755 = vsyncpa %s4754, 1

</llo_original>
